<compile_context>
chip_gen: v6e
topology: v6e:2x2x1
jax: 0.10.0
libtpu: 0.0.40
codegen_flags: <defaults>
</compile_context>

<pallas_src>
import functools
import numpy as np
import jax
import jax.numpy as jnp
from jax.experimental import pallas as pl
from jax.experimental.pallas import tpu as pltpu


_NEG_INF = -1e30


def _round_up(x, m):
    return (x + m - 1) // m * m


def _layernorm(x, gamma, beta, eps=1e-5):
    mu = jnp.mean(x, axis=-1, keepdims=True)
    xc = x - mu
    var = jnp.mean(xc * xc, axis=-1, keepdims=True)
    return xc * jax.lax.rsqrt(var + eps) * gamma + beta


# ----------------------------- fused kernel ---------------------------------


def gsrm_fused_kernel(x_ref, pos_ref,
                      wfc_ref, bfc_ref, emb_ref,
                      wqkv_ref, bqkv_ref, biaskv_ref, wo_ref, bo_ref,
                      w1_ref, b1_ref, w2_ref, b2_ref, lng_ref, lnb_ref,
                      wout_ref, bout_ref,
                      word_out_ref, feat_ref, gsrm_out_ref,
                      *, num_heads, num_layers, mxu_dtype):
    dt = mxu_dtype
    x = x_ref[...]                                   # (G, B, E) f32, G T-groups
    G, B, E = x.shape
    R = G * B                                        # rows in this grid step
    Cp = wfc_ref.shape[1]                            # lane-padded class dim
    hd = E // num_heads
    scale = 1.0 / float(np.sqrt(hd))

    xf = x.reshape(R, E)                             # leading-dim merge: layout-free

    # ---- word_out = softmax(x @ Wfc + b)  (f32 weights, exact softmax) ------
    logits = (jnp.dot(xf, wfc_ref[...], preferred_element_type=jnp.float32)
              + bfc_ref[...])                        # padded cols carry -1e30 bias
    m = jnp.max(logits, axis=-1, keepdims=True)
    e_ = jnp.exp(logits - m)
    word_out_ref[...] = (e_ / jnp.sum(e_, axis=-1, keepdims=True)).reshape(G, B, Cp)

    # ---- argmax -> embedding lookup (one-hot MXU gather) + positional enc ---
    col = jax.lax.broadcasted_iota(jnp.int32, (R, Cp), 1)
    ids = jnp.min(jnp.where(logits == m, col, Cp), axis=-1, keepdims=True)
    onehot = (col == ids).astype(emb_ref.dtype)
    # TODO(synk): at production vocab sizes keep `emb` in HBM (pl.ANY) and
    # DMA-gather the argmax rows instead of the one-hot matmul with a VMEM table.
    emb_rows = jnp.dot(onehot, emb_ref[...], preferred_element_type=jnp.float32)
    feat = (emb_rows.reshape(G, B, E) + pos_ref[...]).reshape(R, E)   # + pos[t]

    # ---- TransformerUnits: block-diagonal attention (dense per T-group) -----
    for li in range(num_layers):                     # static unroll (2 layers)
        xin = feat

        # packed QKV projection (one MXU pass, bf16 operands, f32 accum)
        qkv = (jnp.dot(xin.astype(dt), wqkv_ref[li],
                       preferred_element_type=jnp.float32) + bqkv_ref[li])
        q3 = (qkv[:, :E] * scale).reshape(G, B, E)
        k3 = qkv[:, E:2 * E].reshape(G, B, E)
        v3 = qkv[:, 2 * E:].reshape(G, B, E)
        bkv = biaskv_ref[li]                         # (2, E) un-projected bias_k/v

        # heads unrolled statically: per-head temporaries are only (G,B,B) now
        ctxs = []
        for h in range(num_heads):
            sl = slice(h * hd, (h + 1) * hd)
            qh, kh, vh = q3[:, :, sl], k3[:, :, sl], v3[:, :, sl]   # (G,B,hd)
            bkh = bkv[0, sl].reshape(1, 1, hd)
            bvh = bkv[1, sl].reshape(1, 1, hd)
            s = jnp.einsum('gqd,gkd->gqk', qh, kh,
                           preferred_element_type=jnp.float32)      # (G,B,B)
            s_b = jnp.sum(qh * bkh, axis=-1, keepdims=True)         # bias-kv col
            mx = jnp.maximum(jnp.max(s, axis=-1, keepdims=True), s_b)
            pm = jnp.exp(s - mx)
            pb = jnp.exp(s_b - mx)
            inv = pl.reciprocal(jnp.sum(pm, axis=-1, keepdims=True) + pb,
                                approx=True)
            ctx = (jnp.einsum('gqk,gkd->gqd', pm * inv, vh,
                              preferred_element_type=jnp.float32)
                   + (pb * inv) * bvh)                               # (G,B,hd)
            ctxs.append(ctx)

        # in-register concat of heads, single (R,E)@(E,E) output projection
        ctx_all = jnp.concatenate(ctxs, axis=-1).reshape(R, E)
        attn = (jnp.dot(ctx_all.astype(dt), wo_ref[li],
                        preferred_element_type=jnp.float32) + bo_ref[li])

        # AddNorm1 -> PositionwiseFeedForward (residual+LN) -> AddNorm2
        lng = lng_ref[li]                            # (3, E) rows: [an1, pff, an2]
        lnb = lnb_ref[li]
        y = _layernorm(attn + xin, lng[0:1, :], lnb[0:1, :])
        h1 = jnp.maximum(jnp.dot(y.astype(dt), w1_ref[li],
                                 preferred_element_type=jnp.float32)
                         + b1_ref[li], 0.0)
        ffn = jnp.dot(h1.astype(dt), w2_ref[li],
                      preferred_element_type=jnp.float32) + b2_ref[li]
        ffn_n = _layernorm(y + ffn, lng[1:2, :], lnb[1:2, :])
        feat = _layernorm(y + ffn_n, lng[2:3, :], lnb[2:3, :])   # same as PyTorch

    feat_ref[...] = feat.reshape(G, B, E)

    # ---- gsrm_out = softmax(feat @ Wout + b)  (exact softmax) ---------------
    gl = (jnp.dot(feat.astype(wout_ref.dtype), wout_ref[...],
                  preferred_element_type=jnp.float32) + bout_ref[...])
    gm = jnp.max(gl, axis=-1, keepdims=True)
    ge = jnp.exp(gl - gm)
    gsrm_out_ref[...] = (ge / jnp.sum(ge, axis=-1, keepdims=True)).reshape(G, B, Cp)


# ----------------------------- wrappers -------------------------------------


def _const_index_map(ndim):
    zeros = (0,) * ndim
    return lambda i: zeros


def _resident_spec(arr):
    # Full-array block, constant block index -> stays resident across grid steps.
    return pl.BlockSpec(arr.shape, _const_index_map(arr.ndim))


def sinusoid_table(n_position, d_hid):
    pos = np.arange(n_position, dtype=np.float64)[:, None]
    j = np.arange(d_hid)[None, :]
    angle = pos / np.power(10000.0, 2.0 * (j // 2) / d_hid)
    tab = np.zeros((n_position, d_hid), dtype=np.float64)
    tab[:, 0::2] = np.sin(angle[:, 0::2])
    tab[:, 1::2] = np.cos(angle[:, 1::2])
    return jnp.asarray(tab, dtype=jnp.float32)


def init_gsrm_params(key, dim_model, num_classes, dim_inner, num_layers=2,
                     mxu_dtype=jnp.bfloat16):
    e, c, di = dim_model, num_classes, dim_inner
    cp = _round_up(c, 128)    # lane-dense class dim (pad cols get -1e30 bias)
    dip = _round_up(di, 128)  # lane-dense FFN hidden (zero pad -> exact)

    def nrm(k, shape, s=0.1):
        return s * jax.random.normal(k, shape, jnp.float32)

    def pad_cols(w, new, fill=0.0):
        return jnp.pad(w, ((0, 0), (0, new - w.shape[1])), constant_values=fill)

    def pad_rows(w, new, fill=0.0):
        return jnp.pad(w, ((0, new - w.shape[0]), (0, 0)), constant_values=fill)

    keys = jax.random.split(key, 6)
    p = dict(
        num_classes=c,
        mxu_dtype=mxu_dtype,
        # w_fc stays f32 so the argmax feeding the embedding cannot flip.
        w_fc=pad_cols(nrm(keys[0], (e, c)), cp),
        b_fc=pad_cols(nrm(keys[1], (1, c)), cp, fill=_NEG_INF),
        emb=pad_rows(nrm(keys[2], (c, e)), cp).astype(mxu_dtype),
        w_out=pad_cols(nrm(keys[3], (e, c)), cp).astype(mxu_dtype),
        b_out=pad_cols(nrm(keys[4], (1, c)), cp, fill=_NEG_INF),
    )

    wqkv, bqkv, biaskv, wo, bo = [], [], [], [], []
    w1, b1, w2, b2, lng, lnb = [], [], [], [], [], []
    lkeys = jax.random.split(keys[5], num_layers)
    for li in range(num_layers):
        lk = jax.random.split(lkeys[li], 14)
        wqkv.append(jnp.concatenate([nrm(lk[0], (e, e)), nrm(lk[1], (e, e)),
                                     nrm(lk[2], (e, e))], axis=1))      # (E, 3E)
        bqkv.append(jnp.concatenate([nrm(lk[3], (1, e)), nrm(lk[4], (1, e)),
                                     nrm(lk[5], (1, e))], axis=1))      # (1, 3E)
        biaskv.append(jnp.concatenate([nrm(lk[6], (1, e)),
                                       nrm(lk[7], (1, e))], axis=0))    # (2, E)
        wo.append(nrm(lk[8], (e, e)))
        bo.append(nrm(lk[9], (1, e)))
        w1.append(pad_cols(nrm(lk[10], (e, di)), dip))
        b1.append(pad_cols(nrm(lk[11], (1, di)), dip))
        w2.append(pad_rows(nrm(lk[12], (di, e)), dip))
        b2.append(nrm(lk[13], (1, e)))
        lng.append(jnp.ones((3, e), jnp.float32))   # rows: [addnorm1, pff-LN, addnorm2]
        lnb.append(jnp.zeros((3, e), jnp.float32))

    p.update(
        wqkv=jnp.stack(wqkv).astype(mxu_dtype), bqkv=jnp.stack(bqkv),
        biaskv=jnp.stack(biaskv),
        wo=jnp.stack(wo).astype(mxu_dtype), bo=jnp.stack(bo),
        w1=jnp.stack(w1).astype(mxu_dtype), b1=jnp.stack(b1),
        w2=jnp.stack(w2).astype(mxu_dtype), b2=jnp.stack(b2),
        ln_g=jnp.stack(lng), ln_b=jnp.stack(lnb),
    )
    return p


def gsrm_forward(pvam, params, *, num_heads, n_position=256, groups_per_step=None):
    b, t, e = pvam.shape
    c = params["num_classes"]
    cp = params["w_fc"].shape[1]
    num_layers = params["wqkv"].shape[0]

    # T-major restructure: (B,T,E) -> (T,B,E).  The batch-first attention quirk
    # (rows attend iff same t) is now dense within each group of B contiguous
    # rows: no (M,M) mask, and the grid runs over T-groups.
    x_tbe = jnp.transpose(pvam, (1, 0, 2))
    pos = sinusoid_table(n_position, e)[:t].reshape(t, 1, e)   # one row per group

    if groups_per_step is None:
        # Largest divisor of T keeping <= ~256 rows per step (fills the 256x256
        # MXU on v6e/v7x; v5e's 128-wide MXU is happy with less).
        groups_per_step = 1
        for cand in range(1, t + 1):
            if t % cand == 0 and cand * b <= max(256, b):
                groups_per_step = cand
    assert t % groups_per_step == 0
    g = groups_per_step
    grid = (t // g,)

    kern = functools.partial(gsrm_fused_kernel, num_heads=num_heads,
                             num_layers=num_layers,
                             mxu_dtype=params["mxu_dtype"])

    weights = (params["w_fc"], params["b_fc"], params["emb"],
               params["wqkv"], params["bqkv"], params["biaskv"],
               params["wo"], params["bo"],
               params["w1"], params["b1"], params["w2"], params["b2"],
               params["ln_g"], params["ln_b"],
               params["w_out"], params["b_out"])

    in_specs = [pl.BlockSpec((g, b, e), lambda i: (i, 0, 0)),
                pl.BlockSpec((g, 1, e), lambda i: (i, 0, 0))]
    in_specs += [_resident_spec(w) for w in weights]

    out_specs = [pl.BlockSpec((g, b, cp), lambda i: (i, 0, 0)),
                 pl.BlockSpec((g, b, e), lambda i: (i, 0, 0)),
                 pl.BlockSpec((g, b, cp), lambda i: (i, 0, 0))]

    word_out_f, feat_f, gsrm_out_f = pl.pallas_call(
        kern,
        out_shape=(jax.ShapeDtypeStruct((t, b, cp), jnp.float32),
                   jax.ShapeDtypeStruct((t, b, e), jnp.float32),
                   jax.ShapeDtypeStruct((t, b, cp), jnp.float32)),
        grid_spec=pltpu.PrefetchScalarGridSpec(
            num_scalar_prefetch=0, grid=grid,
            in_specs=in_specs, out_specs=out_specs),
        compiler_params=pltpu.CompilerParams(
            dimension_semantics=("parallel",),   # megacore split on v7x
            # TODO(synk): re-derive groups_per_step / budget per generation
            # (v7x has only 64 MiB physical VMEM; v5e default scoped is 16 MiB).
            vmem_limit_bytes=64 * 1024 * 1024),
    )(x_tbe, pos, *weights)

    gsrm_feature = jnp.transpose(feat_f, (1, 0, 2))            # (B, T, E)
    word_out = jnp.transpose(word_out_f[:, :, :c], (1, 0, 2))  # drop lane padding
    gsrm_out = jnp.transpose(gsrm_out_f[:, :, :c], (1, 0, 2))
    return gsrm_feature, word_out, gsrm_out


if __name__ == "__main__":
    key = jax.random.PRNGKey(0)
    k_in, k_par = jax.random.split(key)
    # Small shapes consistent with GSRM: dim_model=32, num_classes=64,
    # num_heads=4 (head_dim=8), dim_inner_hid=dim_model, max_len_labels -> T=8.
    B, T, E, C, H, DI = 8, 8, 32, 64, 4, 32
    pvam = jax.random.normal(k_in, (B, T, E), jnp.float32)
    params = init_gsrm_params(k_par, E, C, DI, num_layers=2,
                              mxu_dtype=jnp.bfloat16)

    # groups_per_step=2 -> grid=(4,), 16 rows per step (exercises pipelining +
    # the parallel grid axis even at toy shapes).
    outs = gsrm_forward(pvam, params, num_heads=H, n_position=256,
                        groups_per_step=2)
    outs = jax.block_until_ready(outs)
    gsrm_feature, word_out, gsrm_out = outs
    assert gsrm_feature.shape == (B, T, E)
    assert word_out.shape == (B, T, C)
    assert gsrm_out.shape == (B, T, C)
    assert bool(jnp.all(jnp.isfinite(gsrm_feature)))
    assert bool(jnp.all(jnp.isfinite(word_out)))
    assert bool(jnp.all(jnp.isfinite(gsrm_out)))
    # returned softmaxes use exact division -> rows sum to 1
    assert bool(jnp.allclose(jnp.sum(word_out, axis=-1), 1.0, atol=1e-5))
    assert bool(jnp.allclose(jnp.sum(gsrm_out, axis=-1), 1.0, atol=1e-5))
    print("KERNEL_OK")
</pallas_src>

<mosaic_0001>
module attributes {stable_mosaic.version = 11 : i64} {
  func.func @gsrm_fused_kernel(%arg0: i32, %arg1: memref<2x8x32xf32, #tpu.memory_space<vmem>>, %arg2: memref<2x1x32xf32, #tpu.memory_space<vmem>>, %arg3: memref<32x128xf32, #tpu.memory_space<vmem>>, %arg4: memref<1x128xf32, #tpu.memory_space<vmem>>, %arg5: memref<128x32xbf16, #tpu.memory_space<vmem>>, %arg6: memref<2x32x96xbf16, #tpu.memory_space<vmem>>, %arg7: memref<2x1x96xf32, #tpu.memory_space<vmem>>, %arg8: memref<2x2x32xf32, #tpu.memory_space<vmem>>, %arg9: memref<2x32x32xbf16, #tpu.memory_space<vmem>>, %arg10: memref<2x1x32xf32, #tpu.memory_space<vmem>>, %arg11: memref<2x32x128xbf16, #tpu.memory_space<vmem>>, %arg12: memref<2x1x128xf32, #tpu.memory_space<vmem>>, %arg13: memref<2x128x32xbf16, #tpu.memory_space<vmem>>, %arg14: memref<2x1x32xf32, #tpu.memory_space<vmem>>, %arg15: memref<2x3x32xf32, #tpu.memory_space<vmem>>, %arg16: memref<2x3x32xf32, #tpu.memory_space<vmem>>, %arg17: memref<32x128xbf16, #tpu.memory_space<vmem>>, %arg18: memref<1x128xf32, #tpu.memory_space<vmem>>, %arg19: memref<2x8x128xf32, #tpu.memory_space<vmem>>, %arg20: memref<2x8x32xf32, #tpu.memory_space<vmem>>, %arg21: memref<2x8x128xf32, #tpu.memory_space<vmem>>) attributes {dimension_semantics = [#tpu.dimension_semantics<parallel>], iteration_bounds = array<i64: 4>, scalar_prefetch = 0 : i64, scratch_operands = 0 : i64, tpu.core_type = #tpu.core_type<tc>, window_params = [{transform_indices = @transform_0, window_bounds = array<i64: 2, 8, 32>}, {transform_indices = @transform_1, window_bounds = array<i64: 2, 1, 32>}, {pipeline_mode = #tpu.pipeline_mode<synchronous>, transform_indices = @transform_2, window_bounds = array<i64: 32, 128>}, {pipeline_mode = #tpu.pipeline_mode<synchronous>, transform_indices = @transform_3, window_bounds = array<i64: 1, 128>}, {pipeline_mode = #tpu.pipeline_mode<synchronous>, transform_indices = @transform_4, window_bounds = array<i64: 128, 32>}, {pipeline_mode = #tpu.pipeline_mode<synchronous>, transform_indices = @transform_5, window_bounds = array<i64: 2, 32, 96>}, {pipeline_mode = #tpu.pipeline_mode<synchronous>, transform_indices = @transform_6, window_bounds = array<i64: 2, 1, 96>}, {pipeline_mode = #tpu.pipeline_mode<synchronous>, transform_indices = @transform_7, window_bounds = array<i64: 2, 2, 32>}, {pipeline_mode = #tpu.pipeline_mode<synchronous>, transform_indices = @transform_8, window_bounds = array<i64: 2, 32, 32>}, {pipeline_mode = #tpu.pipeline_mode<synchronous>, transform_indices = @transform_9, window_bounds = array<i64: 2, 1, 32>}, {pipeline_mode = #tpu.pipeline_mode<synchronous>, transform_indices = @transform_10, window_bounds = array<i64: 2, 32, 128>}, {pipeline_mode = #tpu.pipeline_mode<synchronous>, transform_indices = @transform_11, window_bounds = array<i64: 2, 1, 128>}, {pipeline_mode = #tpu.pipeline_mode<synchronous>, transform_indices = @transform_12, window_bounds = array<i64: 2, 128, 32>}, {pipeline_mode = #tpu.pipeline_mode<synchronous>, transform_indices = @transform_13, window_bounds = array<i64: 2, 1, 32>}, {pipeline_mode = #tpu.pipeline_mode<synchronous>, transform_indices = @transform_14, window_bounds = array<i64: 2, 3, 32>}, {pipeline_mode = #tpu.pipeline_mode<synchronous>, transform_indices = @transform_15, window_bounds = array<i64: 2, 3, 32>}, {pipeline_mode = #tpu.pipeline_mode<synchronous>, transform_indices = @transform_16, window_bounds = array<i64: 32, 128>}, {pipeline_mode = #tpu.pipeline_mode<synchronous>, transform_indices = @transform_17, window_bounds = array<i64: 1, 128>}, {transform_indices = @transform_18, window_bounds = array<i64: 2, 8, 128>}, {transform_indices = @transform_19, window_bounds = array<i64: 2, 8, 32>}, {transform_indices = @transform_20, window_bounds = array<i64: 2, 8, 128>}]} {
    %c0 = arith.constant 0 : index
    %c0_0 = arith.constant 0 : index
    %c0_1 = arith.constant 0 : index
    %0 = vector.load %arg1[%c0, %c0_0, %c0_1] : memref<2x8x32xf32, #tpu.memory_space<vmem>>, vector<2x8x32xf32>
    %1 = vector.shape_cast %0 : vector<2x8x32xf32> to vector<16x32xf32>
    %c0_2 = arith.constant 0 : index
    %c0_3 = arith.constant 0 : index
    %2 = vector.load %arg3[%c0_2, %c0_3] : memref<32x128xf32, #tpu.memory_space<vmem>>, vector<32x128xf32>
    %cst = arith.constant dense<0.000000e+00> : vector<16x128xf32>
    %3 = tpu.matmul %1, %2, %cst {dimension_numbers = #tpu.dot_dimension_numbers<[1], [0], [0], [1], [0, 0, 1, 1], [], []>} : vector<16x32xf32>, vector<32x128xf32>, vector<16x128xf32> -> vector<16x128xf32>
    %c0_4 = arith.constant 0 : index
    %c0_5 = arith.constant 0 : index
    %4 = vector.load %arg4[%c0_4, %c0_5] : memref<1x128xf32, #tpu.memory_space<vmem>>, vector<1x128xf32>
    %5 = vector.broadcast %4 : vector<1x128xf32> to vector<16x128xf32>
    %6 = arith.addf %3, %5 : vector<16x128xf32>
    %cst_6 = arith.constant dense<0xFF800000> : vector<16xf32>
    %7 = vector.multi_reduction <maximumf>, %6, %cst_6 [1] : vector<16x128xf32> to vector<16xf32>
    %8 = vector.shape_cast %7 : vector<16xf32> to vector<16x1xf32>
    %9 = vector.broadcast %8 : vector<16x1xf32> to vector<16x128xf32>
    %10 = arith.subf %6, %9 : vector<16x128xf32>
    %11 = math.exp %10 : vector<16x128xf32>
    %cst_7 = arith.constant dense<0.000000e+00> : vector<16xf32>
    %12 = vector.multi_reduction <add>, %11, %cst_7 [1] : vector<16x128xf32> to vector<16xf32>
    %13 = vector.shape_cast %12 : vector<16xf32> to vector<16x1xf32>
    %14 = vector.broadcast %13 : vector<16x1xf32> to vector<16x128xf32>
    %15 = arith.divf %11, %14 : vector<16x128xf32>
    %16 = vector.shape_cast %15 : vector<16x128xf32> to vector<2x8x128xf32>
    %c0_8 = arith.constant 0 : index
    %c0_9 = arith.constant 0 : index
    %c0_10 = arith.constant 0 : index
    %17 = vector.load %arg19[%c0_8, %c0_9, %c0_10] : memref<2x8x128xf32, #tpu.memory_space<vmem>>, vector<2x8x128xf32>
    tpu.vector_store %arg19[%c0_8, %c0_9, %c0_10], %16 {strides = array<i32>} : memref<2x8x128xf32, #tpu.memory_space<vmem>>, vector<2x8x128xf32>,
    %18 = tpu.iota {dimensions = array<i32: 1>} : vector<16x128xi32>
    %19 = vector.broadcast %8 : vector<16x1xf32> to vector<16x128xf32>
    %20 = arith.cmpf oeq, %6, %19 : vector<16x128xf32>
    %c128_i32 = arith.constant 128 : i32
    %21 = vector.broadcast %c128_i32 : i32 to vector<16x128xi32>
    %22 = arith.select %20, %18, %21 : vector<16x128xi1>, vector<16x128xi32>
    %cst_11 = arith.constant dense<2147483647> : vector<16xi32>
    %23 = vector.multi_reduction <minsi>, %22, %cst_11 [1] : vector<16x128xi32> to vector<16xi32>
    %24 = vector.shape_cast %23 : vector<16xi32> to vector<16x1xi32>
    %25 = vector.broadcast %24 : vector<16x1xi32> to vector<16x128xi32>
    %26 = arith.cmpi eq, %18, %25 : vector<16x128xi32>
    %27 = arith.extui %26 : vector<16x128xi1> to vector<16x128xi32>
    %28 = arith.sitofp %27 : vector<16x128xi32> to vector<16x128xf32>
    %29 = arith.truncf %28 : vector<16x128xf32> to vector<16x128xbf16>
    %c0_12 = arith.constant 0 : index
    %c0_13 = arith.constant 0 : index
    %30 = vector.load %arg5[%c0_12, %c0_13] : memref<128x32xbf16, #tpu.memory_space<vmem>>, vector<128x32xbf16>
    %cst_14 = arith.constant dense<0.000000e+00> : vector<16x32xf32>
    %31 = tpu.matmul %29, %30, %cst_14 {dimension_numbers = #tpu.dot_dimension_numbers<[1], [0], [0], [1], [0, 0, 1, 1], [], []>} : vector<16x128xbf16>, vector<128x32xbf16>, vector<16x32xf32> -> vector<16x32xf32>
    %32 = vector.shape_cast %31 : vector<16x32xf32> to vector<2x8x32xf32>
    %c0_15 = arith.constant 0 : index
    %c0_16 = arith.constant 0 : index
    %c0_17 = arith.constant 0 : index
    %33 = vector.load %arg2[%c0_15, %c0_16, %c0_17] : memref<2x1x32xf32, #tpu.memory_space<vmem>>, vector<2x1x32xf32>
    %34 = vector.broadcast %33 : vector<2x1x32xf32> to vector<2x8x32xf32>
    %35 = arith.addf %32, %34 : vector<2x8x32xf32>
    %36 = vector.shape_cast %35 : vector<2x8x32xf32> to vector<16x32xf32>
    %37 = arith.truncf %36 : vector<16x32xf32> to vector<16x32xbf16>
    %c0_18 = arith.constant 0 : index
    %c0_19 = arith.constant 0 : index
    %c0_20 = arith.constant 0 : index
    %38 = vector.load %arg6[%c0_18, %c0_19, %c0_20] : memref<2x32x96xbf16, #tpu.memory_space<vmem>>, vector<1x32x96xbf16>
    %39 = vector.shape_cast %38 : vector<1x32x96xbf16> to vector<32x96xbf16>
    %cst_21 = arith.constant dense<0.000000e+00> : vector<16x96xf32>
    %40 = tpu.matmul %37, %39, %cst_21 {dimension_numbers = #tpu.dot_dimension_numbers<[1], [0], [0], [1], [0, 0, 1, 1], [], []>} : vector<16x32xbf16>, vector<32x96xbf16>, vector<16x96xf32> -> vector<16x96xf32>
    %c0_22 = arith.constant 0 : index
    %c0_23 = arith.constant 0 : index
    %c0_24 = arith.constant 0 : index
    %41 = vector.load %arg7[%c0_22, %c0_23, %c0_24] : memref<2x1x96xf32, #tpu.memory_space<vmem>>, vector<1x1x96xf32>
    %42 = vector.shape_cast %41 : vector<1x1x96xf32> to vector<1x96xf32>
    %43 = vector.broadcast %42 : vector<1x96xf32> to vector<16x96xf32>
    %44 = arith.addf %40, %43 : vector<16x96xf32>
    %45 = vector.extract_strided_slice %44 {offsets = [0, 0], sizes = [16, 32], strides = [1, 1]} : vector<16x96xf32> to vector<16x32xf32>
    %cst_25 = arith.constant 0.353553385 : f32
    %46 = vector.broadcast %cst_25 : f32 to vector<16x32xf32>
    %47 = arith.mulf %45, %46 : vector<16x32xf32>
    %48 = vector.shape_cast %47 : vector<16x32xf32> to vector<2x8x32xf32>
    %49 = vector.extract_strided_slice %44 {offsets = [0, 32], sizes = [16, 32], strides = [1, 1]} : vector<16x96xf32> to vector<16x32xf32>
    %50 = vector.shape_cast %49 : vector<16x32xf32> to vector<2x8x32xf32>
    %51 = vector.extract_strided_slice %44 {offsets = [0, 64], sizes = [16, 32], strides = [1, 1]} : vector<16x96xf32> to vector<16x32xf32>
    %52 = vector.shape_cast %51 : vector<16x32xf32> to vector<2x8x32xf32>
    %c0_26 = arith.constant 0 : index
    %c0_27 = arith.constant 0 : index
    %c0_28 = arith.constant 0 : index
    %53 = vector.load %arg8[%c0_26, %c0_27, %c0_28] : memref<2x2x32xf32, #tpu.memory_space<vmem>>, vector<1x2x32xf32>
    %54 = vector.shape_cast %53 : vector<1x2x32xf32> to vector<2x32xf32>
    %55 = vector.extract_strided_slice %48 {offsets = [0, 0, 0], sizes = [2, 8, 8], strides = [1, 1, 1]} : vector<2x8x32xf32> to vector<2x8x8xf32>
    %56 = vector.extract_strided_slice %50 {offsets = [0, 0, 0], sizes = [2, 8, 8], strides = [1, 1, 1]} : vector<2x8x32xf32> to vector<2x8x8xf32>
    %57 = vector.extract_strided_slice %52 {offsets = [0, 0, 0], sizes = [2, 8, 8], strides = [1, 1, 1]} : vector<2x8x32xf32> to vector<2x8x8xf32>
    %58 = vector.extract_strided_slice %54 {offsets = [0, 0], sizes = [1, 8], strides = [1, 1]} : vector<2x32xf32> to vector<1x8xf32>
    %59 = vector.shape_cast %58 : vector<1x8xf32> to vector<8xf32>
    %60 = vector.shape_cast %59 : vector<8xf32> to vector<1x1x8xf32>
    %61 = vector.extract_strided_slice %54 {offsets = [1, 0], sizes = [1, 8], strides = [1, 1]} : vector<2x32xf32> to vector<1x8xf32>
    %62 = vector.shape_cast %61 : vector<1x8xf32> to vector<8xf32>
    %63 = vector.shape_cast %62 : vector<8xf32> to vector<1x1x8xf32>
    "tpu.trace_start"() <{level = 10 : i32, message = "gqd,gkd->gqk"}> : () -> ()
    %cst_29 = arith.constant dense<0.000000e+00> : vector<2x8x8xf32>
    %64 = tpu.matmul %55, %56, %cst_29 {dimension_numbers = #tpu.dot_dimension_numbers<[2], [2], [1], [1], [0, 0, 0, 1, 1, 1], [0], [0]>} : vector<2x8x8xf32>, vector<2x8x8xf32>, vector<2x8x8xf32> -> vector<2x8x8xf32>
    "tpu.trace_stop"() : () -> ()
    %65 = vector.broadcast %60 : vector<1x1x8xf32> to vector<2x8x8xf32>
    %66 = arith.mulf %55, %65 : vector<2x8x8xf32>
    %cst_30 = arith.constant dense<0.000000e+00> : vector<2x8xf32>
    %67 = vector.multi_reduction <add>, %66, %cst_30 [2] : vector<2x8x8xf32> to vector<2x8xf32>
    %68 = vector.shape_cast %67 : vector<2x8xf32> to vector<2x8x1xf32>
    %cst_31 = arith.constant dense<0xFF800000> : vector<2x8xf32>
    %69 = vector.multi_reduction <maximumf>, %64, %cst_31 [2] : vector<2x8x8xf32> to vector<2x8xf32>
    %70 = vector.shape_cast %69 : vector<2x8xf32> to vector<2x8x1xf32>
    %71 = arith.maximumf %70, %68 : vector<2x8x1xf32>
    %72 = vector.broadcast %71 : vector<2x8x1xf32> to vector<2x8x8xf32>
    %73 = arith.subf %64, %72 : vector<2x8x8xf32>
    %74 = math.exp %73 : vector<2x8x8xf32>
    %75 = arith.subf %68, %71 : vector<2x8x1xf32>
    %76 = math.exp %75 : vector<2x8x1xf32>
    %cst_32 = arith.constant dense<0.000000e+00> : vector<2x8xf32>
    %77 = vector.multi_reduction <add>, %74, %cst_32 [2] : vector<2x8x8xf32> to vector<2x8xf32>
    %78 = vector.shape_cast %77 : vector<2x8xf32> to vector<2x8x1xf32>
    %79 = arith.addf %78, %76 : vector<2x8x1xf32>
    %80 = tpu.reciprocal %79 {approx = true} : vector<2x8x1xf32> -> vector<2x8x1xf32>
    %81 = vector.broadcast %80 : vector<2x8x1xf32> to vector<2x8x8xf32>
    %82 = arith.mulf %74, %81 : vector<2x8x8xf32>
    "tpu.trace_start"() <{level = 10 : i32, message = "gqk,gkd->gqd"}> : () -> ()
    %cst_33 = arith.constant dense<0.000000e+00> : vector<2x8x8xf32>
    %83 = tpu.matmul %82, %57, %cst_33 {dimension_numbers = #tpu.dot_dimension_numbers<[2], [1], [1], [2], [0, 0, 0, 1, 1, 2], [0], [0]>} : vector<2x8x8xf32>, vector<2x8x8xf32>, vector<2x8x8xf32> -> vector<2x8x8xf32>
    "tpu.trace_stop"() : () -> ()
    %84 = arith.mulf %76, %80 : vector<2x8x1xf32>
    %85 = vector.broadcast %84 : vector<2x8x1xf32> to vector<2x8x8xf32>
    %86 = vector.broadcast %63 : vector<1x1x8xf32> to vector<2x8x8xf32>
    %87 = arith.mulf %85, %86 : vector<2x8x8xf32>
    %88 = arith.addf %83, %87 : vector<2x8x8xf32>
    %89 = vector.extract_strided_slice %48 {offsets = [0, 0, 8], sizes = [2, 8, 8], strides = [1, 1, 1]} : vector<2x8x32xf32> to vector<2x8x8xf32>
    %90 = vector.extract_strided_slice %50 {offsets = [0, 0, 8], sizes = [2, 8, 8], strides = [1, 1, 1]} : vector<2x8x32xf32> to vector<2x8x8xf32>
    %91 = vector.extract_strided_slice %52 {offsets = [0, 0, 8], sizes = [2, 8, 8], strides = [1, 1, 1]} : vector<2x8x32xf32> to vector<2x8x8xf32>
    %92 = vector.extract_strided_slice %54 {offsets = [0, 8], sizes = [1, 8], strides = [1, 1]} : vector<2x32xf32> to vector<1x8xf32>
    %93 = vector.shape_cast %92 : vector<1x8xf32> to vector<8xf32>
    %94 = vector.shape_cast %93 : vector<8xf32> to vector<1x1x8xf32>
    %95 = vector.extract_strided_slice %54 {offsets = [1, 8], sizes = [1, 8], strides = [1, 1]} : vector<2x32xf32> to vector<1x8xf32>
    %96 = vector.shape_cast %95 : vector<1x8xf32> to vector<8xf32>
    %97 = vector.shape_cast %96 : vector<8xf32> to vector<1x1x8xf32>
    "tpu.trace_start"() <{level = 10 : i32, message = "gqd,gkd->gqk"}> : () -> ()
    %cst_34 = arith.constant dense<0.000000e+00> : vector<2x8x8xf32>
    %98 = tpu.matmul %89, %90, %cst_34 {dimension_numbers = #tpu.dot_dimension_numbers<[2], [2], [1], [1], [0, 0, 0, 1, 1, 1], [0], [0]>} : vector<2x8x8xf32>, vector<2x8x8xf32>, vector<2x8x8xf32> -> vector<2x8x8xf32>
    "tpu.trace_stop"() : () -> ()
    %99 = vector.broadcast %94 : vector<1x1x8xf32> to vector<2x8x8xf32>
    %100 = arith.mulf %89, %99 : vector<2x8x8xf32>
    %cst_35 = arith.constant dense<0.000000e+00> : vector<2x8xf32>
    %101 = vector.multi_reduction <add>, %100, %cst_35 [2] : vector<2x8x8xf32> to vector<2x8xf32>
    %102 = vector.shape_cast %101 : vector<2x8xf32> to vector<2x8x1xf32>
    %cst_36 = arith.constant dense<0xFF800000> : vector<2x8xf32>
    %103 = vector.multi_reduction <maximumf>, %98, %cst_36 [2] : vector<2x8x8xf32> to vector<2x8xf32>
    %104 = vector.shape_cast %103 : vector<2x8xf32> to vector<2x8x1xf32>
    %105 = arith.maximumf %104, %102 : vector<2x8x1xf32>
    %106 = vector.broadcast %105 : vector<2x8x1xf32> to vector<2x8x8xf32>
    %107 = arith.subf %98, %106 : vector<2x8x8xf32>
    %108 = math.exp %107 : vector<2x8x8xf32>
    %109 = arith.subf %102, %105 : vector<2x8x1xf32>
    %110 = math.exp %109 : vector<2x8x1xf32>
    %cst_37 = arith.constant dense<0.000000e+00> : vector<2x8xf32>
    %111 = vector.multi_reduction <add>, %108, %cst_37 [2] : vector<2x8x8xf32> to vector<2x8xf32>
    %112 = vector.shape_cast %111 : vector<2x8xf32> to vector<2x8x1xf32>
    %113 = arith.addf %112, %110 : vector<2x8x1xf32>
    %114 = tpu.reciprocal %113 {approx = true} : vector<2x8x1xf32> -> vector<2x8x1xf32>
    %115 = vector.broadcast %114 : vector<2x8x1xf32> to vector<2x8x8xf32>
    %116 = arith.mulf %108, %115 : vector<2x8x8xf32>
    "tpu.trace_start"() <{level = 10 : i32, message = "gqk,gkd->gqd"}> : () -> ()
    %cst_38 = arith.constant dense<0.000000e+00> : vector<2x8x8xf32>
    %117 = tpu.matmul %116, %91, %cst_38 {dimension_numbers = #tpu.dot_dimension_numbers<[2], [1], [1], [2], [0, 0, 0, 1, 1, 2], [0], [0]>} : vector<2x8x8xf32>, vector<2x8x8xf32>, vector<2x8x8xf32> -> vector<2x8x8xf32>
    "tpu.trace_stop"() : () -> ()
    %118 = arith.mulf %110, %114 : vector<2x8x1xf32>
    %119 = vector.broadcast %118 : vector<2x8x1xf32> to vector<2x8x8xf32>
    %120 = vector.broadcast %97 : vector<1x1x8xf32> to vector<2x8x8xf32>
    %121 = arith.mulf %119, %120 : vector<2x8x8xf32>
    %122 = arith.addf %117, %121 : vector<2x8x8xf32>
    %123 = vector.extract_strided_slice %48 {offsets = [0, 0, 16], sizes = [2, 8, 8], strides = [1, 1, 1]} : vector<2x8x32xf32> to vector<2x8x8xf32>
    %124 = vector.extract_strided_slice %50 {offsets = [0, 0, 16], sizes = [2, 8, 8], strides = [1, 1, 1]} : vector<2x8x32xf32> to vector<2x8x8xf32>
    %125 = vector.extract_strided_slice %52 {offsets = [0, 0, 16], sizes = [2, 8, 8], strides = [1, 1, 1]} : vector<2x8x32xf32> to vector<2x8x8xf32>
    %126 = vector.extract_strided_slice %54 {offsets = [0, 16], sizes = [1, 8], strides = [1, 1]} : vector<2x32xf32> to vector<1x8xf32>
    %127 = vector.shape_cast %126 : vector<1x8xf32> to vector<8xf32>
    %128 = vector.shape_cast %127 : vector<8xf32> to vector<1x1x8xf32>
    %129 = vector.extract_strided_slice %54 {offsets = [1, 16], sizes = [1, 8], strides = [1, 1]} : vector<2x32xf32> to vector<1x8xf32>
    %130 = vector.shape_cast %129 : vector<1x8xf32> to vector<8xf32>
    %131 = vector.shape_cast %130 : vector<8xf32> to vector<1x1x8xf32>
    "tpu.trace_start"() <{level = 10 : i32, message = "gqd,gkd->gqk"}> : () -> ()
    %cst_39 = arith.constant dense<0.000000e+00> : vector<2x8x8xf32>
    %132 = tpu.matmul %123, %124, %cst_39 {dimension_numbers = #tpu.dot_dimension_numbers<[2], [2], [1], [1], [0, 0, 0, 1, 1, 1], [0], [0]>} : vector<2x8x8xf32>, vector<2x8x8xf32>, vector<2x8x8xf32> -> vector<2x8x8xf32>
    "tpu.trace_stop"() : () -> ()
    %133 = vector.broadcast %128 : vector<1x1x8xf32> to vector<2x8x8xf32>
    %134 = arith.mulf %123, %133 : vector<2x8x8xf32>
    %cst_40 = arith.constant dense<0.000000e+00> : vector<2x8xf32>
    %135 = vector.multi_reduction <add>, %134, %cst_40 [2] : vector<2x8x8xf32> to vector<2x8xf32>
    %136 = vector.shape_cast %135 : vector<2x8xf32> to vector<2x8x1xf32>
    %cst_41 = arith.constant dense<0xFF800000> : vector<2x8xf32>
    %137 = vector.multi_reduction <maximumf>, %132, %cst_41 [2] : vector<2x8x8xf32> to vector<2x8xf32>
    %138 = vector.shape_cast %137 : vector<2x8xf32> to vector<2x8x1xf32>
    %139 = arith.maximumf %138, %136 : vector<2x8x1xf32>
    %140 = vector.broadcast %139 : vector<2x8x1xf32> to vector<2x8x8xf32>
    %141 = arith.subf %132, %140 : vector<2x8x8xf32>
    %142 = math.exp %141 : vector<2x8x8xf32>
    %143 = arith.subf %136, %139 : vector<2x8x1xf32>
    %144 = math.exp %143 : vector<2x8x1xf32>
    %cst_42 = arith.constant dense<0.000000e+00> : vector<2x8xf32>
    %145 = vector.multi_reduction <add>, %142, %cst_42 [2] : vector<2x8x8xf32> to vector<2x8xf32>
    %146 = vector.shape_cast %145 : vector<2x8xf32> to vector<2x8x1xf32>
    %147 = arith.addf %146, %144 : vector<2x8x1xf32>
    %148 = tpu.reciprocal %147 {approx = true} : vector<2x8x1xf32> -> vector<2x8x1xf32>
    %149 = vector.broadcast %148 : vector<2x8x1xf32> to vector<2x8x8xf32>
    %150 = arith.mulf %142, %149 : vector<2x8x8xf32>
    "tpu.trace_start"() <{level = 10 : i32, message = "gqk,gkd->gqd"}> : () -> ()
    %cst_43 = arith.constant dense<0.000000e+00> : vector<2x8x8xf32>
    %151 = tpu.matmul %150, %125, %cst_43 {dimension_numbers = #tpu.dot_dimension_numbers<[2], [1], [1], [2], [0, 0, 0, 1, 1, 2], [0], [0]>} : vector<2x8x8xf32>, vector<2x8x8xf32>, vector<2x8x8xf32> -> vector<2x8x8xf32>
    "tpu.trace_stop"() : () -> ()
    %152 = arith.mulf %144, %148 : vector<2x8x1xf32>
    %153 = vector.broadcast %152 : vector<2x8x1xf32> to vector<2x8x8xf32>
    %154 = vector.broadcast %131 : vector<1x1x8xf32> to vector<2x8x8xf32>
    %155 = arith.mulf %153, %154 : vector<2x8x8xf32>
    %156 = arith.addf %151, %155 : vector<2x8x8xf32>
    %157 = vector.extract_strided_slice %48 {offsets = [0, 0, 24], sizes = [2, 8, 8], strides = [1, 1, 1]} : vector<2x8x32xf32> to vector<2x8x8xf32>
    %158 = vector.extract_strided_slice %50 {offsets = [0, 0, 24], sizes = [2, 8, 8], strides = [1, 1, 1]} : vector<2x8x32xf32> to vector<2x8x8xf32>
    %159 = vector.extract_strided_slice %52 {offsets = [0, 0, 24], sizes = [2, 8, 8], strides = [1, 1, 1]} : vector<2x8x32xf32> to vector<2x8x8xf32>
    %160 = vector.extract_strided_slice %54 {offsets = [0, 24], sizes = [1, 8], strides = [1, 1]} : vector<2x32xf32> to vector<1x8xf32>
    %161 = vector.shape_cast %160 : vector<1x8xf32> to vector<8xf32>
    %162 = vector.shape_cast %161 : vector<8xf32> to vector<1x1x8xf32>
    %163 = vector.extract_strided_slice %54 {offsets = [1, 24], sizes = [1, 8], strides = [1, 1]} : vector<2x32xf32> to vector<1x8xf32>
    %164 = vector.shape_cast %163 : vector<1x8xf32> to vector<8xf32>
    %165 = vector.shape_cast %164 : vector<8xf32> to vector<1x1x8xf32>
    "tpu.trace_start"() <{level = 10 : i32, message = "gqd,gkd->gqk"}> : () -> ()
    %cst_44 = arith.constant dense<0.000000e+00> : vector<2x8x8xf32>
    %166 = tpu.matmul %157, %158, %cst_44 {dimension_numbers = #tpu.dot_dimension_numbers<[2], [2], [1], [1], [0, 0, 0, 1, 1, 1], [0], [0]>} : vector<2x8x8xf32>, vector<2x8x8xf32>, vector<2x8x8xf32> -> vector<2x8x8xf32>
    "tpu.trace_stop"() : () -> ()
    %167 = vector.broadcast %162 : vector<1x1x8xf32> to vector<2x8x8xf32>
    %168 = arith.mulf %157, %167 : vector<2x8x8xf32>
    %cst_45 = arith.constant dense<0.000000e+00> : vector<2x8xf32>
    %169 = vector.multi_reduction <add>, %168, %cst_45 [2] : vector<2x8x8xf32> to vector<2x8xf32>
    %170 = vector.shape_cast %169 : vector<2x8xf32> to vector<2x8x1xf32>
    %cst_46 = arith.constant dense<0xFF800000> : vector<2x8xf32>
    %171 = vector.multi_reduction <maximumf>, %166, %cst_46 [2] : vector<2x8x8xf32> to vector<2x8xf32>
    %172 = vector.shape_cast %171 : vector<2x8xf32> to vector<2x8x1xf32>
    %173 = arith.maximumf %172, %170 : vector<2x8x1xf32>
    %174 = vector.broadcast %173 : vector<2x8x1xf32> to vector<2x8x8xf32>
    %175 = arith.subf %166, %174 : vector<2x8x8xf32>
    %176 = math.exp %175 : vector<2x8x8xf32>
    %177 = arith.subf %170, %173 : vector<2x8x1xf32>
    %178 = math.exp %177 : vector<2x8x1xf32>
    %cst_47 = arith.constant dense<0.000000e+00> : vector<2x8xf32>
    %179 = vector.multi_reduction <add>, %176, %cst_47 [2] : vector<2x8x8xf32> to vector<2x8xf32>
    %180 = vector.shape_cast %179 : vector<2x8xf32> to vector<2x8x1xf32>
    %181 = arith.addf %180, %178 : vector<2x8x1xf32>
    %182 = tpu.reciprocal %181 {approx = true} : vector<2x8x1xf32> -> vector<2x8x1xf32>
    %183 = vector.broadcast %182 : vector<2x8x1xf32> to vector<2x8x8xf32>
    %184 = arith.mulf %176, %183 : vector<2x8x8xf32>
    "tpu.trace_start"() <{level = 10 : i32, message = "gqk,gkd->gqd"}> : () -> ()
    %cst_48 = arith.constant dense<0.000000e+00> : vector<2x8x8xf32>
    %185 = tpu.matmul %184, %159, %cst_48 {dimension_numbers = #tpu.dot_dimension_numbers<[2], [1], [1], [2], [0, 0, 0, 1, 1, 2], [0], [0]>} : vector<2x8x8xf32>, vector<2x8x8xf32>, vector<2x8x8xf32> -> vector<2x8x8xf32>
    "tpu.trace_stop"() : () -> ()
    %186 = arith.mulf %178, %182 : vector<2x8x1xf32>
    %187 = vector.broadcast %186 : vector<2x8x1xf32> to vector<2x8x8xf32>
    %188 = vector.broadcast %165 : vector<1x1x8xf32> to vector<2x8x8xf32>
    %189 = arith.mulf %187, %188 : vector<2x8x8xf32>
    %190 = arith.addf %185, %189 : vector<2x8x8xf32>
    %191 = tpu.concatenate %88, %122, %156, %190 in 2 : vector<2x8x8xf32>, vector<2x8x8xf32>, vector<2x8x8xf32>, vector<2x8x8xf32> -> vector<2x8x32xf32>
    %192 = vector.shape_cast %191 : vector<2x8x32xf32> to vector<16x32xf32>
    %193 = arith.truncf %192 : vector<16x32xf32> to vector<16x32xbf16>
    %c0_49 = arith.constant 0 : index
    %c0_50 = arith.constant 0 : index
    %c0_51 = arith.constant 0 : index
    %194 = vector.load %arg9[%c0_49, %c0_50, %c0_51] : memref<2x32x32xbf16, #tpu.memory_space<vmem>>, vector<1x32x32xbf16>
    %195 = vector.shape_cast %194 : vector<1x32x32xbf16> to vector<32x32xbf16>
    %cst_52 = arith.constant dense<0.000000e+00> : vector<16x32xf32>
    %196 = tpu.matmul %193, %195, %cst_52 {dimension_numbers = #tpu.dot_dimension_numbers<[1], [0], [0], [1], [0, 0, 1, 1], [], []>} : vector<16x32xbf16>, vector<32x32xbf16>, vector<16x32xf32> -> vector<16x32xf32>
    %c0_53 = arith.constant 0 : index
    %c0_54 = arith.constant 0 : index
    %c0_55 = arith.constant 0 : index
    %197 = vector.load %arg10[%c0_53, %c0_54, %c0_55] : memref<2x1x32xf32, #tpu.memory_space<vmem>>, vector<1x1x32xf32>
    %198 = vector.shape_cast %197 : vector<1x1x32xf32> to vector<1x32xf32>
    %199 = vector.broadcast %198 : vector<1x32xf32> to vector<16x32xf32>
    %200 = arith.addf %196, %199 : vector<16x32xf32>
    %c0_56 = arith.constant 0 : index
    %c0_57 = arith.constant 0 : index
    %c0_58 = arith.constant 0 : index
    %201 = vector.load %arg15[%c0_56, %c0_57, %c0_58] : memref<2x3x32xf32, #tpu.memory_space<vmem>>, vector<1x3x32xf32>
    %202 = vector.shape_cast %201 : vector<1x3x32xf32> to vector<3x32xf32>
    %c0_59 = arith.constant 0 : index
    %c0_60 = arith.constant 0 : index
    %c0_61 = arith.constant 0 : index
    %203 = vector.load %arg16[%c0_59, %c0_60, %c0_61] : memref<2x3x32xf32, #tpu.memory_space<vmem>>, vector<1x3x32xf32>
    %204 = vector.shape_cast %203 : vector<1x3x32xf32> to vector<3x32xf32>
    %205 = arith.addf %200, %36 : vector<16x32xf32>
    %206 = vector.extract_strided_slice %202 {offsets = [0, 0], sizes = [1, 32], strides = [1, 1]} : vector<3x32xf32> to vector<1x32xf32>
    %207 = vector.extract_strided_slice %204 {offsets = [0, 0], sizes = [1, 32], strides = [1, 1]} : vector<3x32xf32> to vector<1x32xf32>
    %cst_62 = arith.constant dense<0.000000e+00> : vector<16xf32>
    %208 = vector.multi_reduction <add>, %205, %cst_62 [1] : vector<16x32xf32> to vector<16xf32>
    %209 = vector.shape_cast %208 : vector<16xf32> to vector<16x1xf32>
    %cst_63 = arith.constant 3.200000e+01 : f32
    %210 = vector.broadcast %cst_63 : f32 to vector<16x1xf32>
    %211 = arith.divf %209, %210 : vector<16x1xf32>
    %212 = vector.broadcast %211 : vector<16x1xf32> to vector<16x32xf32>
    %213 = arith.subf %205, %212 : vector<16x32xf32>
    %214 = arith.mulf %213, %213 : vector<16x32xf32>
    %cst_64 = arith.constant dense<0.000000e+00> : vector<16xf32>
    %215 = vector.multi_reduction <add>, %214, %cst_64 [1] : vector<16x32xf32> to vector<16xf32>
    %216 = vector.shape_cast %215 : vector<16xf32> to vector<16x1xf32>
    %cst_65 = arith.constant 3.200000e+01 : f32
    %217 = vector.broadcast %cst_65 : f32 to vector<16x1xf32>
    %218 = arith.divf %216, %217 : vector<16x1xf32>
    %cst_66 = arith.constant 9.99999974E-6 : f32
    %219 = vector.broadcast %cst_66 : f32 to vector<16x1xf32>
    %220 = arith.addf %218, %219 : vector<16x1xf32>
    %221 = math.rsqrt %220 : vector<16x1xf32>
    %222 = vector.broadcast %221 : vector<16x1xf32> to vector<16x32xf32>
    %223 = arith.mulf %213, %222 : vector<16x32xf32>
    %224 = vector.broadcast %206 : vector<1x32xf32> to vector<16x32xf32>
    %225 = arith.mulf %223, %224 : vector<16x32xf32>
    %226 = vector.broadcast %207 : vector<1x32xf32> to vector<16x32xf32>
    %227 = arith.addf %225, %226 : vector<16x32xf32>
    %228 = arith.truncf %227 : vector<16x32xf32> to vector<16x32xbf16>
    %c0_67 = arith.constant 0 : index
    %c0_68 = arith.constant 0 : index
    %c0_69 = arith.constant 0 : index
    %229 = vector.load %arg11[%c0_67, %c0_68, %c0_69] : memref<2x32x128xbf16, #tpu.memory_space<vmem>>, vector<1x32x128xbf16>
    %230 = vector.shape_cast %229 : vector<1x32x128xbf16> to vector<32x128xbf16>
    %cst_70 = arith.constant dense<0.000000e+00> : vector<16x128xf32>
    %231 = tpu.matmul %228, %230, %cst_70 {dimension_numbers = #tpu.dot_dimension_numbers<[1], [0], [0], [1], [0, 0, 1, 1], [], []>} : vector<16x32xbf16>, vector<32x128xbf16>, vector<16x128xf32> -> vector<16x128xf32>
    %c0_71 = arith.constant 0 : index
    %c0_72 = arith.constant 0 : index
    %c0_73 = arith.constant 0 : index
    %232 = vector.load %arg12[%c0_71, %c0_72, %c0_73] : memref<2x1x128xf32, #tpu.memory_space<vmem>>, vector<1x1x128xf32>
    %233 = vector.shape_cast %232 : vector<1x1x128xf32> to vector<1x128xf32>
    %234 = vector.broadcast %233 : vector<1x128xf32> to vector<16x128xf32>
    %235 = arith.addf %231, %234 : vector<16x128xf32>
    %cst_74 = arith.constant 0.000000e+00 : f32
    %236 = vector.broadcast %cst_74 : f32 to vector<16x128xf32>
    %237 = arith.maximumf %235, %236 : vector<16x128xf32>
    %238 = arith.truncf %237 : vector<16x128xf32> to vector<16x128xbf16>
    %c0_75 = arith.constant 0 : index
    %c0_76 = arith.constant 0 : index
    %c0_77 = arith.constant 0 : index
    %239 = vector.load %arg13[%c0_75, %c0_76, %c0_77] : memref<2x128x32xbf16, #tpu.memory_space<vmem>>, vector<1x128x32xbf16>
    %240 = vector.shape_cast %239 : vector<1x128x32xbf16> to vector<128x32xbf16>
    %cst_78 = arith.constant dense<0.000000e+00> : vector<16x32xf32>
    %241 = tpu.matmul %238, %240, %cst_78 {dimension_numbers = #tpu.dot_dimension_numbers<[1], [0], [0], [1], [0, 0, 1, 1], [], []>} : vector<16x128xbf16>, vector<128x32xbf16>, vector<16x32xf32> -> vector<16x32xf32>
    %c0_79 = arith.constant 0 : index
    %c0_80 = arith.constant 0 : index
    %c0_81 = arith.constant 0 : index
    %242 = vector.load %arg14[%c0_79, %c0_80, %c0_81] : memref<2x1x32xf32, #tpu.memory_space<vmem>>, vector<1x1x32xf32>
    %243 = vector.shape_cast %242 : vector<1x1x32xf32> to vector<1x32xf32>
    %244 = vector.broadcast %243 : vector<1x32xf32> to vector<16x32xf32>
    %245 = arith.addf %241, %244 : vector<16x32xf32>
    %246 = arith.addf %227, %245 : vector<16x32xf32>
    %247 = vector.extract_strided_slice %202 {offsets = [1, 0], sizes = [1, 32], strides = [1, 1]} : vector<3x32xf32> to vector<1x32xf32>
    %248 = vector.extract_strided_slice %204 {offsets = [1, 0], sizes = [1, 32], strides = [1, 1]} : vector<3x32xf32> to vector<1x32xf32>
    %cst_82 = arith.constant dense<0.000000e+00> : vector<16xf32>
    %249 = vector.multi_reduction <add>, %246, %cst_82 [1] : vector<16x32xf32> to vector<16xf32>
    %250 = vector.shape_cast %249 : vector<16xf32> to vector<16x1xf32>
    %cst_83 = arith.constant 3.200000e+01 : f32
    %251 = vector.broadcast %cst_83 : f32 to vector<16x1xf32>
    %252 = arith.divf %250, %251 : vector<16x1xf32>
    %253 = vector.broadcast %252 : vector<16x1xf32> to vector<16x32xf32>
    %254 = arith.subf %246, %253 : vector<16x32xf32>
    %255 = arith.mulf %254, %254 : vector<16x32xf32>
    %cst_84 = arith.constant dense<0.000000e+00> : vector<16xf32>
    %256 = vector.multi_reduction <add>, %255, %cst_84 [1] : vector<16x32xf32> to vector<16xf32>
    %257 = vector.shape_cast %256 : vector<16xf32> to vector<16x1xf32>
    %cst_85 = arith.constant 3.200000e+01 : f32
    %258 = vector.broadcast %cst_85 : f32 to vector<16x1xf32>
    %259 = arith.divf %257, %258 : vector<16x1xf32>
    %cst_86 = arith.constant 9.99999974E-6 : f32
    %260 = vector.broadcast %cst_86 : f32 to vector<16x1xf32>
    %261 = arith.addf %259, %260 : vector<16x1xf32>
    %262 = math.rsqrt %261 : vector<16x1xf32>
    %263 = vector.broadcast %262 : vector<16x1xf32> to vector<16x32xf32>
    %264 = arith.mulf %254, %263 : vector<16x32xf32>
    %265 = vector.broadcast %247 : vector<1x32xf32> to vector<16x32xf32>
    %266 = arith.mulf %264, %265 : vector<16x32xf32>
    %267 = vector.broadcast %248 : vector<1x32xf32> to vector<16x32xf32>
    %268 = arith.addf %266, %267 : vector<16x32xf32>
    %269 = arith.addf %227, %268 : vector<16x32xf32>
    %270 = vector.extract_strided_slice %202 {offsets = [2, 0], sizes = [1, 32], strides = [1, 1]} : vector<3x32xf32> to vector<1x32xf32>
    %271 = vector.extract_strided_slice %204 {offsets = [2, 0], sizes = [1, 32], strides = [1, 1]} : vector<3x32xf32> to vector<1x32xf32>
    %cst_87 = arith.constant dense<0.000000e+00> : vector<16xf32>
    %272 = vector.multi_reduction <add>, %269, %cst_87 [1] : vector<16x32xf32> to vector<16xf32>
    %273 = vector.shape_cast %272 : vector<16xf32> to vector<16x1xf32>
    %cst_88 = arith.constant 3.200000e+01 : f32
    %274 = vector.broadcast %cst_88 : f32 to vector<16x1xf32>
    %275 = arith.divf %273, %274 : vector<16x1xf32>
    %276 = vector.broadcast %275 : vector<16x1xf32> to vector<16x32xf32>
    %277 = arith.subf %269, %276 : vector<16x32xf32>
    %278 = arith.mulf %277, %277 : vector<16x32xf32>
    %cst_89 = arith.constant dense<0.000000e+00> : vector<16xf32>
    %279 = vector.multi_reduction <add>, %278, %cst_89 [1] : vector<16x32xf32> to vector<16xf32>
    %280 = vector.shape_cast %279 : vector<16xf32> to vector<16x1xf32>
    %cst_90 = arith.constant 3.200000e+01 : f32
    %281 = vector.broadcast %cst_90 : f32 to vector<16x1xf32>
    %282 = arith.divf %280, %281 : vector<16x1xf32>
    %cst_91 = arith.constant 9.99999974E-6 : f32
    %283 = vector.broadcast %cst_91 : f32 to vector<16x1xf32>
    %284 = arith.addf %282, %283 : vector<16x1xf32>
    %285 = math.rsqrt %284 : vector<16x1xf32>
    %286 = vector.broadcast %285 : vector<16x1xf32> to vector<16x32xf32>
    %287 = arith.mulf %277, %286 : vector<16x32xf32>
    %288 = vector.broadcast %270 : vector<1x32xf32> to vector<16x32xf32>
    %289 = arith.mulf %287, %288 : vector<16x32xf32>
    %290 = vector.broadcast %271 : vector<1x32xf32> to vector<16x32xf32>
    %291 = arith.addf %289, %290 : vector<16x32xf32>
    %292 = arith.truncf %291 : vector<16x32xf32> to vector<16x32xbf16>
    %c1 = arith.constant 1 : index
    %c0_92 = arith.constant 0 : index
    %c0_93 = arith.constant 0 : index
    %293 = vector.load %arg6[%c1, %c0_92, %c0_93] : memref<2x32x96xbf16, #tpu.memory_space<vmem>>, vector<1x32x96xbf16>
    %294 = vector.shape_cast %293 : vector<1x32x96xbf16> to vector<32x96xbf16>
    %cst_94 = arith.constant dense<0.000000e+00> : vector<16x96xf32>
    %295 = tpu.matmul %292, %294, %cst_94 {dimension_numbers = #tpu.dot_dimension_numbers<[1], [0], [0], [1], [0, 0, 1, 1], [], []>} : vector<16x32xbf16>, vector<32x96xbf16>, vector<16x96xf32> -> vector<16x96xf32>
    %c1_95 = arith.constant 1 : index
    %c0_96 = arith.constant 0 : index
    %c0_97 = arith.constant 0 : index
    %296 = vector.load %arg7[%c1_95, %c0_96, %c0_97] : memref<2x1x96xf32, #tpu.memory_space<vmem>>, vector<1x1x96xf32>
    %297 = vector.shape_cast %296 : vector<1x1x96xf32> to vector<1x96xf32>
    %298 = vector.broadcast %297 : vector<1x96xf32> to vector<16x96xf32>
    %299 = arith.addf %295, %298 : vector<16x96xf32>
    %300 = vector.extract_strided_slice %299 {offsets = [0, 0], sizes = [16, 32], strides = [1, 1]} : vector<16x96xf32> to vector<16x32xf32>
    %cst_98 = arith.constant 0.353553385 : f32
    %301 = vector.broadcast %cst_98 : f32 to vector<16x32xf32>
    %302 = arith.mulf %300, %301 : vector<16x32xf32>
    %303 = vector.shape_cast %302 : vector<16x32xf32> to vector<2x8x32xf32>
    %304 = vector.extract_strided_slice %299 {offsets = [0, 32], sizes = [16, 32], strides = [1, 1]} : vector<16x96xf32> to vector<16x32xf32>
    %305 = vector.shape_cast %304 : vector<16x32xf32> to vector<2x8x32xf32>
    %306 = vector.extract_strided_slice %299 {offsets = [0, 64], sizes = [16, 32], strides = [1, 1]} : vector<16x96xf32> to vector<16x32xf32>
    %307 = vector.shape_cast %306 : vector<16x32xf32> to vector<2x8x32xf32>
    %c1_99 = arith.constant 1 : index
    %c0_100 = arith.constant 0 : index
    %c0_101 = arith.constant 0 : index
    %308 = vector.load %arg8[%c1_99, %c0_100, %c0_101] : memref<2x2x32xf32, #tpu.memory_space<vmem>>, vector<1x2x32xf32>
    %309 = vector.shape_cast %308 : vector<1x2x32xf32> to vector<2x32xf32>
    %310 = vector.extract_strided_slice %303 {offsets = [0, 0, 0], sizes = [2, 8, 8], strides = [1, 1, 1]} : vector<2x8x32xf32> to vector<2x8x8xf32>
    %311 = vector.extract_strided_slice %305 {offsets = [0, 0, 0], sizes = [2, 8, 8], strides = [1, 1, 1]} : vector<2x8x32xf32> to vector<2x8x8xf32>
    %312 = vector.extract_strided_slice %307 {offsets = [0, 0, 0], sizes = [2, 8, 8], strides = [1, 1, 1]} : vector<2x8x32xf32> to vector<2x8x8xf32>
    %313 = vector.extract_strided_slice %309 {offsets = [0, 0], sizes = [1, 8], strides = [1, 1]} : vector<2x32xf32> to vector<1x8xf32>
    %314 = vector.shape_cast %313 : vector<1x8xf32> to vector<8xf32>
    %315 = vector.shape_cast %314 : vector<8xf32> to vector<1x1x8xf32>
    %316 = vector.extract_strided_slice %309 {offsets = [1, 0], sizes = [1, 8], strides = [1, 1]} : vector<2x32xf32> to vector<1x8xf32>
    %317 = vector.shape_cast %316 : vector<1x8xf32> to vector<8xf32>
    %318 = vector.shape_cast %317 : vector<8xf32> to vector<1x1x8xf32>
    "tpu.trace_start"() <{level = 10 : i32, message = "gqd,gkd->gqk"}> : () -> ()
    %cst_102 = arith.constant dense<0.000000e+00> : vector<2x8x8xf32>
    %319 = tpu.matmul %310, %311, %cst_102 {dimension_numbers = #tpu.dot_dimension_numbers<[2], [2], [1], [1], [0, 0, 0, 1, 1, 1], [0], [0]>} : vector<2x8x8xf32>, vector<2x8x8xf32>, vector<2x8x8xf32> -> vector<2x8x8xf32>
    "tpu.trace_stop"() : () -> ()
    %320 = vector.broadcast %315 : vector<1x1x8xf32> to vector<2x8x8xf32>
    %321 = arith.mulf %310, %320 : vector<2x8x8xf32>
    %cst_103 = arith.constant dense<0.000000e+00> : vector<2x8xf32>
    %322 = vector.multi_reduction <add>, %321, %cst_103 [2] : vector<2x8x8xf32> to vector<2x8xf32>
    %323 = vector.shape_cast %322 : vector<2x8xf32> to vector<2x8x1xf32>
    %cst_104 = arith.constant dense<0xFF800000> : vector<2x8xf32>
    %324 = vector.multi_reduction <maximumf>, %319, %cst_104 [2] : vector<2x8x8xf32> to vector<2x8xf32>
    %325 = vector.shape_cast %324 : vector<2x8xf32> to vector<2x8x1xf32>
    %326 = arith.maximumf %325, %323 : vector<2x8x1xf32>
    %327 = vector.broadcast %326 : vector<2x8x1xf32> to vector<2x8x8xf32>
    %328 = arith.subf %319, %327 : vector<2x8x8xf32>
    %329 = math.exp %328 : vector<2x8x8xf32>
    %330 = arith.subf %323, %326 : vector<2x8x1xf32>
    %331 = math.exp %330 : vector<2x8x1xf32>
    %cst_105 = arith.constant dense<0.000000e+00> : vector<2x8xf32>
    %332 = vector.multi_reduction <add>, %329, %cst_105 [2] : vector<2x8x8xf32> to vector<2x8xf32>
    %333 = vector.shape_cast %332 : vector<2x8xf32> to vector<2x8x1xf32>
    %334 = arith.addf %333, %331 : vector<2x8x1xf32>
    %335 = tpu.reciprocal %334 {approx = true} : vector<2x8x1xf32> -> vector<2x8x1xf32>
    %336 = vector.broadcast %335 : vector<2x8x1xf32> to vector<2x8x8xf32>
    %337 = arith.mulf %329, %336 : vector<2x8x8xf32>
    "tpu.trace_start"() <{level = 10 : i32, message = "gqk,gkd->gqd"}> : () -> ()
    %cst_106 = arith.constant dense<0.000000e+00> : vector<2x8x8xf32>
    %338 = tpu.matmul %337, %312, %cst_106 {dimension_numbers = #tpu.dot_dimension_numbers<[2], [1], [1], [2], [0, 0, 0, 1, 1, 2], [0], [0]>} : vector<2x8x8xf32>, vector<2x8x8xf32>, vector<2x8x8xf32> -> vector<2x8x8xf32>
    "tpu.trace_stop"() : () -> ()
    %339 = arith.mulf %331, %335 : vector<2x8x1xf32>
    %340 = vector.broadcast %339 : vector<2x8x1xf32> to vector<2x8x8xf32>
    %341 = vector.broadcast %318 : vector<1x1x8xf32> to vector<2x8x8xf32>
    %342 = arith.mulf %340, %341 : vector<2x8x8xf32>
    %343 = arith.addf %338, %342 : vector<2x8x8xf32>
    %344 = vector.extract_strided_slice %303 {offsets = [0, 0, 8], sizes = [2, 8, 8], strides = [1, 1, 1]} : vector<2x8x32xf32> to vector<2x8x8xf32>
    %345 = vector.extract_strided_slice %305 {offsets = [0, 0, 8], sizes = [2, 8, 8], strides = [1, 1, 1]} : vector<2x8x32xf32> to vector<2x8x8xf32>
    %346 = vector.extract_strided_slice %307 {offsets = [0, 0, 8], sizes = [2, 8, 8], strides = [1, 1, 1]} : vector<2x8x32xf32> to vector<2x8x8xf32>
    %347 = vector.extract_strided_slice %309 {offsets = [0, 8], sizes = [1, 8], strides = [1, 1]} : vector<2x32xf32> to vector<1x8xf32>
    %348 = vector.shape_cast %347 : vector<1x8xf32> to vector<8xf32>
    %349 = vector.shape_cast %348 : vector<8xf32> to vector<1x1x8xf32>
    %350 = vector.extract_strided_slice %309 {offsets = [1, 8], sizes = [1, 8], strides = [1, 1]} : vector<2x32xf32> to vector<1x8xf32>
    %351 = vector.shape_cast %350 : vector<1x8xf32> to vector<8xf32>
    %352 = vector.shape_cast %351 : vector<8xf32> to vector<1x1x8xf32>
    "tpu.trace_start"() <{level = 10 : i32, message = "gqd,gkd->gqk"}> : () -> ()
    %cst_107 = arith.constant dense<0.000000e+00> : vector<2x8x8xf32>
    %353 = tpu.matmul %344, %345, %cst_107 {dimension_numbers = #tpu.dot_dimension_numbers<[2], [2], [1], [1], [0, 0, 0, 1, 1, 1], [0], [0]>} : vector<2x8x8xf32>, vector<2x8x8xf32>, vector<2x8x8xf32> -> vector<2x8x8xf32>
    "tpu.trace_stop"() : () -> ()
    %354 = vector.broadcast %349 : vector<1x1x8xf32> to vector<2x8x8xf32>
    %355 = arith.mulf %344, %354 : vector<2x8x8xf32>
    %cst_108 = arith.constant dense<0.000000e+00> : vector<2x8xf32>
    %356 = vector.multi_reduction <add>, %355, %cst_108 [2] : vector<2x8x8xf32> to vector<2x8xf32>
    %357 = vector.shape_cast %356 : vector<2x8xf32> to vector<2x8x1xf32>
    %cst_109 = arith.constant dense<0xFF800000> : vector<2x8xf32>
    %358 = vector.multi_reduction <maximumf>, %353, %cst_109 [2] : vector<2x8x8xf32> to vector<2x8xf32>
    %359 = vector.shape_cast %358 : vector<2x8xf32> to vector<2x8x1xf32>
    %360 = arith.maximumf %359, %357 : vector<2x8x1xf32>
    %361 = vector.broadcast %360 : vector<2x8x1xf32> to vector<2x8x8xf32>
    %362 = arith.subf %353, %361 : vector<2x8x8xf32>
    %363 = math.exp %362 : vector<2x8x8xf32>
    %364 = arith.subf %357, %360 : vector<2x8x1xf32>
    %365 = math.exp %364 : vector<2x8x1xf32>
    %cst_110 = arith.constant dense<0.000000e+00> : vector<2x8xf32>
    %366 = vector.multi_reduction <add>, %363, %cst_110 [2] : vector<2x8x8xf32> to vector<2x8xf32>
    %367 = vector.shape_cast %366 : vector<2x8xf32> to vector<2x8x1xf32>
    %368 = arith.addf %367, %365 : vector<2x8x1xf32>
    %369 = tpu.reciprocal %368 {approx = true} : vector<2x8x1xf32> -> vector<2x8x1xf32>
    %370 = vector.broadcast %369 : vector<2x8x1xf32> to vector<2x8x8xf32>
    %371 = arith.mulf %363, %370 : vector<2x8x8xf32>
    "tpu.trace_start"() <{level = 10 : i32, message = "gqk,gkd->gqd"}> : () -> ()
    %cst_111 = arith.constant dense<0.000000e+00> : vector<2x8x8xf32>
    %372 = tpu.matmul %371, %346, %cst_111 {dimension_numbers = #tpu.dot_dimension_numbers<[2], [1], [1], [2], [0, 0, 0, 1, 1, 2], [0], [0]>} : vector<2x8x8xf32>, vector<2x8x8xf32>, vector<2x8x8xf32> -> vector<2x8x8xf32>
    "tpu.trace_stop"() : () -> ()
    %373 = arith.mulf %365, %369 : vector<2x8x1xf32>
    %374 = vector.broadcast %373 : vector<2x8x1xf32> to vector<2x8x8xf32>
    %375 = vector.broadcast %352 : vector<1x1x8xf32> to vector<2x8x8xf32>
    %376 = arith.mulf %374, %375 : vector<2x8x8xf32>
    %377 = arith.addf %372, %376 : vector<2x8x8xf32>
    %378 = vector.extract_strided_slice %303 {offsets = [0, 0, 16], sizes = [2, 8, 8], strides = [1, 1, 1]} : vector<2x8x32xf32> to vector<2x8x8xf32>
    %379 = vector.extract_strided_slice %305 {offsets = [0, 0, 16], sizes = [2, 8, 8], strides = [1, 1, 1]} : vector<2x8x32xf32> to vector<2x8x8xf32>
    %380 = vector.extract_strided_slice %307 {offsets = [0, 0, 16], sizes = [2, 8, 8], strides = [1, 1, 1]} : vector<2x8x32xf32> to vector<2x8x8xf32>
    %381 = vector.extract_strided_slice %309 {offsets = [0, 16], sizes = [1, 8], strides = [1, 1]} : vector<2x32xf32> to vector<1x8xf32>
    %382 = vector.shape_cast %381 : vector<1x8xf32> to vector<8xf32>
    %383 = vector.shape_cast %382 : vector<8xf32> to vector<1x1x8xf32>
    %384 = vector.extract_strided_slice %309 {offsets = [1, 16], sizes = [1, 8], strides = [1, 1]} : vector<2x32xf32> to vector<1x8xf32>
    %385 = vector.shape_cast %384 : vector<1x8xf32> to vector<8xf32>
    %386 = vector.shape_cast %385 : vector<8xf32> to vector<1x1x8xf32>
    "tpu.trace_start"() <{level = 10 : i32, message = "gqd,gkd->gqk"}> : () -> ()
    %cst_112 = arith.constant dense<0.000000e+00> : vector<2x8x8xf32>
    %387 = tpu.matmul %378, %379, %cst_112 {dimension_numbers = #tpu.dot_dimension_numbers<[2], [2], [1], [1], [0, 0, 0, 1, 1, 1], [0], [0]>} : vector<2x8x8xf32>, vector<2x8x8xf32>, vector<2x8x8xf32> -> vector<2x8x8xf32>
    "tpu.trace_stop"() : () -> ()
    %388 = vector.broadcast %383 : vector<1x1x8xf32> to vector<2x8x8xf32>
    %389 = arith.mulf %378, %388 : vector<2x8x8xf32>
    %cst_113 = arith.constant dense<0.000000e+00> : vector<2x8xf32>
    %390 = vector.multi_reduction <add>, %389, %cst_113 [2] : vector<2x8x8xf32> to vector<2x8xf32>
    %391 = vector.shape_cast %390 : vector<2x8xf32> to vector<2x8x1xf32>
    %cst_114 = arith.constant dense<0xFF800000> : vector<2x8xf32>
    %392 = vector.multi_reduction <maximumf>, %387, %cst_114 [2] : vector<2x8x8xf32> to vector<2x8xf32>
    %393 = vector.shape_cast %392 : vector<2x8xf32> to vector<2x8x1xf32>
    %394 = arith.maximumf %393, %391 : vector<2x8x1xf32>
    %395 = vector.broadcast %394 : vector<2x8x1xf32> to vector<2x8x8xf32>
    %396 = arith.subf %387, %395 : vector<2x8x8xf32>
    %397 = math.exp %396 : vector<2x8x8xf32>
    %398 = arith.subf %391, %394 : vector<2x8x1xf32>
    %399 = math.exp %398 : vector<2x8x1xf32>
    %cst_115 = arith.constant dense<0.000000e+00> : vector<2x8xf32>
    %400 = vector.multi_reduction <add>, %397, %cst_115 [2] : vector<2x8x8xf32> to vector<2x8xf32>
    %401 = vector.shape_cast %400 : vector<2x8xf32> to vector<2x8x1xf32>
    %402 = arith.addf %401, %399 : vector<2x8x1xf32>
    %403 = tpu.reciprocal %402 {approx = true} : vector<2x8x1xf32> -> vector<2x8x1xf32>
    %404 = vector.broadcast %403 : vector<2x8x1xf32> to vector<2x8x8xf32>
    %405 = arith.mulf %397, %404 : vector<2x8x8xf32>
    "tpu.trace_start"() <{level = 10 : i32, message = "gqk,gkd->gqd"}> : () -> ()
    %cst_116 = arith.constant dense<0.000000e+00> : vector<2x8x8xf32>
    %406 = tpu.matmul %405, %380, %cst_116 {dimension_numbers = #tpu.dot_dimension_numbers<[2], [1], [1], [2], [0, 0, 0, 1, 1, 2], [0], [0]>} : vector<2x8x8xf32>, vector<2x8x8xf32>, vector<2x8x8xf32> -> vector<2x8x8xf32>
    "tpu.trace_stop"() : () -> ()
    %407 = arith.mulf %399, %403 : vector<2x8x1xf32>
    %408 = vector.broadcast %407 : vector<2x8x1xf32> to vector<2x8x8xf32>
    %409 = vector.broadcast %386 : vector<1x1x8xf32> to vector<2x8x8xf32>
    %410 = arith.mulf %408, %409 : vector<2x8x8xf32>
    %411 = arith.addf %406, %410 : vector<2x8x8xf32>
    %412 = vector.extract_strided_slice %303 {offsets = [0, 0, 24], sizes = [2, 8, 8], strides = [1, 1, 1]} : vector<2x8x32xf32> to vector<2x8x8xf32>
    %413 = vector.extract_strided_slice %305 {offsets = [0, 0, 24], sizes = [2, 8, 8], strides = [1, 1, 1]} : vector<2x8x32xf32> to vector<2x8x8xf32>
    %414 = vector.extract_strided_slice %307 {offsets = [0, 0, 24], sizes = [2, 8, 8], strides = [1, 1, 1]} : vector<2x8x32xf32> to vector<2x8x8xf32>
    %415 = vector.extract_strided_slice %309 {offsets = [0, 24], sizes = [1, 8], strides = [1, 1]} : vector<2x32xf32> to vector<1x8xf32>
    %416 = vector.shape_cast %415 : vector<1x8xf32> to vector<8xf32>
    %417 = vector.shape_cast %416 : vector<8xf32> to vector<1x1x8xf32>
    %418 = vector.extract_strided_slice %309 {offsets = [1, 24], sizes = [1, 8], strides = [1, 1]} : vector<2x32xf32> to vector<1x8xf32>
    %419 = vector.shape_cast %418 : vector<1x8xf32> to vector<8xf32>
    %420 = vector.shape_cast %419 : vector<8xf32> to vector<1x1x8xf32>
    "tpu.trace_start"() <{level = 10 : i32, message = "gqd,gkd->gqk"}> : () -> ()
    %cst_117 = arith.constant dense<0.000000e+00> : vector<2x8x8xf32>
    %421 = tpu.matmul %412, %413, %cst_117 {dimension_numbers = #tpu.dot_dimension_numbers<[2], [2], [1], [1], [0, 0, 0, 1, 1, 1], [0], [0]>} : vector<2x8x8xf32>, vector<2x8x8xf32>, vector<2x8x8xf32> -> vector<2x8x8xf32>
    "tpu.trace_stop"() : () -> ()
    %422 = vector.broadcast %417 : vector<1x1x8xf32> to vector<2x8x8xf32>
    %423 = arith.mulf %412, %422 : vector<2x8x8xf32>
    %cst_118 = arith.constant dense<0.000000e+00> : vector<2x8xf32>
    %424 = vector.multi_reduction <add>, %423, %cst_118 [2] : vector<2x8x8xf32> to vector<2x8xf32>
    %425 = vector.shape_cast %424 : vector<2x8xf32> to vector<2x8x1xf32>
    %cst_119 = arith.constant dense<0xFF800000> : vector<2x8xf32>
    %426 = vector.multi_reduction <maximumf>, %421, %cst_119 [2] : vector<2x8x8xf32> to vector<2x8xf32>
    %427 = vector.shape_cast %426 : vector<2x8xf32> to vector<2x8x1xf32>
    %428 = arith.maximumf %427, %425 : vector<2x8x1xf32>
    %429 = vector.broadcast %428 : vector<2x8x1xf32> to vector<2x8x8xf32>
    %430 = arith.subf %421, %429 : vector<2x8x8xf32>
    %431 = math.exp %430 : vector<2x8x8xf32>
    %432 = arith.subf %425, %428 : vector<2x8x1xf32>
    %433 = math.exp %432 : vector<2x8x1xf32>
    %cst_120 = arith.constant dense<0.000000e+00> : vector<2x8xf32>
    %434 = vector.multi_reduction <add>, %431, %cst_120 [2] : vector<2x8x8xf32> to vector<2x8xf32>
    %435 = vector.shape_cast %434 : vector<2x8xf32> to vector<2x8x1xf32>
    %436 = arith.addf %435, %433 : vector<2x8x1xf32>
    %437 = tpu.reciprocal %436 {approx = true} : vector<2x8x1xf32> -> vector<2x8x1xf32>
    %438 = vector.broadcast %437 : vector<2x8x1xf32> to vector<2x8x8xf32>
    %439 = arith.mulf %431, %438 : vector<2x8x8xf32>
    "tpu.trace_start"() <{level = 10 : i32, message = "gqk,gkd->gqd"}> : () -> ()
    %cst_121 = arith.constant dense<0.000000e+00> : vector<2x8x8xf32>
    %440 = tpu.matmul %439, %414, %cst_121 {dimension_numbers = #tpu.dot_dimension_numbers<[2], [1], [1], [2], [0, 0, 0, 1, 1, 2], [0], [0]>} : vector<2x8x8xf32>, vector<2x8x8xf32>, vector<2x8x8xf32> -> vector<2x8x8xf32>
    "tpu.trace_stop"() : () -> ()
    %441 = arith.mulf %433, %437 : vector<2x8x1xf32>
    %442 = vector.broadcast %441 : vector<2x8x1xf32> to vector<2x8x8xf32>
    %443 = vector.broadcast %420 : vector<1x1x8xf32> to vector<2x8x8xf32>
    %444 = arith.mulf %442, %443 : vector<2x8x8xf32>
    %445 = arith.addf %440, %444 : vector<2x8x8xf32>
    %446 = tpu.concatenate %343, %377, %411, %445 in 2 : vector<2x8x8xf32>, vector<2x8x8xf32>, vector<2x8x8xf32>, vector<2x8x8xf32> -> vector<2x8x32xf32>
    %447 = vector.shape_cast %446 : vector<2x8x32xf32> to vector<16x32xf32>
    %448 = arith.truncf %447 : vector<16x32xf32> to vector<16x32xbf16>
    %c1_122 = arith.constant 1 : index
    %c0_123 = arith.constant 0 : index
    %c0_124 = arith.constant 0 : index
    %449 = vector.load %arg9[%c1_122, %c0_123, %c0_124] : memref<2x32x32xbf16, #tpu.memory_space<vmem>>, vector<1x32x32xbf16>
    %450 = vector.shape_cast %449 : vector<1x32x32xbf16> to vector<32x32xbf16>
    %cst_125 = arith.constant dense<0.000000e+00> : vector<16x32xf32>
    %451 = tpu.matmul %448, %450, %cst_125 {dimension_numbers = #tpu.dot_dimension_numbers<[1], [0], [0], [1], [0, 0, 1, 1], [], []>} : vector<16x32xbf16>, vector<32x32xbf16>, vector<16x32xf32> -> vector<16x32xf32>
    %c1_126 = arith.constant 1 : index
    %c0_127 = arith.constant 0 : index
    %c0_128 = arith.constant 0 : index
    %452 = vector.load %arg10[%c1_126, %c0_127, %c0_128] : memref<2x1x32xf32, #tpu.memory_space<vmem>>, vector<1x1x32xf32>
    %453 = vector.shape_cast %452 : vector<1x1x32xf32> to vector<1x32xf32>
    %454 = vector.broadcast %453 : vector<1x32xf32> to vector<16x32xf32>
    %455 = arith.addf %451, %454 : vector<16x32xf32>
    %c1_129 = arith.constant 1 : index
    %c0_130 = arith.constant 0 : index
    %c0_131 = arith.constant 0 : index
    %456 = vector.load %arg15[%c1_129, %c0_130, %c0_131] : memref<2x3x32xf32, #tpu.memory_space<vmem>>, vector<1x3x32xf32>
    %457 = vector.shape_cast %456 : vector<1x3x32xf32> to vector<3x32xf32>
    %c1_132 = arith.constant 1 : index
    %c0_133 = arith.constant 0 : index
    %c0_134 = arith.constant 0 : index
    %458 = vector.load %arg16[%c1_132, %c0_133, %c0_134] : memref<2x3x32xf32, #tpu.memory_space<vmem>>, vector<1x3x32xf32>
    %459 = vector.shape_cast %458 : vector<1x3x32xf32> to vector<3x32xf32>
    %460 = arith.addf %455, %291 : vector<16x32xf32>
    %461 = vector.extract_strided_slice %457 {offsets = [0, 0], sizes = [1, 32], strides = [1, 1]} : vector<3x32xf32> to vector<1x32xf32>
    %462 = vector.extract_strided_slice %459 {offsets = [0, 0], sizes = [1, 32], strides = [1, 1]} : vector<3x32xf32> to vector<1x32xf32>
    %cst_135 = arith.constant dense<0.000000e+00> : vector<16xf32>
    %463 = vector.multi_reduction <add>, %460, %cst_135 [1] : vector<16x32xf32> to vector<16xf32>
    %464 = vector.shape_cast %463 : vector<16xf32> to vector<16x1xf32>
    %cst_136 = arith.constant 3.200000e+01 : f32
    %465 = vector.broadcast %cst_136 : f32 to vector<16x1xf32>
    %466 = arith.divf %464, %465 : vector<16x1xf32>
    %467 = vector.broadcast %466 : vector<16x1xf32> to vector<16x32xf32>
    %468 = arith.subf %460, %467 : vector<16x32xf32>
    %469 = arith.mulf %468, %468 : vector<16x32xf32>
    %cst_137 = arith.constant dense<0.000000e+00> : vector<16xf32>
    %470 = vector.multi_reduction <add>, %469, %cst_137 [1] : vector<16x32xf32> to vector<16xf32>
    %471 = vector.shape_cast %470 : vector<16xf32> to vector<16x1xf32>
    %cst_138 = arith.constant 3.200000e+01 : f32
    %472 = vector.broadcast %cst_138 : f32 to vector<16x1xf32>
    %473 = arith.divf %471, %472 : vector<16x1xf32>
    %cst_139 = arith.constant 9.99999974E-6 : f32
    %474 = vector.broadcast %cst_139 : f32 to vector<16x1xf32>
    %475 = arith.addf %473, %474 : vector<16x1xf32>
    %476 = math.rsqrt %475 : vector<16x1xf32>
    %477 = vector.broadcast %476 : vector<16x1xf32> to vector<16x32xf32>
    %478 = arith.mulf %468, %477 : vector<16x32xf32>
    %479 = vector.broadcast %461 : vector<1x32xf32> to vector<16x32xf32>
    %480 = arith.mulf %478, %479 : vector<16x32xf32>
    %481 = vector.broadcast %462 : vector<1x32xf32> to vector<16x32xf32>
    %482 = arith.addf %480, %481 : vector<16x32xf32>
    %483 = arith.truncf %482 : vector<16x32xf32> to vector<16x32xbf16>
    %c1_140 = arith.constant 1 : index
    %c0_141 = arith.constant 0 : index
    %c0_142 = arith.constant 0 : index
    %484 = vector.load %arg11[%c1_140, %c0_141, %c0_142] : memref<2x32x128xbf16, #tpu.memory_space<vmem>>, vector<1x32x128xbf16>
    %485 = vector.shape_cast %484 : vector<1x32x128xbf16> to vector<32x128xbf16>
    %cst_143 = arith.constant dense<0.000000e+00> : vector<16x128xf32>
    %486 = tpu.matmul %483, %485, %cst_143 {dimension_numbers = #tpu.dot_dimension_numbers<[1], [0], [0], [1], [0, 0, 1, 1], [], []>} : vector<16x32xbf16>, vector<32x128xbf16>, vector<16x128xf32> -> vector<16x128xf32>
    %c1_144 = arith.constant 1 : index
    %c0_145 = arith.constant 0 : index
    %c0_146 = arith.constant 0 : index
    %487 = vector.load %arg12[%c1_144, %c0_145, %c0_146] : memref<2x1x128xf32, #tpu.memory_space<vmem>>, vector<1x1x128xf32>
    %488 = vector.shape_cast %487 : vector<1x1x128xf32> to vector<1x128xf32>
    %489 = vector.broadcast %488 : vector<1x128xf32> to vector<16x128xf32>
    %490 = arith.addf %486, %489 : vector<16x128xf32>
    %cst_147 = arith.constant 0.000000e+00 : f32
    %491 = vector.broadcast %cst_147 : f32 to vector<16x128xf32>
    %492 = arith.maximumf %490, %491 : vector<16x128xf32>
    %493 = arith.truncf %492 : vector<16x128xf32> to vector<16x128xbf16>
    %c1_148 = arith.constant 1 : index
    %c0_149 = arith.constant 0 : index
    %c0_150 = arith.constant 0 : index
    %494 = vector.load %arg13[%c1_148, %c0_149, %c0_150] : memref<2x128x32xbf16, #tpu.memory_space<vmem>>, vector<1x128x32xbf16>
    %495 = vector.shape_cast %494 : vector<1x128x32xbf16> to vector<128x32xbf16>
    %cst_151 = arith.constant dense<0.000000e+00> : vector<16x32xf32>
    %496 = tpu.matmul %493, %495, %cst_151 {dimension_numbers = #tpu.dot_dimension_numbers<[1], [0], [0], [1], [0, 0, 1, 1], [], []>} : vector<16x128xbf16>, vector<128x32xbf16>, vector<16x32xf32> -> vector<16x32xf32>
    %c1_152 = arith.constant 1 : index
    %c0_153 = arith.constant 0 : index
    %c0_154 = arith.constant 0 : index
    %497 = vector.load %arg14[%c1_152, %c0_153, %c0_154] : memref<2x1x32xf32, #tpu.memory_space<vmem>>, vector<1x1x32xf32>
    %498 = vector.shape_cast %497 : vector<1x1x32xf32> to vector<1x32xf32>
    %499 = vector.broadcast %498 : vector<1x32xf32> to vector<16x32xf32>
    %500 = arith.addf %496, %499 : vector<16x32xf32>
    %501 = arith.addf %482, %500 : vector<16x32xf32>
    %502 = vector.extract_strided_slice %457 {offsets = [1, 0], sizes = [1, 32], strides = [1, 1]} : vector<3x32xf32> to vector<1x32xf32>
    %503 = vector.extract_strided_slice %459 {offsets = [1, 0], sizes = [1, 32], strides = [1, 1]} : vector<3x32xf32> to vector<1x32xf32>
    %cst_155 = arith.constant dense<0.000000e+00> : vector<16xf32>
    %504 = vector.multi_reduction <add>, %501, %cst_155 [1] : vector<16x32xf32> to vector<16xf32>
    %505 = vector.shape_cast %504 : vector<16xf32> to vector<16x1xf32>
    %cst_156 = arith.constant 3.200000e+01 : f32
    %506 = vector.broadcast %cst_156 : f32 to vector<16x1xf32>
    %507 = arith.divf %505, %506 : vector<16x1xf32>
    %508 = vector.broadcast %507 : vector<16x1xf32> to vector<16x32xf32>
    %509 = arith.subf %501, %508 : vector<16x32xf32>
    %510 = arith.mulf %509, %509 : vector<16x32xf32>
    %cst_157 = arith.constant dense<0.000000e+00> : vector<16xf32>
    %511 = vector.multi_reduction <add>, %510, %cst_157 [1] : vector<16x32xf32> to vector<16xf32>
    %512 = vector.shape_cast %511 : vector<16xf32> to vector<16x1xf32>
    %cst_158 = arith.constant 3.200000e+01 : f32
    %513 = vector.broadcast %cst_158 : f32 to vector<16x1xf32>
    %514 = arith.divf %512, %513 : vector<16x1xf32>
    %cst_159 = arith.constant 9.99999974E-6 : f32
    %515 = vector.broadcast %cst_159 : f32 to vector<16x1xf32>
    %516 = arith.addf %514, %515 : vector<16x1xf32>
    %517 = math.rsqrt %516 : vector<16x1xf32>
    %518 = vector.broadcast %517 : vector<16x1xf32> to vector<16x32xf32>
    %519 = arith.mulf %509, %518 : vector<16x32xf32>
    %520 = vector.broadcast %502 : vector<1x32xf32> to vector<16x32xf32>
    %521 = arith.mulf %519, %520 : vector<16x32xf32>
    %522 = vector.broadcast %503 : vector<1x32xf32> to vector<16x32xf32>
    %523 = arith.addf %521, %522 : vector<16x32xf32>
    %524 = arith.addf %482, %523 : vector<16x32xf32>
    %525 = vector.extract_strided_slice %457 {offsets = [2, 0], sizes = [1, 32], strides = [1, 1]} : vector<3x32xf32> to vector<1x32xf32>
    %526 = vector.extract_strided_slice %459 {offsets = [2, 0], sizes = [1, 32], strides = [1, 1]} : vector<3x32xf32> to vector<1x32xf32>
    %cst_160 = arith.constant dense<0.000000e+00> : vector<16xf32>
    %527 = vector.multi_reduction <add>, %524, %cst_160 [1] : vector<16x32xf32> to vector<16xf32>
    %528 = vector.shape_cast %527 : vector<16xf32> to vector<16x1xf32>
    %cst_161 = arith.constant 3.200000e+01 : f32
    %529 = vector.broadcast %cst_161 : f32 to vector<16x1xf32>
    %530 = arith.divf %528, %529 : vector<16x1xf32>
    %531 = vector.broadcast %530 : vector<16x1xf32> to vector<16x32xf32>
    %532 = arith.subf %524, %531 : vector<16x32xf32>
    %533 = arith.mulf %532, %532 : vector<16x32xf32>
    %cst_162 = arith.constant dense<0.000000e+00> : vector<16xf32>
    %534 = vector.multi_reduction <add>, %533, %cst_162 [1] : vector<16x32xf32> to vector<16xf32>
    %535 = vector.shape_cast %534 : vector<16xf32> to vector<16x1xf32>
    %cst_163 = arith.constant 3.200000e+01 : f32
    %536 = vector.broadcast %cst_163 : f32 to vector<16x1xf32>
    %537 = arith.divf %535, %536 : vector<16x1xf32>
    %cst_164 = arith.constant 9.99999974E-6 : f32
    %538 = vector.broadcast %cst_164 : f32 to vector<16x1xf32>
    %539 = arith.addf %537, %538 : vector<16x1xf32>
    %540 = math.rsqrt %539 : vector<16x1xf32>
    %541 = vector.broadcast %540 : vector<16x1xf32> to vector<16x32xf32>
    %542 = arith.mulf %532, %541 : vector<16x32xf32>
    %543 = vector.broadcast %525 : vector<1x32xf32> to vector<16x32xf32>
    %544 = arith.mulf %542, %543 : vector<16x32xf32>
    %545 = vector.broadcast %526 : vector<1x32xf32> to vector<16x32xf32>
    %546 = arith.addf %544, %545 : vector<16x32xf32>
    %547 = vector.shape_cast %546 : vector<16x32xf32> to vector<2x8x32xf32>
    %c0_165 = arith.constant 0 : index
    %c0_166 = arith.constant 0 : index
    %c0_167 = arith.constant 0 : index
    %548 = vector.load %arg20[%c0_165, %c0_166, %c0_167] : memref<2x8x32xf32, #tpu.memory_space<vmem>>, vector<2x8x32xf32>
    tpu.vector_store %arg20[%c0_165, %c0_166, %c0_167], %547 {strides = array<i32>} : memref<2x8x32xf32, #tpu.memory_space<vmem>>, vector<2x8x32xf32>,
    %549 = arith.truncf %546 : vector<16x32xf32> to vector<16x32xbf16>
    %c0_168 = arith.constant 0 : index
    %c0_169 = arith.constant 0 : index
    %550 = vector.load %arg17[%c0_168, %c0_169] : memref<32x128xbf16, #tpu.memory_space<vmem>>, vector<32x128xbf16>
    %cst_170 = arith.constant dense<0.000000e+00> : vector<16x128xf32>
    %551 = tpu.matmul %549, %550, %cst_170 {dimension_numbers = #tpu.dot_dimension_numbers<[1], [0], [0], [1], [0, 0, 1, 1], [], []>} : vector<16x32xbf16>, vector<32x128xbf16>, vector<16x128xf32> -> vector<16x128xf32>
    %c0_171 = arith.constant 0 : index
    %c0_172 = arith.constant 0 : index
    %552 = vector.load %arg18[%c0_171, %c0_172] : memref<1x128xf32, #tpu.memory_space<vmem>>, vector<1x128xf32>
    %553 = vector.broadcast %552 : vector<1x128xf32> to vector<16x128xf32>
    %554 = arith.addf %551, %553 : vector<16x128xf32>
    %cst_173 = arith.constant dense<0xFF800000> : vector<16xf32>
    %555 = vector.multi_reduction <maximumf>, %554, %cst_173 [1] : vector<16x128xf32> to vector<16xf32>
    %556 = vector.shape_cast %555 : vector<16xf32> to vector<16x1xf32>
    %557 = vector.broadcast %556 : vector<16x1xf32> to vector<16x128xf32>
    %558 = arith.subf %554, %557 : vector<16x128xf32>
    %559 = math.exp %558 : vector<16x128xf32>
    %cst_174 = arith.constant dense<0.000000e+00> : vector<16xf32>
    %560 = vector.multi_reduction <add>, %559, %cst_174 [1] : vector<16x128xf32> to vector<16xf32>
    %561 = vector.shape_cast %560 : vector<16xf32> to vector<16x1xf32>
    %562 = vector.broadcast %561 : vector<16x1xf32> to vector<16x128xf32>
    %563 = arith.divf %559, %562 : vector<16x128xf32>
    %564 = vector.shape_cast %563 : vector<16x128xf32> to vector<2x8x128xf32>
    %c0_175 = arith.constant 0 : index
    %c0_176 = arith.constant 0 : index
    %c0_177 = arith.constant 0 : index
    %565 = vector.load %arg21[%c0_175, %c0_176, %c0_177] : memref<2x8x128xf32, #tpu.memory_space<vmem>>, vector<2x8x128xf32>
    tpu.vector_store %arg21[%c0_175, %c0_176, %c0_177], %564 {strides = array<i32>} : memref<2x8x128xf32, #tpu.memory_space<vmem>>, vector<2x8x128xf32>,
    return
  }
  func.func @transform_0(%arg0: i32) -> (i32, i32, i32) {
    %c0_i32 = arith.constant 0 : i32
    %c0_i32_0 = arith.constant 0 : i32
    %c0_i32_1 = arith.constant 0 : i32
    return %arg0, %c0_i32, %c0_i32_0 : i32, i32, i32
  }
  func.func @transform_1(%arg0: i32) -> (i32, i32, i32) {
    %c0_i32 = arith.constant 0 : i32
    %c0_i32_0 = arith.constant 0 : i32
    %c0_i32_1 = arith.constant 0 : i32
    return %arg0, %c0_i32, %c0_i32_0 : i32, i32, i32
  }
  func.func @transform_2(%arg0: i32) -> (i32, i32) {
    %c0_i32 = arith.constant 0 : i32
    %c0_i32_0 = arith.constant 0 : i32
    %c0_i32_1 = arith.constant 0 : i32
    return %c0_i32, %c0_i32_0 : i32, i32
  }
  func.func @transform_3(%arg0: i32) -> (i32, i32) {
    %c0_i32 = arith.constant 0 : i32
    %c0_i32_0 = arith.constant 0 : i32
    %c0_i32_1 = arith.constant 0 : i32
    return %c0_i32, %c0_i32_0 : i32, i32
  }
  func.func @transform_4(%arg0: i32) -> (i32, i32) {
    %c0_i32 = arith.constant 0 : i32
    %c0_i32_0 = arith.constant 0 : i32
    %c0_i32_1 = arith.constant 0 : i32
    return %c0_i32, %c0_i32_0 : i32, i32
  }
  func.func @transform_5(%arg0: i32) -> (i32, i32, i32) {
    %c0_i32 = arith.constant 0 : i32
    %c0_i32_0 = arith.constant 0 : i32
    %c0_i32_1 = arith.constant 0 : i32
    %c0_i32_2 = arith.constant 0 : i32
    return %c0_i32, %c0_i32_0, %c0_i32_1 : i32, i32, i32
  }
  func.func @transform_6(%arg0: i32) -> (i32, i32, i32) {
    %c0_i32 = arith.constant 0 : i32
    %c0_i32_0 = arith.constant 0 : i32
    %c0_i32_1 = arith.constant 0 : i32
    %c0_i32_2 = arith.constant 0 : i32
    return %c0_i32, %c0_i32_0, %c0_i32_1 : i32, i32, i32
  }
  func.func @transform_7(%arg0: i32) -> (i32, i32, i32) {
    %c0_i32 = arith.constant 0 : i32
    %c0_i32_0 = arith.constant 0 : i32
    %c0_i32_1 = arith.constant 0 : i32
    %c0_i32_2 = arith.constant 0 : i32
    return %c0_i32, %c0_i32_0, %c0_i32_1 : i32, i32, i32
  }
  func.func @transform_8(%arg0: i32) -> (i32, i32, i32) {
    %c0_i32 = arith.constant 0 : i32
    %c0_i32_0 = arith.constant 0 : i32
    %c0_i32_1 = arith.constant 0 : i32
    %c0_i32_2 = arith.constant 0 : i32
    return %c0_i32, %c0_i32_0, %c0_i32_1 : i32, i32, i32
  }
  func.func @transform_9(%arg0: i32) -> (i32, i32, i32) {
    %c0_i32 = arith.constant 0 : i32
    %c0_i32_0 = arith.constant 0 : i32
    %c0_i32_1 = arith.constant 0 : i32
    %c0_i32_2 = arith.constant 0 : i32
    return %c0_i32, %c0_i32_0, %c0_i32_1 : i32, i32, i32
  }
  func.func @transform_10(%arg0: i32) -> (i32, i32, i32) {
    %c0_i32 = arith.constant 0 : i32
    %c0_i32_0 = arith.constant 0 : i32
    %c0_i32_1 = arith.constant 0 : i32
    %c0_i32_2 = arith.constant 0 : i32
    return %c0_i32, %c0_i32_0, %c0_i32_1 : i32, i32, i32
  }
  func.func @transform_11(%arg0: i32) -> (i32, i32, i32) {
    %c0_i32 = arith.constant 0 : i32
    %c0_i32_0 = arith.constant 0 : i32
    %c0_i32_1 = arith.constant 0 : i32
    %c0_i32_2 = arith.constant 0 : i32
    return %c0_i32, %c0_i32_0, %c0_i32_1 : i32, i32, i32
  }
  func.func @transform_12(%arg0: i32) -> (i32, i32, i32) {
    %c0_i32 = arith.constant 0 : i32
    %c0_i32_0 = arith.constant 0 : i32
    %c0_i32_1 = arith.constant 0 : i32
    %c0_i32_2 = arith.constant 0 : i32
    return %c0_i32, %c0_i32_0, %c0_i32_1 : i32, i32, i32
  }
  func.func @transform_13(%arg0: i32) -> (i32, i32, i32) {
    %c0_i32 = arith.constant 0 : i32
    %c0_i32_0 = arith.constant 0 : i32
    %c0_i32_1 = arith.constant 0 : i32
    %c0_i32_2 = arith.constant 0 : i32
    return %c0_i32, %c0_i32_0, %c0_i32_1 : i32, i32, i32
  }
  func.func @transform_14(%arg0: i32) -> (i32, i32, i32) {
    %c0_i32 = arith.constant 0 : i32
    %c0_i32_0 = arith.constant 0 : i32
    %c0_i32_1 = arith.constant 0 : i32
    %c0_i32_2 = arith.constant 0 : i32
    return %c0_i32, %c0_i32_0, %c0_i32_1 : i32, i32, i32
  }
  func.func @transform_15(%arg0: i32) -> (i32, i32, i32) {
    %c0_i32 = arith.constant 0 : i32
    %c0_i32_0 = arith.constant 0 : i32
    %c0_i32_1 = arith.constant 0 : i32
    %c0_i32_2 = arith.constant 0 : i32
    return %c0_i32, %c0_i32_0, %c0_i32_1 : i32, i32, i32
  }
  func.func @transform_16(%arg0: i32) -> (i32, i32) {
    %c0_i32 = arith.constant 0 : i32
    %c0_i32_0 = arith.constant 0 : i32
    %c0_i32_1 = arith.constant 0 : i32
    return %c0_i32, %c0_i32_0 : i32, i32
  }
  func.func @transform_17(%arg0: i32) -> (i32, i32) {
    %c0_i32 = arith.constant 0 : i32
    %c0_i32_0 = arith.constant 0 : i32
    %c0_i32_1 = arith.constant 0 : i32
    return %c0_i32, %c0_i32_0 : i32, i32
  }
  func.func @transform_18(%arg0: i32) -> (i32, i32, i32) {
    %c0_i32 = arith.constant 0 : i32
    %c0_i32_0 = arith.constant 0 : i32
    %c0_i32_1 = arith.constant 0 : i32
    return %arg0, %c0_i32, %c0_i32_0 : i32, i32, i32
  }
  func.func @transform_19(%arg0: i32) -> (i32, i32, i32) {
    %c0_i32 = arith.constant 0 : i32
    %c0_i32_0 = arith.constant 0 : i32
    %c0_i32_1 = arith.constant 0 : i32
    return %arg0, %c0_i32, %c0_i32_0 : i32, i32, i32
  }
  func.func @transform_20(%arg0: i32) -> (i32, i32, i32) {
    %c0_i32 = arith.constant 0 : i32
    %c0_i32_0 = arith.constant 0 : i32
    %c0_i32_1 = arith.constant 0 : i32
    return %arg0, %c0_i32, %c0_i32_0 : i32, i32, i32
  }
}

</mosaic_0001>

<llo_original>
// kernel: tpu_custom_call.1
$region0: #{tpu_custom_call.1}
  #allocation0 [shape = 'u32[]', space=smem, size = 0x4, offset = 0x4, fixed_abs, tag = 'smem constant byte address 0x4 - core index']
  #allocation1 [shape = 'u32[144,128]{1,0:T(1,128)}', space=vmem, size = 0x12000, scoped, tag = 'internal scratch']
  %s0 = inlined_call_operand.vmem [shape: f32[8,8,32], index: 0, kind: input, shape index: {}]
  %s1 = inlined_call_operand.vmem [shape: f32[8,1,32], index: 1, kind: input, shape index: {}]
  %s2 = inlined_call_operand.vmem [shape: f32[32,128], index: 2, kind: input, shape index: {}]
  %s3 = inlined_call_operand.hbm [shape: f32[1,128], index: 3, kind: input, shape index: {}]
  %s4 = inlined_call_operand.vmem [shape: bf16[128,32], index: 4, kind: input, shape index: {}]
  %s5 = inlined_call_operand.vmem [shape: bf16[2,32,96], index: 5, kind: input, shape index: {}]
  %s6 = inlined_call_operand.hbm [shape: f32[2,1,96], index: 6, kind: input, shape index: {}]
  %s7 = inlined_call_operand.vmem [shape: f32[2,2,32], index: 7, kind: input, shape index: {}]
  %s8 = inlined_call_operand.vmem [shape: bf16[2,32,32], index: 8, kind: input, shape index: {}]
  %s9 = inlined_call_operand.vmem [shape: f32[2,1,32], index: 9, kind: input, shape index: {}]
  %s10 = inlined_call_operand.vmem [shape: bf16[2,32,128], index: 10, kind: input, shape index: {}]
  %s11 = inlined_call_operand.vmem [shape: f32[2,1,128], index: 11, kind: input, shape index: {}]
  %s12 = inlined_call_operand.vmem [shape: bf16[2,128,32], index: 12, kind: input, shape index: {}]
  %s13 = inlined_call_operand.vmem [shape: f32[2,1,32], index: 13, kind: input, shape index: {}]
  %s14 = inlined_call_operand.vmem [shape: f32[2,3,32], index: 14, kind: input, shape index: {}]
  %s15 = inlined_call_operand.vmem [shape: f32[2,3,32], index: 15, kind: input, shape index: {}]
  %s16 = inlined_call_operand.vmem [shape: bf16[32,128], index: 16, kind: input, shape index: {}]
  %s17 = inlined_call_operand.vmem [shape: f32[1,128], index: 17, kind: input, shape index: {}]
  %s18 = inlined_call_operand.hbm [shape: f32[8,8,128], index: 18, kind: output, shape index: {0}]
  %s19 = inlined_call_operand.hbm [shape: f32[8,8,32], index: 19, kind: output, shape index: {1}]
  %s20 = inlined_call_operand.hbm [shape: f32[8,8,128], index: 20, kind: output, shape index: {2}]
  %21 = xla_tuple %s18, %s19, %s20
  %s22 = sld [smem:[#allocation0]]
  $region129: #{tpu_custom_call.1} parent=0
    _
  %s24 = ssub.s32 1, %s22
  %s25 = scalar_select 0, %s24, %s22
  $region1: #{tpu_custom_call.1} parent=0
    #allocation2 [shape = 'u8[512]{0}', space=vmem, size = 0x400, scoped, tag = 'input window, operand 3, single buffered']
    #allocation3 [shape = 's32[2]{0}', space=sflag, size = 0x8, scoped, tag = 'scoped memory for tpu_custom_call.1']
    #allocation4 [shape = 's32[2]{0}', space=sflag, size = 0x8, scoped, tag = 'scoped memory for tpu_custom_call.1']
    #allocation5 [shape = 'u8[1024]{0}', space=vmem, size = 0x400, scoped, tag = 'input window, operand 6, single buffered']
    #allocation6 [shape = 's32[1]{0}', space=sflag, size = 0x4, scoped, tag = 'scoped memory for tpu_custom_call.1']
    #allocation7 [shape = 'u8[16384]{0}', space=vmem, size = 0x4000, scoped, tag = 'output window, operand 0']
    #allocation8 [shape = 'u8[16384]{0}', space=vmem, size = 0x4000, scoped, tag = 'output window, operand 1']
    #allocation9 [shape = 's32[2]{0}', space=sflag, size = 0x8, scoped, tag = 'scoped memory for tpu_custom_call.1']
    #allocation10 [shape = 'u8[16384]{0}', space=vmem, size = 0x4000, scoped, tag = 'output window, operand 2']
    %26 = vsyncpa [#allocation3], 0
    %27 = vsyncpa [#allocation6], 0
    %28 = vsyncpa [#allocation4], 0
    %s29 = scalar_lea.sflag [#allocation4], 1
    %30 = vsyncpa %s29, 0
    %31 = vsyncpa [#allocation9], 0
    %s32 = scalar_lea.sflag [#allocation9], 1
    %33 = vsyncpa %s32, 0
    loop: start=0, step=1, limit=6
    $region2: #{tpu_custom_call.1} parent=1 // loop_pre_header
      _
    $region3: #{tpu_custom_call.1} parent=1 // loop_header
      %s35 = sphi 0, %s39
      %p36 = scmp.ge.s32.totalorder %s35, 6
      %s45 = sphi 0, %s47
      %s48 = sphi 0, %s45
      %s49 = sphi 0, %s48
      %s65 = sphi 0, %s49
      %s71 = sphi 0, %s73
      %s74 = sphi 0, %s71
      %s75 = sphi 0, %s74
      %s91 = sphi 0, %s75
      %s95 = sphi 0, %s95
      %s97 = sphi 0, %s95
      %s98 = sphi 0, %s97
      %s112 = sphi 0, %s98
      %s116 = sphi 0, %s116
      %s118 = sphi 0, %s116
      %s119 = sphi 0, %s118
      %s133 = sphi 0, %s119
      %s137 = sphi 0, %s137
      %s139 = sphi 0, %s137
      %s140 = sphi 0, %s139
      %s154 = sphi 0, %s140
      %s158 = sphi 0, %s158
      %s160 = sphi 0, %s158
      %s161 = sphi 0, %s160
      %s175 = sphi 0, %s161
      %s179 = sphi 0, %s179
      %s181 = sphi 0, %s179
      %s182 = sphi 0, %s181
      %s196 = sphi 0, %s182
      %s200 = sphi 0, %s200
      %s202 = sphi 0, %s200
      %s203 = sphi 0, %s202
      %s217 = sphi 0, %s203
      %s221 = sphi 0, %s221
      %s223 = sphi 0, %s221
      %s224 = sphi 0, %s223
      %s238 = sphi 0, %s224
      %s242 = sphi 0, %s242
      %s244 = sphi 0, %s242
      %s245 = sphi 0, %s244
      %s259 = sphi 0, %s245
      %s263 = sphi 0, %s263
      %s265 = sphi 0, %s263
      %s266 = sphi 0, %s265
      %s280 = sphi 0, %s266
      %s284 = sphi 0, %s284
      %s286 = sphi 0, %s284
      %s287 = sphi 0, %s286
      %s301 = sphi 0, %s287
      %s305 = sphi 0, %s305
      %s307 = sphi 0, %s305
      %s308 = sphi 0, %s307
      %s322 = sphi 0, %s308
      %s326 = sphi 0, %s326
      %s328 = sphi 0, %s326
      %s329 = sphi 0, %s328
      %s343 = sphi 0, %s329
      %s347 = sphi 0, %s347
      %s349 = sphi 0, %s347
      %s350 = sphi 0, %s349
      %s364 = sphi 0, %s350
      %s368 = sphi 0, %s368
      %s370 = sphi 0, %s368
      %s371 = sphi 0, %s370
      %s385 = sphi 0, %s371
      %s389 = sphi 0, %s389
      %s391 = sphi 0, %s389
      %s392 = sphi 0, %s391
      %s406 = sphi 0, %s392
      %s410 = sphi 0, %s410
      %s412 = sphi 0, %s410
      %s413 = sphi 0, %s412
      %s427 = sphi 0, %s413
      %s433 = sphi 0, %s435
      %s436 = sphi 0, %s433
      %s437 = sphi 0, %s436
      %s453 = sphi 0, %s437
      %s459 = sphi 0, %s461
      %s462 = sphi 0, %s459
      %s463 = sphi 0, %s462
      %s479 = sphi 0, %s463
      %s485 = sphi 0, %s487
      %s488 = sphi 0, %s485
      %s489 = sphi 0, %s488
      %s505 = sphi 0, %s489
    $region4: #{tpu_custom_call.1} parent=1 // loop_header_branch
      %38 = sbr.rel (%p36) target = $region8
    $region5: #{tpu_custom_call.1} parent=1 // loop_body
      %s40 = ssub.s32 %s35, 1
      %s41 = ssub.s32 %s35, 2
      %s42 = sadd.s32 %s35, 1
      %s43 = ssub.s32 %s35, %s42
      %p44 = scmp.eq.s32.totalorder %s43, 0
      %s46 = sadd.s32 %s45, 1
      %s47 = scalar_select %p44, %s45, %s46
      %p50 = pneg %p44
      %p51 = scmp.eq.s32.totalorder %s35, 3
      %p52 = por %p50, %p51
      %p53 = scmp.ne.s32.totalorder %s45, %s48
      %p54 = scmp.eq.s32.totalorder %s35, 0
      %p55 = por %p53, %p54
      %p56 = scmp.ne.s32.totalorder %s45, %s48
      %p57 = scmp.eq.s32.totalorder %s40, 3
      %p58 = por %p56, %p57
      %p59 = scmp.ne.s32.totalorder %s48, %s49
      %p60 = scmp.eq.s32.totalorder %s40, 0
      %p61 = por %p59, %p60
      %p62 = scmp.ne.s32.totalorder %s48, %s49
      %p63 = scmp.eq.s32.totalorder %s41, 3
      %p64 = por %p62, %p63
      %p66 = scmp.ne.s32.totalorder %s49, %s65
      %p67 = scmp.eq.s32.totalorder %s41, 0
      %p68 = por %p66, %p67
      %s69 = ssub.s32 %s35, %s42
      %p70 = scmp.eq.s32.totalorder %s69, 0
      %s72 = sadd.s32 %s71, 1
      %s73 = scalar_select %p70, %s71, %s72
      %p76 = pneg %p70
      %p77 = scmp.eq.s32.totalorder %s35, 3
      %p78 = por %p76, %p77
      %p79 = scmp.ne.s32.totalorder %s71, %s74
      %p80 = scmp.eq.s32.totalorder %s35, 0
      %p81 = por %p79, %p80
      %p82 = scmp.ne.s32.totalorder %s71, %s74
      %p83 = scmp.eq.s32.totalorder %s40, 3
      %p84 = por %p82, %p83
      %p85 = scmp.ne.s32.totalorder %s74, %s75
      %p86 = scmp.eq.s32.totalorder %s40, 0
      %p87 = por %p85, %p86
      %p88 = scmp.ne.s32.totalorder %s74, %s75
      %p89 = scmp.eq.s32.totalorder %s41, 3
      %p90 = por %p88, %p89
      %p92 = scmp.ne.s32.totalorder %s75, %s91
      %p93 = scmp.eq.s32.totalorder %s41, 0
      %p94 = por %p92, %p93
      %s96 = sadd.s32 %s95, 1
      %p99 = scmp.eq.s32.totalorder %s35, 3
      %p100 = scmp.ne.s32.totalorder %s95, %s97
      %p101 = scmp.eq.s32.totalorder %s35, 0
      %p102 = por %p100, %p101
      %p103 = scmp.ne.s32.totalorder %s95, %s97
      %p104 = scmp.eq.s32.totalorder %s40, 3
      %p105 = por %p103, %p104
      %p106 = scmp.ne.s32.totalorder %s97, %s98
      %p107 = scmp.eq.s32.totalorder %s40, 0
      %p108 = por %p106, %p107
      %p109 = scmp.ne.s32.totalorder %s97, %s98
      %p110 = scmp.eq.s32.totalorder %s41, 3
      %p111 = por %p109, %p110
      %p113 = scmp.ne.s32.totalorder %s98, %s112
      %p114 = scmp.eq.s32.totalorder %s41, 0
      %p115 = por %p113, %p114
      %s117 = sadd.s32 %s116, 1
      %p120 = scmp.eq.s32.totalorder %s35, 3
      %p121 = scmp.ne.s32.totalorder %s116, %s118
      %p122 = scmp.eq.s32.totalorder %s35, 0
      %p123 = por %p121, %p122
      %p124 = scmp.ne.s32.totalorder %s116, %s118
      %p125 = scmp.eq.s32.totalorder %s40, 3
      %p126 = por %p124, %p125
      %p127 = scmp.ne.s32.totalorder %s118, %s119
      %p128 = scmp.eq.s32.totalorder %s40, 0
      %p129 = por %p127, %p128
      %p130 = scmp.ne.s32.totalorder %s118, %s119
      %p131 = scmp.eq.s32.totalorder %s41, 3
      %p132 = por %p130, %p131
      %p134 = scmp.ne.s32.totalorder %s119, %s133
      %p135 = scmp.eq.s32.totalorder %s41, 0
      %p136 = por %p134, %p135
      %s138 = sadd.s32 %s137, 1
      %p141 = scmp.eq.s32.totalorder %s35, 3
      %p142 = scmp.ne.s32.totalorder %s137, %s139
      %p143 = scmp.eq.s32.totalorder %s35, 0
      %p144 = por %p142, %p143
      %p145 = scmp.ne.s32.totalorder %s137, %s139
      %p146 = scmp.eq.s32.totalorder %s40, 3
      %p147 = por %p145, %p146
      %p148 = scmp.ne.s32.totalorder %s139, %s140
      %p149 = scmp.eq.s32.totalorder %s40, 0
      %p150 = por %p148, %p149
      %p151 = scmp.ne.s32.totalorder %s139, %s140
      %p152 = scmp.eq.s32.totalorder %s41, 3
      %p153 = por %p151, %p152
      %p155 = scmp.ne.s32.totalorder %s140, %s154
      %p156 = scmp.eq.s32.totalorder %s41, 0
      %p157 = por %p155, %p156
      %s159 = sadd.s32 %s158, 1
      %p162 = scmp.eq.s32.totalorder %s35, 3
      %p163 = scmp.ne.s32.totalorder %s158, %s160
      %p164 = scmp.eq.s32.totalorder %s35, 0
      %p165 = por %p163, %p164
      %p166 = scmp.ne.s32.totalorder %s158, %s160
      %p167 = scmp.eq.s32.totalorder %s40, 3
      %p168 = por %p166, %p167
      %p169 = scmp.ne.s32.totalorder %s160, %s161
      %p170 = scmp.eq.s32.totalorder %s40, 0
      %p171 = por %p169, %p170
      %p172 = scmp.ne.s32.totalorder %s160, %s161
      %p173 = scmp.eq.s32.totalorder %s41, 3
      %p174 = por %p172, %p173
      %p176 = scmp.ne.s32.totalorder %s161, %s175
      %p177 = scmp.eq.s32.totalorder %s41, 0
      %p178 = por %p176, %p177
      %s180 = sadd.s32 %s179, 1
      %p183 = scmp.eq.s32.totalorder %s35, 3
      %p184 = scmp.ne.s32.totalorder %s179, %s181
      %p185 = scmp.eq.s32.totalorder %s35, 0
      %p186 = por %p184, %p185
      %p187 = scmp.ne.s32.totalorder %s179, %s181
      %p188 = scmp.eq.s32.totalorder %s40, 3
      %p189 = por %p187, %p188
      %p190 = scmp.ne.s32.totalorder %s181, %s182
      %p191 = scmp.eq.s32.totalorder %s40, 0
      %p192 = por %p190, %p191
      %p193 = scmp.ne.s32.totalorder %s181, %s182
      %p194 = scmp.eq.s32.totalorder %s41, 3
      %p195 = por %p193, %p194
      %p197 = scmp.ne.s32.totalorder %s182, %s196
      %p198 = scmp.eq.s32.totalorder %s41, 0
      %p199 = por %p197, %p198
      %s201 = sadd.s32 %s200, 1
      %p204 = scmp.eq.s32.totalorder %s35, 3
      %p205 = scmp.ne.s32.totalorder %s200, %s202
      %p206 = scmp.eq.s32.totalorder %s35, 0
      %p207 = por %p205, %p206
      %p208 = scmp.ne.s32.totalorder %s200, %s202
      %p209 = scmp.eq.s32.totalorder %s40, 3
      %p210 = por %p208, %p209
      %p211 = scmp.ne.s32.totalorder %s202, %s203
      %p212 = scmp.eq.s32.totalorder %s40, 0
      %p213 = por %p211, %p212
      %p214 = scmp.ne.s32.totalorder %s202, %s203
      %p215 = scmp.eq.s32.totalorder %s41, 3
      %p216 = por %p214, %p215
      %p218 = scmp.ne.s32.totalorder %s203, %s217
      %p219 = scmp.eq.s32.totalorder %s41, 0
      %p220 = por %p218, %p219
      %s222 = sadd.s32 %s221, 1
      %p225 = scmp.eq.s32.totalorder %s35, 3
      %p226 = scmp.ne.s32.totalorder %s221, %s223
      %p227 = scmp.eq.s32.totalorder %s35, 0
      %p228 = por %p226, %p227
      %p229 = scmp.ne.s32.totalorder %s221, %s223
      %p230 = scmp.eq.s32.totalorder %s40, 3
      %p231 = por %p229, %p230
      %p232 = scmp.ne.s32.totalorder %s223, %s224
      %p233 = scmp.eq.s32.totalorder %s40, 0
      %p234 = por %p232, %p233
      %p235 = scmp.ne.s32.totalorder %s223, %s224
      %p236 = scmp.eq.s32.totalorder %s41, 3
      %p237 = por %p235, %p236
      %p239 = scmp.ne.s32.totalorder %s224, %s238
      %p240 = scmp.eq.s32.totalorder %s41, 0
      %p241 = por %p239, %p240
      %s243 = sadd.s32 %s242, 1
      %p246 = scmp.eq.s32.totalorder %s35, 3
      %p247 = scmp.ne.s32.totalorder %s242, %s244
      %p248 = scmp.eq.s32.totalorder %s35, 0
      %p249 = por %p247, %p248
      %p250 = scmp.ne.s32.totalorder %s242, %s244
      %p251 = scmp.eq.s32.totalorder %s40, 3
      %p252 = por %p250, %p251
      %p253 = scmp.ne.s32.totalorder %s244, %s245
      %p254 = scmp.eq.s32.totalorder %s40, 0
      %p255 = por %p253, %p254
      %p256 = scmp.ne.s32.totalorder %s244, %s245
      %p257 = scmp.eq.s32.totalorder %s41, 3
      %p258 = por %p256, %p257
      %p260 = scmp.ne.s32.totalorder %s245, %s259
      %p261 = scmp.eq.s32.totalorder %s41, 0
      %p262 = por %p260, %p261
      %s264 = sadd.s32 %s263, 1
      %p267 = scmp.eq.s32.totalorder %s35, 3
      %p268 = scmp.ne.s32.totalorder %s263, %s265
      %p269 = scmp.eq.s32.totalorder %s35, 0
      %p270 = por %p268, %p269
      %p271 = scmp.ne.s32.totalorder %s263, %s265
      %p272 = scmp.eq.s32.totalorder %s40, 3
      %p273 = por %p271, %p272
      %p274 = scmp.ne.s32.totalorder %s265, %s266
      %p275 = scmp.eq.s32.totalorder %s40, 0
      %p276 = por %p274, %p275
      %p277 = scmp.ne.s32.totalorder %s265, %s266
      %p278 = scmp.eq.s32.totalorder %s41, 3
      %p279 = por %p277, %p278
      %p281 = scmp.ne.s32.totalorder %s266, %s280
      %p282 = scmp.eq.s32.totalorder %s41, 0
      %p283 = por %p281, %p282
      %s285 = sadd.s32 %s284, 1
      %p288 = scmp.eq.s32.totalorder %s35, 3
      %p289 = scmp.ne.s32.totalorder %s284, %s286
      %p290 = scmp.eq.s32.totalorder %s35, 0
      %p291 = por %p289, %p290
      %p292 = scmp.ne.s32.totalorder %s284, %s286
      %p293 = scmp.eq.s32.totalorder %s40, 3
      %p294 = por %p292, %p293
      %p295 = scmp.ne.s32.totalorder %s286, %s287
      %p296 = scmp.eq.s32.totalorder %s40, 0
      %p297 = por %p295, %p296
      %p298 = scmp.ne.s32.totalorder %s286, %s287
      %p299 = scmp.eq.s32.totalorder %s41, 3
      %p300 = por %p298, %p299
      %p302 = scmp.ne.s32.totalorder %s287, %s301
      %p303 = scmp.eq.s32.totalorder %s41, 0
      %p304 = por %p302, %p303
      %s306 = sadd.s32 %s305, 1
      %p309 = scmp.eq.s32.totalorder %s35, 3
      %p310 = scmp.ne.s32.totalorder %s305, %s307
      %p311 = scmp.eq.s32.totalorder %s35, 0
      %p312 = por %p310, %p311
      %p313 = scmp.ne.s32.totalorder %s305, %s307
      %p314 = scmp.eq.s32.totalorder %s40, 3
      %p315 = por %p313, %p314
      %p316 = scmp.ne.s32.totalorder %s307, %s308
      %p317 = scmp.eq.s32.totalorder %s40, 0
      %p318 = por %p316, %p317
      %p319 = scmp.ne.s32.totalorder %s307, %s308
      %p320 = scmp.eq.s32.totalorder %s41, 3
      %p321 = por %p319, %p320
      %p323 = scmp.ne.s32.totalorder %s308, %s322
      %p324 = scmp.eq.s32.totalorder %s41, 0
      %p325 = por %p323, %p324
      %s327 = sadd.s32 %s326, 1
      %p330 = scmp.eq.s32.totalorder %s35, 3
      %p331 = scmp.ne.s32.totalorder %s326, %s328
      %p332 = scmp.eq.s32.totalorder %s35, 0
      %p333 = por %p331, %p332
      %p334 = scmp.ne.s32.totalorder %s326, %s328
      %p335 = scmp.eq.s32.totalorder %s40, 3
      %p336 = por %p334, %p335
      %p337 = scmp.ne.s32.totalorder %s328, %s329
      %p338 = scmp.eq.s32.totalorder %s40, 0
      %p339 = por %p337, %p338
      %p340 = scmp.ne.s32.totalorder %s328, %s329
      %p341 = scmp.eq.s32.totalorder %s41, 3
      %p342 = por %p340, %p341
      %p344 = scmp.ne.s32.totalorder %s329, %s343
      %p345 = scmp.eq.s32.totalorder %s41, 0
      %p346 = por %p344, %p345
      %s348 = sadd.s32 %s347, 1
      %p351 = scmp.eq.s32.totalorder %s35, 3
      %p352 = scmp.ne.s32.totalorder %s347, %s349
      %p353 = scmp.eq.s32.totalorder %s35, 0
      %p354 = por %p352, %p353
      %p355 = scmp.ne.s32.totalorder %s347, %s349
      %p356 = scmp.eq.s32.totalorder %s40, 3
      %p357 = por %p355, %p356
      %p358 = scmp.ne.s32.totalorder %s349, %s350
      %p359 = scmp.eq.s32.totalorder %s40, 0
      %p360 = por %p358, %p359
      %p361 = scmp.ne.s32.totalorder %s349, %s350
      %p362 = scmp.eq.s32.totalorder %s41, 3
      %p363 = por %p361, %p362
      %p365 = scmp.ne.s32.totalorder %s350, %s364
      %p366 = scmp.eq.s32.totalorder %s41, 0
      %p367 = por %p365, %p366
      %s369 = sadd.s32 %s368, 1
      %p372 = scmp.eq.s32.totalorder %s35, 3
      %p373 = scmp.ne.s32.totalorder %s368, %s370
      %p374 = scmp.eq.s32.totalorder %s35, 0
      %p375 = por %p373, %p374
      %p376 = scmp.ne.s32.totalorder %s368, %s370
      %p377 = scmp.eq.s32.totalorder %s40, 3
      %p378 = por %p376, %p377
      %p379 = scmp.ne.s32.totalorder %s370, %s371
      %p380 = scmp.eq.s32.totalorder %s40, 0
      %p381 = por %p379, %p380
      %p382 = scmp.ne.s32.totalorder %s370, %s371
      %p383 = scmp.eq.s32.totalorder %s41, 3
      %p384 = por %p382, %p383
      %p386 = scmp.ne.s32.totalorder %s371, %s385
      %p387 = scmp.eq.s32.totalorder %s41, 0
      %p388 = por %p386, %p387
      %s390 = sadd.s32 %s389, 1
      %p393 = scmp.eq.s32.totalorder %s35, 3
      %p394 = scmp.ne.s32.totalorder %s389, %s391
      %p395 = scmp.eq.s32.totalorder %s35, 0
      %p396 = por %p394, %p395
      %p397 = scmp.ne.s32.totalorder %s389, %s391
      %p398 = scmp.eq.s32.totalorder %s40, 3
      %p399 = por %p397, %p398
      %p400 = scmp.ne.s32.totalorder %s391, %s392
      %p401 = scmp.eq.s32.totalorder %s40, 0
      %p402 = por %p400, %p401
      %p403 = scmp.ne.s32.totalorder %s391, %s392
      %p404 = scmp.eq.s32.totalorder %s41, 3
      %p405 = por %p403, %p404
      %p407 = scmp.ne.s32.totalorder %s392, %s406
      %p408 = scmp.eq.s32.totalorder %s41, 0
      %p409 = por %p407, %p408
      %s411 = sadd.s32 %s410, 1
      %p414 = scmp.eq.s32.totalorder %s35, 3
      %p415 = scmp.ne.s32.totalorder %s410, %s412
      %p416 = scmp.eq.s32.totalorder %s35, 0
      %p417 = por %p415, %p416
      %p418 = scmp.ne.s32.totalorder %s410, %s412
      %p419 = scmp.eq.s32.totalorder %s40, 3
      %p420 = por %p418, %p419
      %p421 = scmp.ne.s32.totalorder %s412, %s413
      %p422 = scmp.eq.s32.totalorder %s40, 0
      %p423 = por %p421, %p422
      %p424 = scmp.ne.s32.totalorder %s412, %s413
      %p425 = scmp.eq.s32.totalorder %s41, 3
      %p426 = por %p424, %p425
      %p428 = scmp.ne.s32.totalorder %s413, %s427
      %p429 = scmp.eq.s32.totalorder %s41, 0
      %p430 = por %p428, %p429
      %s431 = ssub.s32 %s35, %s42
      %p432 = scmp.eq.s32.totalorder %s431, 0
      %s434 = sadd.s32 %s433, 1
      %s435 = scalar_select %p432, %s433, %s434
      %p438 = pneg %p432
      %p439 = scmp.eq.s32.totalorder %s35, 3
      %p440 = por %p438, %p439
      %p441 = scmp.ne.s32.totalorder %s433, %s436
      %p442 = scmp.eq.s32.totalorder %s35, 0
      %p443 = por %p441, %p442
      %p444 = scmp.ne.s32.totalorder %s433, %s436
      %p445 = scmp.eq.s32.totalorder %s40, 3
      %p446 = por %p444, %p445
      %p447 = scmp.ne.s32.totalorder %s436, %s437
      %p448 = scmp.eq.s32.totalorder %s40, 0
      %p449 = por %p447, %p448
      %p450 = scmp.ne.s32.totalorder %s436, %s437
      %p451 = scmp.eq.s32.totalorder %s41, 3
      %p452 = por %p450, %p451
      %p454 = scmp.ne.s32.totalorder %s437, %s453
      %p455 = scmp.eq.s32.totalorder %s41, 0
      %p456 = por %p454, %p455
      %s457 = ssub.s32 %s35, %s42
      %p458 = scmp.eq.s32.totalorder %s457, 0
      %s460 = sadd.s32 %s459, 1
      %s461 = scalar_select %p458, %s459, %s460
      %p464 = pneg %p458
      %p465 = scmp.eq.s32.totalorder %s35, 3
      %p466 = por %p464, %p465
      %p467 = scmp.ne.s32.totalorder %s459, %s462
      %p468 = scmp.eq.s32.totalorder %s35, 0
      %p469 = por %p467, %p468
      %p470 = scmp.ne.s32.totalorder %s459, %s462
      %p471 = scmp.eq.s32.totalorder %s40, 3
      %p472 = por %p470, %p471
      %p473 = scmp.ne.s32.totalorder %s462, %s463
      %p474 = scmp.eq.s32.totalorder %s40, 0
      %p475 = por %p473, %p474
      %p476 = scmp.ne.s32.totalorder %s462, %s463
      %p477 = scmp.eq.s32.totalorder %s41, 3
      %p478 = por %p476, %p477
      %p480 = scmp.ne.s32.totalorder %s463, %s479
      %p481 = scmp.eq.s32.totalorder %s41, 0
      %p482 = por %p480, %p481
      %s483 = ssub.s32 %s35, %s42
      %p484 = scmp.eq.s32.totalorder %s483, 0
      %s486 = sadd.s32 %s485, 1
      %s487 = scalar_select %p484, %s485, %s486
      %p490 = pneg %p484
      %p491 = scmp.eq.s32.totalorder %s35, 3
      %p492 = por %p490, %p491
      %p493 = scmp.ne.s32.totalorder %s485, %s488
      %p494 = scmp.eq.s32.totalorder %s35, 0
      %p495 = por %p493, %p494
      %p496 = scmp.ne.s32.totalorder %s485, %s488
      %p497 = scmp.eq.s32.totalorder %s40, 3
      %p498 = por %p496, %p497
      %p499 = scmp.ne.s32.totalorder %s488, %s489
      %p500 = scmp.eq.s32.totalorder %s40, 0
      %p501 = por %p499, %p500
      %p502 = scmp.ne.s32.totalorder %s488, %s489
      %p503 = scmp.eq.s32.totalorder %s41, 3
      %p504 = por %p502, %p503
      %p506 = scmp.ne.s32.totalorder %s489, %s505
      %p507 = scmp.eq.s32.totalorder %s41, 0
      %p508 = por %p506, %p507
      %p509 = scmp.le.s32.totalorder 1, %s35
      %p510 = scmp.lt.s32.totalorder %s35, 5
      %p511 = pnand %p509, %p510
      %p512 = pneg %p511
      // Predicated region
      $region9: #{tpu_custom_call.1} parent=5 // pred_check
        _
      $region10: #{tpu_custom_call.1} parent=5 // pred_check_branch
        %514 = sbr.rel (%p511) target = $region12
      $region11: #{tpu_custom_call.1} parent=5 // pred_region
        %s515 = ssub.s32 %s35, 1
        // Predicated region
        $region13: #{tpu_custom_call.1} parent=11 // pred_check
          %p516 = pneg %p108
        $region14: #{tpu_custom_call.1} parent=11 // pred_check_branch
          %518 = sbr.rel (%p516) target = $region16
        $region15: #{tpu_custom_call.1} parent=11 // pred_region
          _
        $region16: #{tpu_custom_call.1} parent=11 // pred_fallthru
          _
        // Predicated region
        $region17: #{tpu_custom_call.1} parent=11 // pred_check
          %p519 = pneg %p129
        $region18: #{tpu_custom_call.1} parent=11 // pred_check_branch
          %521 = sbr.rel (%p519) target = $region20
        $region19: #{tpu_custom_call.1} parent=11 // pred_region
          %s523 = ssub.s32 16, 16
          %524 = vsyncadd [#allocation3], %s523
          %s526 = sshll.u32 [#allocation2], 4
          %s527 = int_to_ptr.vmem [resolvable:$true] %s526
          %529 = dma.hbm_to_vmem [thread:$0]  %s3, 16, %s527, [#allocation3]
        $region20: #{tpu_custom_call.1} parent=11 // pred_fallthru
          _
        // Predicated region
        $region21: #{tpu_custom_call.1} parent=11 // pred_check
          %p530 = pneg %p150
        $region22: #{tpu_custom_call.1} parent=11 // pred_check_branch
          %532 = sbr.rel (%p530) target = $region24
        $region23: #{tpu_custom_call.1} parent=11 // pred_region
          _
        $region24: #{tpu_custom_call.1} parent=11 // pred_fallthru
          _
        // Predicated region
        $region25: #{tpu_custom_call.1} parent=11 // pred_check
          %p533 = pneg %p171
        $region26: #{tpu_custom_call.1} parent=11 // pred_check_branch
          %535 = sbr.rel (%p533) target = $region28
        $region27: #{tpu_custom_call.1} parent=11 // pred_region
          _
        $region28: #{tpu_custom_call.1} parent=11 // pred_fallthru
          _
        // Predicated region
        $region29: #{tpu_custom_call.1} parent=11 // pred_check
          %p536 = pneg %p192
        $region30: #{tpu_custom_call.1} parent=11 // pred_check_branch
          %538 = sbr.rel (%p536) target = $region32
        $region31: #{tpu_custom_call.1} parent=11 // pred_region
          %s540 = ssub.s32 32, 32
          %541 = vsyncadd [#allocation6], %s540
          %s542 = sshll.u32 [#allocation5], 4
          %s543 = int_to_ptr.vmem [resolvable:$true] %s542
          %548 = dma.hbm_to_vmem [thread:$0]  %s6, 32, %s543, [#allocation6], 16, 16, 1
        $region32: #{tpu_custom_call.1} parent=11 // pred_fallthru
          _
        // Predicated region
        $region33: #{tpu_custom_call.1} parent=11 // pred_check
          %p549 = pneg %p213
        $region34: #{tpu_custom_call.1} parent=11 // pred_check_branch
          %551 = sbr.rel (%p549) target = $region36
        $region35: #{tpu_custom_call.1} parent=11 // pred_region
          _
        $region36: #{tpu_custom_call.1} parent=11 // pred_fallthru
          _
        // Predicated region
        $region37: #{tpu_custom_call.1} parent=11 // pred_check
          %p552 = pneg %p234
        $region38: #{tpu_custom_call.1} parent=11 // pred_check_branch
          %554 = sbr.rel (%p552) target = $region40
        $region39: #{tpu_custom_call.1} parent=11 // pred_region
          _
        $region40: #{tpu_custom_call.1} parent=11 // pred_fallthru
          _
        // Predicated region
        $region41: #{tpu_custom_call.1} parent=11 // pred_check
          %p555 = pneg %p255
        $region42: #{tpu_custom_call.1} parent=11 // pred_check_branch
          %557 = sbr.rel (%p555) target = $region44
        $region43: #{tpu_custom_call.1} parent=11 // pred_region
          _
        $region44: #{tpu_custom_call.1} parent=11 // pred_fallthru
          _
        // Predicated region
        $region45: #{tpu_custom_call.1} parent=11 // pred_check
          %p558 = pneg %p276
        $region46: #{tpu_custom_call.1} parent=11 // pred_check_branch
          %560 = sbr.rel (%p558) target = $region48
        $region47: #{tpu_custom_call.1} parent=11 // pred_region
          _
        $region48: #{tpu_custom_call.1} parent=11 // pred_fallthru
          _
        // Predicated region
        $region49: #{tpu_custom_call.1} parent=11 // pred_check
          %p561 = pneg %p297
        $region50: #{tpu_custom_call.1} parent=11 // pred_check_branch
          %563 = sbr.rel (%p561) target = $region52
        $region51: #{tpu_custom_call.1} parent=11 // pred_region
          _
        $region52: #{tpu_custom_call.1} parent=11 // pred_fallthru
          _
        // Predicated region
        $region53: #{tpu_custom_call.1} parent=11 // pred_check
          %p564 = pneg %p318
        $region54: #{tpu_custom_call.1} parent=11 // pred_check_branch
          %566 = sbr.rel (%p564) target = $region56
        $region55: #{tpu_custom_call.1} parent=11 // pred_region
          _
        $region56: #{tpu_custom_call.1} parent=11 // pred_fallthru
          _
        // Predicated region
        $region57: #{tpu_custom_call.1} parent=11 // pred_check
          %p567 = pneg %p339
        $region58: #{tpu_custom_call.1} parent=11 // pred_check_branch
          %569 = sbr.rel (%p567) target = $region60
        $region59: #{tpu_custom_call.1} parent=11 // pred_region
          _
        $region60: #{tpu_custom_call.1} parent=11 // pred_fallthru
          _
        // Predicated region
        $region61: #{tpu_custom_call.1} parent=11 // pred_check
          %p570 = pneg %p360
        $region62: #{tpu_custom_call.1} parent=11 // pred_check_branch
          %572 = sbr.rel (%p570) target = $region64
        $region63: #{tpu_custom_call.1} parent=11 // pred_region
          _
        $region64: #{tpu_custom_call.1} parent=11 // pred_fallthru
          _
        // Predicated region
        $region65: #{tpu_custom_call.1} parent=11 // pred_check
          %p573 = pneg %p381
        $region66: #{tpu_custom_call.1} parent=11 // pred_check_branch
          %575 = sbr.rel (%p573) target = $region68
        $region67: #{tpu_custom_call.1} parent=11 // pred_region
          _
        $region68: #{tpu_custom_call.1} parent=11 // pred_fallthru
          _
        // Predicated region
        $region69: #{tpu_custom_call.1} parent=11 // pred_check
          %p576 = pneg %p402
        $region70: #{tpu_custom_call.1} parent=11 // pred_check_branch
          %578 = sbr.rel (%p576) target = $region72
        $region71: #{tpu_custom_call.1} parent=11 // pred_region
          _
        $region72: #{tpu_custom_call.1} parent=11 // pred_fallthru
          _
        // Predicated region
        $region73: #{tpu_custom_call.1} parent=11 // pred_check
          %p579 = pneg %p423
        $region74: #{tpu_custom_call.1} parent=11 // pred_check_branch
          %581 = sbr.rel (%p579) target = $region76
        $region75: #{tpu_custom_call.1} parent=11 // pred_region
          _
        $region76: #{tpu_custom_call.1} parent=11 // pred_fallthru
          _
      $region12: #{tpu_custom_call.1} parent=5 // pred_fallthru
        _
      %p582 = scmp.lt.s32.totalorder %s35, 4
      // Predicated region
      $region77: #{tpu_custom_call.1} parent=5 // pred_check
        %p583 = pneg %p582
      $region78: #{tpu_custom_call.1} parent=5 // pred_check_branch
        %585 = sbr.rel (%p583) target = $region80
      $region79: #{tpu_custom_call.1} parent=5 // pred_region
        // Predicated region
        $region81: #{tpu_custom_call.1} parent=79 // pred_check
          %p586 = pneg %p55
        $region82: #{tpu_custom_call.1} parent=79 // pred_check_branch
          %588 = sbr.rel (%p586) target = $region84
        $region83: #{tpu_custom_call.1} parent=79 // pred_region
          %s589 = smul.u32 2, %s35
          %p590 = scmp.lt.s32.totalorder %s589, 7
          %s591 = scalar_select %p590, %s589, 7
          %s592 = smul.addr %s591, 8
          %s593 = scalar_lea.vmem %s0, %s592
          %s594 = smul.u32 2, %s35
        $region84: #{tpu_custom_call.1} parent=79 // pred_fallthru
          _
        // Predicated region
        $region85: #{tpu_custom_call.1} parent=79 // pred_check
          %p595 = pneg %p81
        $region86: #{tpu_custom_call.1} parent=79 // pred_check_branch
          %597 = sbr.rel (%p595) target = $region88
        $region87: #{tpu_custom_call.1} parent=79 // pred_region
          %s598 = smul.u32 2, %s35
          %p599 = scmp.lt.s32.totalorder %s598, 7
          %s600 = scalar_select %p599, %s598, 7
          %s601 = scalar_lea.vmem %s1, %s600
          %s602 = smul.u32 2, %s35
        $region88: #{tpu_custom_call.1} parent=79 // pred_fallthru
          _
      $region80: #{tpu_custom_call.1} parent=5 // pred_fallthru
        _
      %p603 = scmp.le.s32.totalorder 1, %s35
      %p604 = scmp.lt.s32.totalorder %s35, 5
      %p605 = pnand %p603, %p604
      %p606 = pneg %p605
      // Predicated region
      $region89: #{tpu_custom_call.1} parent=5 // pred_check
        _
      $region90: #{tpu_custom_call.1} parent=5 // pred_check_branch
        %608 = sbr.rel (%p605) target = $region92
      $region91: #{tpu_custom_call.1} parent=5 // pred_region
        %s609 = ssub.s32 %s35, 1
        // Predicated region
        $region93: #{tpu_custom_call.1} parent=91 // pred_check
          %p610 = pneg %p129
        $region94: #{tpu_custom_call.1} parent=91 // pred_check_branch
          %612 = sbr.rel (%p610) target = $region96
        $region95: #{tpu_custom_call.1} parent=91 // pred_region
          %613 = dma.done [#allocation3], 16
        $region96: #{tpu_custom_call.1} parent=91 // pred_fallthru
          _
        // Predicated region
        $region97: #{tpu_custom_call.1} parent=91 // pred_check
          %p614 = pneg %p192
        $region98: #{tpu_custom_call.1} parent=91 // pred_check_branch
          %616 = sbr.rel (%p614) target = $region100
        $region99: #{tpu_custom_call.1} parent=91 // pred_region
          %617 = dma.done [#allocation6], 32
        $region100: #{tpu_custom_call.1} parent=91 // pred_fallthru
          _
        %s618 = smul.u32 2, %s40
        %p619 = scmp.lt.s32.totalorder %s618, 7
        %s620 = scalar_select %p619, %s618, 7
        %s621 = smul.addr %s620, 8
        %s622 = scalar_lea.vmem %s0, %s621
        %p623 = pneg %p61
        %p624 = pneg %p58
        %s625 = smul.u32 2, %s40
        %p626 = scmp.lt.s32.totalorder %s625, 7
        %s627 = scalar_select %p626, %s625, 7
        %s628 = scalar_lea.vmem %s1, %s627
        %p629 = pneg %p87
        %p630 = pneg %p84
        %p631 = pneg %p108
        %p632 = pneg %p105
        %p633 = pneg %p129
        %p634 = pneg %p126
        %p635 = pneg %p150
        %p636 = pneg %p147
        %p637 = pneg %p171
        %p638 = pneg %p168
        %p639 = pneg %p192
        %p640 = pneg %p189
        %p641 = pneg %p213
        %p642 = pneg %p210
        %p643 = pneg %p234
        %p644 = pneg %p231
        %p645 = pneg %p255
        %p646 = pneg %p252
        %p647 = pneg %p276
        %p648 = pneg %p273
        %p649 = pneg %p297
        %p650 = pneg %p294
        %p651 = pneg %p318
        %p652 = pneg %p315
        %p653 = pneg %p339
        %p654 = pneg %p336
        %p655 = pneg %p360
        %p656 = pneg %p357
        %p657 = pneg %p381
        %p658 = pneg %p378
        %p659 = pneg %p402
        %p660 = pneg %p399
        %p661 = pneg %p423
        %p662 = pneg %p420
        %p663 = pneg %p449
        %p664 = pneg %p446
        %s665 = sand.u32 %s436, 1
        %s666 = scalar_lea.sflag [#allocation4], %s665
        %s667 = sand.u32 %s436, 1
        %s668 = smul.addr %s667, 16
        %s669 = scalar_lea.vmem [#allocation7], %s668
        %p670 = pneg %p475
        %p671 = pneg %p472
        %s672 = sand.u32 %s40, 1
        %s673 = scalar_lea.sflag [#allocation9], %s672
        %s674 = sand.u32 %s462, 1
        %s675 = smul.addr %s674, 16
        %s676 = scalar_lea.vmem [#allocation8], %s675
        %p677 = pneg %p501
        %p678 = pneg %p498
        %s679 = sand.u32 %s40, 1
        %s680 = scalar_lea.sflag [#allocation9], %s679
        %s681 = sand.u32 %s488, 1
        %s682 = smul.addr %s681, 16
        %s683 = scalar_lea.vmem [#allocation10], %s682
        %s684 = smul.u32 2, %s40
        %p685 = scmp.lt.s32.totalorder %s684, 7
        %s686 = scalar_select %p685, %s684, 7
        %s687 = smul.addr %s686, 8
        %s688 = scalar_lea.vmem %s0, %s687
        %s689 = smul.u32 2, %s40
        %s690 = smul.u32 2, %s40
        %p691 = scmp.lt.s32.totalorder %s690, 7
        %s692 = scalar_select %p691, %s690, 7
        %s693 = scalar_lea.vmem %s1, %s692
        %s694 = smul.u32 2, %s40
        %s695 = smul.u32 2, %s40
        %s696 = smul.u32 2, %s40
        %s697 = smul.u32 2, %s40
        %v699 = vld [vmem:[%s688] sm:$0xff]
        %v700 = vld [vmem:[%s688 + $0x8] sm:$0xff]
        %v701 = vld [vmem:[%s2] sm:$0xff]
        %v702 = vld [vmem:[%s2 + $0x8] sm:$0xff]
        %v703 = vld [vmem:[%s2 + $0x10] sm:$0xff]
        %v704 = vld [vmem:[%s2 + $0x18] sm:$0xff]
        %v705 = vld [vmem:[#allocation2] sm:$0x1]
        %v707 = vlaneseq
        %v708 = vshrl.u32 %v707, 7
        %v709 = vsub.s32 0, %v708
        %v710 = vrot.slane %v705, %v709
        %vm712 = vcmask 261120
        %v714 = vsel %vm712, %v699, 0
        %v717 = vsel %vm712, %v700, 0
        %719 = vmatprep.subr.mxu0 0.0
        %720 = vmatpush1.msra.mxu0 0.0
        %721 = vmatprep.subr.mxu0 0.0
        %722 = vmatpush1.msra.mxu0 0.0
        %723 = vmatprep.subr.mxu0 0.0
        %724 = vmatpush1.msra.mxu0 0.0
        %725 = vmatprep.subr.mxu0 0.0
        %726 = vmatpush1.msra.mxu0 0.0
        %727 = vmatprep.subr.mxu0 0.0
        %728 = vmatpush1.msra.mxu0 0.0
        %729 = vmatprep.subr.mxu0 0.0
        %730 = vmatpush1.msra.mxu0 0.0
        %731 = vmatprep.subr.mxu0 0.0
        %732 = vmatpush1.msra.mxu0 0.0
        %733 = vmatprep.subr.mxu0 0.0
        %734 = vmatpush1.msra.mxu0 0.0
        %735 = vmatprep.subr.mxu0 0.0
        %736 = vmatpush1.msra.mxu0 0.0
        %737 = vmatprep.subr.mxu0 0.0
        %738 = vmatpush1.msra.mxu0 0.0
        %739 = vmatprep.subr.mxu0 0.0
        %740 = vmatpush1.msra.mxu0 0.0
        %741 = vmatprep.subr.mxu0 0.0
        %742 = vmatpush1.msra.mxu0 0.0
        %743 = vmatprep.subr.mxu0 0.0
        %744 = vmatpush1.msra.mxu0 %v704
        %745 = vmatprep.subr.mxu0 0.0
        %746 = vmatpush1.msra.mxu0 %v703
        %747 = vmatprep.subr.mxu0 0.0
        %748 = vmatpush1.msra.mxu0 %v702
        %749 = vmatprep.subr.mxu0 0.0
        %750 = vmatpush1.msra.mxu0 %v701
        %751 = vmatprep.subr.mxu0 0.0
        %752 = vmatpush2.msra.mxu0 0.0
        %753 = vmatprep.subr.mxu0 0.0
        %754 = vmatpush2.msra.mxu0 0.0
        %755 = vmatprep.subr.mxu0 0.0
        %756 = vmatpush2.msra.mxu0 0.0
        %757 = vmatprep.subr.mxu0 0.0
        %758 = vmatpush2.msra.mxu0 0.0
        %759 = vmatprep.subr.mxu0 0.0
        %760 = vmatpush2.msra.mxu0 0.0
        %761 = vmatprep.subr.mxu0 0.0
        %762 = vmatpush2.msra.mxu0 0.0
        %763 = vmatprep.subr.mxu0 0.0
        %764 = vmatpush2.msra.mxu0 0.0
        %765 = vmatprep.subr.mxu0 0.0
        %766 = vmatpush2.msra.mxu0 0.0
        %767 = vmatprep.subr.mxu0 0.0
        %768 = vmatpush2.msra.mxu0 0.0
        %769 = vmatprep.subr.mxu0 0.0
        %770 = vmatpush2.msra.mxu0 0.0
        %771 = vmatprep.subr.mxu0 0.0
        %772 = vmatpush2.msra.mxu0 0.0
        %773 = vmatprep.subr.mxu0 0.0
        %774 = vmatpush2.msra.mxu0 0.0
        %775 = vmatprep.subr.mxu0 0.0
        %776 = vmatpush2.msra.mxu0 0.0
        %777 = vmatprep.subr.mxu0 0.0
        %778 = vmatpush2.msra.mxu0 0.0
        %779 = vmatprep.subr.mxu0 0.0
        %780 = vmatpush2.msra.mxu0 0.0
        %781 = vmatprep.subr.mxu0 0.0
        %782 = vmatpush2.msra.mxu0 0.0
        %783 = vmatprep.mubr.f32.mxu0 0.0
        %784 = vmatmul.mubr.f32.gmra.mxu0 %v714
        %v785 = vpop.f32.mrf.mxu0
        %v786 = vadd.f32 %v710, %v785
        %v787 = vpop.f32.mrf.mxu0
        %788 = vmatprep.mubr.f32.mxu0 0.0
        %789 = vmatmul.mubr.f32.gmra.mxu0 %v717
        %v790 = vpop.f32.mrf.mxu0
        %v791 = vadd.f32 %v710, %v790
        %v792 = vpop.f32.mrf.mxu0
        %793 = vdwg.mxu0
        %794 = vmax.xlane.f32.xlu0 %v786
        %v795 = vpop.xlane.xlu0 %794
        %796 = vmax.xlane.f32.xlu0 %v791
        %v797 = vpop.xlane.xlu0 %796
        %v798 = vsub.f32 %v786, %v795
        %v799 = vsub.f32 %v791, %v797
        %v800 = vmul.f32 %v798, 1.442695
        %v801 = vpow.pop %v800
        %v802 = vmul.f32 %v799, 1.442695
        %v803 = vpow.pop %v802
        %804 = vadd.xlane.f32.xlu0 %v801
        %v805 = vpop.xlane.xlu0 %804
        %806 = vadd.xlane.f32.xlu0 %v803
        %v807 = vpop.xlane.xlu0 %806
        %v808 = vrcp.pop %v805
        %v809 = vmul.f32 %v801, %v808
        %v810 = vrcp.pop %v807
        %v811 = vmul.f32 %v803, %v810
        %812 = vst [vmem:[%s669] sm:$0xff] %v809
        %813 = vst [vmem:[%s669 + $0x8] sm:$0xff] %v811
        %v814 = vlaneseq
        %v815 = vand.u32 %v814, 127
        %vm816 = vcmp.eq.f32.partialorder %v786, %v795
        %vm817 = vcmp.eq.f32.partialorder %v791, %v797
        %v818 = vsel %vm816, %v815, 128
        %v819 = vsel %vm817, %v815, 128
        %v820 = vand.u32 %v818, 65535
        %v821 = vshra.s32 %v818, 16
        %v822 = vcvt.s32.f32 %v820
        %v823 = vcvt.s32.f32 %v821
        %824 = vmin.xlane.f32.xlu0 %v823
        %v825 = vpop.xlane.xlu0 %824
        %vm826 = vcmp.eq.f32.partialorder %v823, %v825
        %v827 = vsel %vm826, %v822, inf
        %828 = vmin.xlane.f32.xlu0 %v827
        %v829 = vpop.xlane.xlu0 %828
        %v830 = vcvt.f32.s32 %v829
        %v831 = vcvt.f32.s32 %v825
        %v832 = vshll.u32 %v831, 16
        %v833 = vadd.s32 %v832, %v830
        %v834 = vand.u32 %v819, 65535
        %v835 = vshra.s32 %v819, 16
        %v836 = vcvt.s32.f32 %v834
        %v837 = vcvt.s32.f32 %v835
        %838 = vmin.xlane.f32.xlu0 %v837
        %v839 = vpop.xlane.xlu0 %838
        %vm840 = vcmp.eq.f32.partialorder %v837, %v839
        %v841 = vsel %vm840, %v836, inf
        %842 = vmin.xlane.f32.xlu0 %v841
        %v843 = vpop.xlane.xlu0 %842
        %v844 = vcvt.f32.s32 %v843
        %v845 = vcvt.f32.s32 %v839
        %v846 = vshll.u32 %v845, 16
        %v847 = vadd.s32 %v846, %v844
        %vm848 = vcmp.eq.s32.totalorder %v815, %v833
        %vm849 = vcmp.eq.s32.totalorder %v815, %v847
        %v850 = vsel %vm848, 1, 0
        %v851 = vsel %vm849, 1, 0
        %v852 = vcvt.s32.f32 %v850
        %v853 = vcvt.s32.f32 %v851
        %v854 = vpack.c.bf16 %v853, %v852
        %v855 = vld [vmem:[%s4] sm:$0xf]
        %v856 = vld [vmem:[%s4 + $0x4] sm:$0xf]
        %v857 = vld [vmem:[%s4 + $0x8] sm:$0xf]
        %v858 = vld [vmem:[%s4 + $0xc] sm:$0xf]
        %v859 = vld [vmem:[%s4 + $0x10] sm:$0xf]
        %v860 = vld [vmem:[%s4 + $0x14] sm:$0xf]
        %v861 = vld [vmem:[%s4 + $0x18] sm:$0xf]
        %v862 = vld [vmem:[%s4 + $0x1c] sm:$0xf]
        %v863 = vld [vmem:[%s4 + $0x20] sm:$0xf]
        %v864 = vld [vmem:[%s4 + $0x24] sm:$0xf]
        %v865 = vld [vmem:[%s4 + $0x28] sm:$0xf]
        %v866 = vld [vmem:[%s4 + $0x2c] sm:$0xf]
        %v867 = vld [vmem:[%s4 + $0x30] sm:$0xf]
        %v868 = vld [vmem:[%s4 + $0x34] sm:$0xf]
        %v869 = vld [vmem:[%s4 + $0x38] sm:$0xf]
        %v870 = vld [vmem:[%s4 + $0x3c] sm:$0xf]
        %v887 = vunpack.c.l.b16 %v855
        %v888 = vunpack.c.l.b16 %v856
        %v889 = vunpack.c.l.b16 %v857
        %v890 = vunpack.c.l.b16 %v858
        %v891 = vunpack.c.l.b16 %v859
        %v892 = vunpack.c.l.b16 %v860
        %v893 = vunpack.c.l.b16 %v861
        %v894 = vunpack.c.l.b16 %v862
        %v895 = vunpack.c.l.b16 %v863
        %v896 = vunpack.c.l.b16 %v864
        %v897 = vunpack.c.l.b16 %v865
        %v898 = vunpack.c.l.b16 %v866
        %v899 = vunpack.c.l.b16 %v867
        %v900 = vunpack.c.l.b16 %v868
        %v901 = vunpack.c.l.b16 %v869
        %v902 = vunpack.c.l.b16 %v870
        %v903 = vpack.c.b16 %v888, %v887
        %v904 = vpack.c.b16 %v890, %v889
        %v905 = vpack.c.b16 %v892, %v891
        %v906 = vpack.c.b16 %v894, %v893
        %v907 = vpack.c.b16 %v896, %v895
        %v908 = vpack.c.b16 %v898, %v897
        %v909 = vpack.c.b16 %v900, %v899
        %v910 = vpack.c.b16 %v902, %v901
        %919 = vmatprep.subr.bf16.mxu0 0
        %920 = vmatpush1.bf16.msra.mxu0 %v910
        %921 = vmatprep.subr.bf16.mxu0 0
        %922 = vmatpush1.bf16.msra.mxu0 %v909
        %923 = vmatprep.subr.bf16.mxu0 0
        %924 = vmatpush1.bf16.msra.mxu0 %v908
        %925 = vmatprep.subr.bf16.mxu0 0
        %926 = vmatpush1.bf16.msra.mxu0 %v907
        %927 = vmatprep.subr.bf16.mxu0 0
        %928 = vmatpush1.bf16.msra.mxu0 %v906
        %929 = vmatprep.subr.bf16.mxu0 0
        %930 = vmatpush1.bf16.msra.mxu0 %v905
        %931 = vmatprep.subr.bf16.mxu0 0
        %932 = vmatpush1.bf16.msra.mxu0 %v904
        %933 = vmatprep.subr.bf16.mxu0 0
        %934 = vmatpush1.bf16.msra.mxu0 %v903
        %935 = vmatprep.subr.bf16.mxu0 0
        %936 = vmatpush2.bf16.msra.mxu0 0
        %937 = vmatprep.subr.bf16.mxu0 0
        %938 = vmatpush2.bf16.msra.mxu0 0
        %939 = vmatprep.subr.bf16.mxu0 0
        %940 = vmatpush2.bf16.msra.mxu0 0
        %941 = vmatprep.subr.bf16.mxu0 0
        %942 = vmatpush2.bf16.msra.mxu0 0
        %943 = vmatprep.subr.bf16.mxu0 0
        %944 = vmatpush2.bf16.msra.mxu0 0
        %945 = vmatprep.subr.bf16.mxu0 0
        %946 = vmatpush2.bf16.msra.mxu0 0
        %947 = vmatprep.subr.bf16.mxu0 0
        %948 = vmatpush2.bf16.msra.mxu0 0
        %949 = vmatprep.subr.bf16.mxu0 0
        %950 = vmatpush2.bf16.msra.mxu0 0
        %951 = vmatprep.mubr.bf16.mxu0 0
        %952 = vmatmul.mubr.bf16.gmra.mxu0 %v854
        %v953 = vpop.f32.mrf.mxu0
        %v954 = vadd.f32 0.0, %v953
        %v955 = vpop.f32.mrf.mxu0
        %v956 = vpop.f32.mrf.mxu0
        %v957 = vadd.f32 0.0, %v956
        %v958 = vpop.f32.mrf.mxu0
        %959 = vdwg.mxu0
        %v960 = vld [vmem:[%s693] sm:$0x1]
        %v961 = vld [vmem:[%s693 + $0x1] sm:$0x1]
        %v964 = vlaneseq
        %v965 = vshrl.u32 %v964, 7
        %v966 = vsub.s32 0, %v965
        %v967 = vrot.slane %v960, %v966
        %v968 = vlaneseq
        %v969 = vshrl.u32 %v968, 7
        %v970 = vsub.s32 0, %v969
        %v971 = vrot.slane %v961, %v970
        %v974 = vadd.f32 %v954, %v967
        %v975 = vadd.f32 %v957, %v971
        %v976 = vpack.c.bf16 %v975, %v974
        %v977 = vld [vmem:[%s5] sm:$0xf]
        %v978 = vld [vmem:[%s5 + $0x4] sm:$0xf]
        %v979 = vld [vmem:[%s5 + $0x8] sm:$0xf]
        %v980 = vld [vmem:[%s5 + $0xc] sm:$0xf]
        %v981 = vld [vmem:[#allocation5] sm:$0x1]
        %v983 = vlaneseq
        %v984 = vshrl.u32 %v983, 7
        %v985 = vsub.s32 0, %v984
        %v986 = vrot.slane %v981, %v985
        %v992 = vunpack.c.l.b16 %v977
        %v993 = vunpack.c.l.b16 %v978
        %v994 = vunpack.c.l.b16 %v979
        %v995 = vunpack.c.l.b16 %v980
        %v996 = vpack.c.b16 %v993, %v992
        %v997 = vpack.c.b16 %v995, %v994
        %v1001 = vsel %vm712, %v976, 0
        %1003 = vmatprep.subr.bf16.mxu0 0
        %1004 = vmatpush1.bf16.msra.mxu0 0
        %1005 = vmatprep.subr.bf16.mxu0 0
        %1006 = vmatpush1.bf16.msra.mxu0 0
        %1007 = vmatprep.subr.bf16.mxu0 0
        %1008 = vmatpush1.bf16.msra.mxu0 0
        %1009 = vmatprep.subr.bf16.mxu0 0
        %1010 = vmatpush1.bf16.msra.mxu0 0
        %1011 = vmatprep.subr.bf16.mxu0 0
        %1012 = vmatpush1.bf16.msra.mxu0 0
        %1013 = vmatprep.subr.bf16.mxu0 0
        %1014 = vmatpush1.bf16.msra.mxu0 0
        %1015 = vmatprep.subr.bf16.mxu0 0
        %1016 = vmatpush1.bf16.msra.mxu0 %v997
        %1017 = vmatprep.subr.bf16.mxu0 0
        %1018 = vmatpush1.bf16.msra.mxu0 %v996
        %1019 = vmatprep.subr.bf16.mxu0 0
        %1020 = vmatpush2.bf16.msra.mxu0 0
        %1021 = vmatprep.subr.bf16.mxu0 0
        %1022 = vmatpush2.bf16.msra.mxu0 0
        %1023 = vmatprep.subr.bf16.mxu0 0
        %1024 = vmatpush2.bf16.msra.mxu0 0
        %1025 = vmatprep.subr.bf16.mxu0 0
        %1026 = vmatpush2.bf16.msra.mxu0 0
        %1027 = vmatprep.subr.bf16.mxu0 0
        %1028 = vmatpush2.bf16.msra.mxu0 0
        %1029 = vmatprep.subr.bf16.mxu0 0
        %1030 = vmatpush2.bf16.msra.mxu0 0
        %1031 = vmatprep.subr.bf16.mxu0 0
        %1032 = vmatpush2.bf16.msra.mxu0 0
        %1033 = vmatprep.subr.bf16.mxu0 0
        %1034 = vmatpush2.bf16.msra.mxu0 0
        %1035 = vmatprep.mubr.bf16.mxu0 0
        %1036 = vmatmul.mubr.bf16.gmra.mxu0 %v1001
        %v1037 = vpop.f32.mrf.mxu0
        %v1038 = vadd.f32 %v986, %v1037
        %v1039 = vpop.f32.mrf.mxu0
        %v1040 = vpop.f32.mrf.mxu0
        %v1041 = vadd.f32 %v986, %v1040
        %v1042 = vpop.f32.mrf.mxu0
        %1043 = vdwg.mxu0
        %v1044 = vmul.f32 %v1038, 0.35355338
        %v1045 = vmul.f32 %v1041, 0.35355338
        %v1046 = vld [vmem:[%s7] sm:$0x3]
        %1048 = vrot.lane.b32.xlu0 %v1038, 96
        %v1049 = vpop.permute.xlu0 %1048
        %vm1050 = vcmask 64512
        %v1052 = vsel %vm1050, %v1044, 0
        %v1054 = vsel %vm1050, %v1049, 0
        %1056 = vmatprep.subr.mxu0 0.0
        %1057 = vmatpush1.xpose.msra.mxu0 0.0
        %1058 = vmatprep.subr.mxu0 0.0
        %1059 = vmatpush1.xpose.msra.mxu0 0.0
        %1060 = vmatprep.subr.mxu0 0.0
        %1061 = vmatpush1.xpose.msra.mxu0 0.0
        %1062 = vmatprep.subr.mxu0 0.0
        %1063 = vmatpush1.xpose.msra.mxu0 0.0
        %1064 = vmatprep.subr.mxu0 0.0
        %1065 = vmatpush1.xpose.msra.mxu0 0.0
        %1066 = vmatprep.subr.mxu0 0.0
        %1067 = vmatpush1.xpose.msra.mxu0 0.0
        %1068 = vmatprep.subr.mxu0 0.0
        %1069 = vmatpush1.xpose.msra.mxu0 0.0
        %1070 = vmatprep.subr.mxu0 0.0
        %1071 = vmatpush1.xpose.msra.mxu0 0.0
        %1072 = vmatprep.subr.mxu0 0.0
        %1073 = vmatpush1.xpose.msra.mxu0 0.0
        %1074 = vmatprep.subr.mxu0 0.0
        %1075 = vmatpush1.xpose.msra.mxu0 0.0
        %1076 = vmatprep.subr.mxu0 0.0
        %1077 = vmatpush1.xpose.msra.mxu0 0.0
        %1078 = vmatprep.subr.mxu0 0.0
        %1079 = vmatpush1.xpose.msra.mxu0 0.0
        %1080 = vmatprep.subr.mxu0 0.0
        %1081 = vmatpush1.xpose.msra.mxu0 0.0
        %1082 = vmatprep.subr.mxu0 0.0
        %1083 = vmatpush1.xpose.msra.mxu0 0.0
        %1084 = vmatprep.subr.mxu0 0.0
        %1085 = vmatpush1.xpose.msra.mxu0 0.0
        %1086 = vmatprep.subr.mxu0 0.0
        %1087 = vmatpush1.xpose.msra.mxu0 %v1054
        %1088 = vmatprep.subr.mxu0 0.0
        %1089 = vmatpush2.xpose.msra.mxu0 0.0
        %1090 = vmatprep.subr.mxu0 0.0
        %1091 = vmatpush2.xpose.msra.mxu0 0.0
        %1092 = vmatprep.subr.mxu0 0.0
        %1093 = vmatpush2.xpose.msra.mxu0 0.0
        %1094 = vmatprep.subr.mxu0 0.0
        %1095 = vmatpush2.xpose.msra.mxu0 0.0
        %1096 = vmatprep.subr.mxu0 0.0
        %1097 = vmatpush2.xpose.msra.mxu0 0.0
        %1098 = vmatprep.subr.mxu0 0.0
        %1099 = vmatpush2.xpose.msra.mxu0 0.0
        %1100 = vmatprep.subr.mxu0 0.0
        %1101 = vmatpush2.xpose.msra.mxu0 0.0
        %1102 = vmatprep.subr.mxu0 0.0
        %1103 = vmatpush2.xpose.msra.mxu0 0.0
        %1104 = vmatprep.subr.mxu0 0.0
        %1105 = vmatpush2.xpose.msra.mxu0 0.0
        %1106 = vmatprep.subr.mxu0 0.0
        %1107 = vmatpush2.xpose.msra.mxu0 0.0
        %1108 = vmatprep.subr.mxu0 0.0
        %1109 = vmatpush2.xpose.msra.mxu0 0.0
        %1110 = vmatprep.subr.mxu0 0.0
        %1111 = vmatpush2.xpose.msra.mxu0 0.0
        %1112 = vmatprep.subr.mxu0 0.0
        %1113 = vmatpush2.xpose.msra.mxu0 0.0
        %1114 = vmatprep.subr.mxu0 0.0
        %1115 = vmatpush2.xpose.msra.mxu0 0.0
        %1116 = vmatprep.subr.mxu0 0.0
        %1117 = vmatpush2.xpose.msra.mxu0 0.0
        %1118 = vmatprep.subr.mxu0 0.0
        %1119 = vmatpush2.xpose.msra.mxu0 0.0
        %1120 = vmatprep.mubr.f32.mxu0 0.0
        %1121 = vmatmul.mubr.f32.gmra.mxu0 %v1052
        %v1122 = vpop.f32.mrf.mxu0
        %v1123 = vadd.f32 0.0, %v1122
        %v1124 = vpop.f32.mrf.mxu0
        %1125 = vdwg.mxu0
        %1127 = vrot.lane.b32.xlu0 %v1041, 96
        %v1128 = vpop.permute.xlu0 %1127
        %v1130 = vsel %vm1050, %v1045, 0
        %v1132 = vsel %vm1050, %v1128, 0
        %1134 = vmatprep.subr.mxu0 0.0
        %1135 = vmatpush1.xpose.msra.mxu0 0.0
        %1136 = vmatprep.subr.mxu0 0.0
        %1137 = vmatpush1.xpose.msra.mxu0 0.0
        %1138 = vmatprep.subr.mxu0 0.0
        %1139 = vmatpush1.xpose.msra.mxu0 0.0
        %1140 = vmatprep.subr.mxu0 0.0
        %1141 = vmatpush1.xpose.msra.mxu0 0.0
        %1142 = vmatprep.subr.mxu0 0.0
        %1143 = vmatpush1.xpose.msra.mxu0 0.0
        %1144 = vmatprep.subr.mxu0 0.0
        %1145 = vmatpush1.xpose.msra.mxu0 0.0
        %1146 = vmatprep.subr.mxu0 0.0
        %1147 = vmatpush1.xpose.msra.mxu0 0.0
        %1148 = vmatprep.subr.mxu0 0.0
        %1149 = vmatpush1.xpose.msra.mxu0 0.0
        %1150 = vmatprep.subr.mxu0 0.0
        %1151 = vmatpush1.xpose.msra.mxu0 0.0
        %1152 = vmatprep.subr.mxu0 0.0
        %1153 = vmatpush1.xpose.msra.mxu0 0.0
        %1154 = vmatprep.subr.mxu0 0.0
        %1155 = vmatpush1.xpose.msra.mxu0 0.0
        %1156 = vmatprep.subr.mxu0 0.0
        %1157 = vmatpush1.xpose.msra.mxu0 0.0
        %1158 = vmatprep.subr.mxu0 0.0
        %1159 = vmatpush1.xpose.msra.mxu0 0.0
        %1160 = vmatprep.subr.mxu0 0.0
        %1161 = vmatpush1.xpose.msra.mxu0 0.0
        %1162 = vmatprep.subr.mxu0 0.0
        %1163 = vmatpush1.xpose.msra.mxu0 0.0
        %1164 = vmatprep.subr.mxu0 0.0
        %1165 = vmatpush1.xpose.msra.mxu0 %v1132
        %1166 = vmatprep.subr.mxu0 0.0
        %1167 = vmatpush2.xpose.msra.mxu0 0.0
        %1168 = vmatprep.subr.mxu0 0.0
        %1169 = vmatpush2.xpose.msra.mxu0 0.0
        %1170 = vmatprep.subr.mxu0 0.0
        %1171 = vmatpush2.xpose.msra.mxu0 0.0
        %1172 = vmatprep.subr.mxu0 0.0
        %1173 = vmatpush2.xpose.msra.mxu0 0.0
        %1174 = vmatprep.subr.mxu0 0.0
        %1175 = vmatpush2.xpose.msra.mxu0 0.0
        %1176 = vmatprep.subr.mxu0 0.0
        %1177 = vmatpush2.xpose.msra.mxu0 0.0
        %1178 = vmatprep.subr.mxu0 0.0
        %1179 = vmatpush2.xpose.msra.mxu0 0.0
        %1180 = vmatprep.subr.mxu0 0.0
        %1181 = vmatpush2.xpose.msra.mxu0 0.0
        %1182 = vmatprep.subr.mxu0 0.0
        %1183 = vmatpush2.xpose.msra.mxu0 0.0
        %1184 = vmatprep.subr.mxu0 0.0
        %1185 = vmatpush2.xpose.msra.mxu0 0.0
        %1186 = vmatprep.subr.mxu0 0.0
        %1187 = vmatpush2.xpose.msra.mxu0 0.0
        %1188 = vmatprep.subr.mxu0 0.0
        %1189 = vmatpush2.xpose.msra.mxu0 0.0
        %1190 = vmatprep.subr.mxu0 0.0
        %1191 = vmatpush2.xpose.msra.mxu0 0.0
        %1192 = vmatprep.subr.mxu0 0.0
        %1193 = vmatpush2.xpose.msra.mxu0 0.0
        %1194 = vmatprep.subr.mxu0 0.0
        %1195 = vmatpush2.xpose.msra.mxu0 0.0
        %1196 = vmatprep.subr.mxu0 0.0
        %1197 = vmatpush2.xpose.msra.mxu0 0.0
        %1198 = vmatprep.mubr.f32.mxu0 0.0
        %1199 = vmatmul.mubr.f32.gmra.mxu0 %v1130
        %v1200 = vpop.f32.mrf.mxu0
        %v1201 = vadd.f32 0.0, %v1200
        %v1202 = vpop.f32.mrf.mxu0
        %1203 = vdwg.mxu0
        %v1204 = vlaneseq
        %v1205 = vshrl.u32 %v1204, 7
        %v1206 = vsub.s32 0, %v1205
        %v1207 = vrot.slane %v1046, %v1206
        %v1208 = vmul.f32 %v1044, %v1207
        %v1209 = vmul.f32 %v1045, %v1207
        %v1210 = vsel %vm1050, %v1208, 0.0
        %1211 = vadd.xlane.f32.xlu0 %v1210
        %v1212 = vpop.xlane.xlu0 %1211
        %v1213 = vsel %vm1050, %v1209, 0.0
        %1214 = vadd.xlane.f32.xlu0 %v1213
        %v1215 = vpop.xlane.xlu0 %1214
        %v1216 = vsel %vm1050, %v1123, -inf
        %1217 = vmax.xlane.f32.xlu0 %v1216
        %v1218 = vpop.xlane.xlu0 %1217
        %v1219 = vsel %vm1050, %v1201, -inf
        %1220 = vmax.xlane.f32.xlu0 %v1219
        %v1221 = vpop.xlane.xlu0 %1220
        %v1222 = vmax.f32 %v1218, %v1212
        %v1223 = vmax.f32 %v1221, %v1215
        %v1224 = vsub.f32 %v1123, %v1222
        %v1225 = vsub.f32 %v1201, %v1223
        %v1226 = vmul.f32 %v1224, 1.442695
        %v1227 = vpow.pop %v1226
        %v1228 = vmul.f32 %v1225, 1.442695
        %v1229 = vpow.pop %v1228
        %v1230 = vsub.f32 %v1212, %v1222
        %v1231 = vsub.f32 %v1215, %v1223
        %v1232 = vmul.f32 %v1230, 1.442695
        %v1233 = vpow.pop %v1232
        %v1234 = vmul.f32 %v1231, 1.442695
        %v1235 = vpow.pop %v1234
        %v1236 = vsel %vm1050, %v1227, 0.0
        %1237 = vadd.xlane.f32.xlu0 %v1236
        %v1238 = vpop.xlane.xlu0 %1237
        %v1239 = vsel %vm1050, %v1229, 0.0
        %1240 = vadd.xlane.f32.xlu0 %v1239
        %v1241 = vpop.xlane.xlu0 %1240
        %v1242 = vadd.f32 %v1238, %v1233
        %v1243 = vadd.f32 %v1241, %v1235
        %v1244 = vrcp.pop %v1242
        %v1245 = vrcp.pop %v1243
        %v1246 = vmul.f32 %v1227, %v1244
        %v1247 = vmul.f32 %v1229, %v1245
        %v1248 = vmul.f32 %v1233, %v1244
        %v1249 = vmul.f32 %v1235, %v1245
        %v1250 = vlaneseq
        %v1251 = vshrl.u32 %v1250, 7
        %v1252 = vsub.s32 1, %v1251
        %v1253 = vrot.slane %v1046, %v1252
        %v1254 = vmul.f32 %v1248, %v1253
        %v1255 = vmul.f32 %v1249, %v1253
        %1256 = vrot.lane.b32.xlu0 %v1038, 64
        %v1257 = vpop.permute.xlu0 %1256
        %v1260 = vsel %vm1050, %v1246, 0
        %1262 = vmatprep.subr.mxu0 0.0
        %1263 = vmatpush1.msra.mxu0 0.0
        %1264 = vmatprep.subr.mxu0 0.0
        %1265 = vmatpush1.msra.mxu0 0.0
        %1266 = vmatprep.subr.mxu0 0.0
        %1267 = vmatpush1.msra.mxu0 0.0
        %1268 = vmatprep.subr.mxu0 0.0
        %1269 = vmatpush1.msra.mxu0 0.0
        %1270 = vmatprep.subr.mxu0 0.0
        %1271 = vmatpush1.msra.mxu0 0.0
        %1272 = vmatprep.subr.mxu0 0.0
        %1273 = vmatpush1.msra.mxu0 0.0
        %1274 = vmatprep.subr.mxu0 0.0
        %1275 = vmatpush1.msra.mxu0 0.0
        %1276 = vmatprep.subr.mxu0 0.0
        %1277 = vmatpush1.msra.mxu0 0.0
        %1278 = vmatprep.subr.mxu0 0.0
        %1279 = vmatpush1.msra.mxu0 0.0
        %1280 = vmatprep.subr.mxu0 0.0
        %1281 = vmatpush1.msra.mxu0 0.0
        %1282 = vmatprep.subr.mxu0 0.0
        %1283 = vmatpush1.msra.mxu0 0.0
        %1284 = vmatprep.subr.mxu0 0.0
        %1285 = vmatpush1.msra.mxu0 0.0
        %1286 = vmatprep.subr.mxu0 0.0
        %1287 = vmatpush1.msra.mxu0 0.0
        %1288 = vmatprep.subr.mxu0 0.0
        %1289 = vmatpush1.msra.mxu0 0.0
        %1290 = vmatprep.subr.mxu0 0.0
        %1291 = vmatpush1.msra.mxu0 0.0
        %1292 = vmatprep.subr.mxu0 0.0
        %1293 = vmatpush1.msra.mxu0 %v1257
        %1294 = vmatprep.subr.mxu0 0.0
        %1295 = vmatpush2.msra.mxu0 0.0
        %1296 = vmatprep.subr.mxu0 0.0
        %1297 = vmatpush2.msra.mxu0 0.0
        %1298 = vmatprep.subr.mxu0 0.0
        %1299 = vmatpush2.msra.mxu0 0.0
        %1300 = vmatprep.subr.mxu0 0.0
        %1301 = vmatpush2.msra.mxu0 0.0
        %1302 = vmatprep.subr.mxu0 0.0
        %1303 = vmatpush2.msra.mxu0 0.0
        %1304 = vmatprep.subr.mxu0 0.0
        %1305 = vmatpush2.msra.mxu0 0.0
        %1306 = vmatprep.subr.mxu0 0.0
        %1307 = vmatpush2.msra.mxu0 0.0
        %1308 = vmatprep.subr.mxu0 0.0
        %1309 = vmatpush2.msra.mxu0 0.0
        %1310 = vmatprep.subr.mxu0 0.0
        %1311 = vmatpush2.msra.mxu0 0.0
        %1312 = vmatprep.subr.mxu0 0.0
        %1313 = vmatpush2.msra.mxu0 0.0
        %1314 = vmatprep.subr.mxu0 0.0
        %1315 = vmatpush2.msra.mxu0 0.0
        %1316 = vmatprep.subr.mxu0 0.0
        %1317 = vmatpush2.msra.mxu0 0.0
        %1318 = vmatprep.subr.mxu0 0.0
        %1319 = vmatpush2.msra.mxu0 0.0
        %1320 = vmatprep.subr.mxu0 0.0
        %1321 = vmatpush2.msra.mxu0 0.0
        %1322 = vmatprep.subr.mxu0 0.0
        %1323 = vmatpush2.msra.mxu0 0.0
        %1324 = vmatprep.subr.mxu0 0.0
        %1325 = vmatpush2.msra.mxu0 0.0
        %1326 = vmatprep.mubr.f32.mxu0 0.0
        %1327 = vmatmul.mubr.f32.gmra.mxu0 %v1260
        %v1328 = vpop.f32.mrf.mxu0
        %v1329 = vadd.f32 %v1254, %v1328
        %v1330 = vpop.f32.mrf.mxu0
        %1331 = vdwg.mxu0
        %1332 = vrot.lane.b32.xlu0 %v1041, 64
        %v1333 = vpop.permute.xlu0 %1332
        %v1336 = vsel %vm1050, %v1247, 0
        %1338 = vmatprep.subr.mxu0 0.0
        %1339 = vmatpush1.msra.mxu0 0.0
        %1340 = vmatprep.subr.mxu0 0.0
        %1341 = vmatpush1.msra.mxu0 0.0
        %1342 = vmatprep.subr.mxu0 0.0
        %1343 = vmatpush1.msra.mxu0 0.0
        %1344 = vmatprep.subr.mxu0 0.0
        %1345 = vmatpush1.msra.mxu0 0.0
        %1346 = vmatprep.subr.mxu0 0.0
        %1347 = vmatpush1.msra.mxu0 0.0
        %1348 = vmatprep.subr.mxu0 0.0
        %1349 = vmatpush1.msra.mxu0 0.0
        %1350 = vmatprep.subr.mxu0 0.0
        %1351 = vmatpush1.msra.mxu0 0.0
        %1352 = vmatprep.subr.mxu0 0.0
        %1353 = vmatpush1.msra.mxu0 0.0
        %1354 = vmatprep.subr.mxu0 0.0
        %1355 = vmatpush1.msra.mxu0 0.0
        %1356 = vmatprep.subr.mxu0 0.0
        %1357 = vmatpush1.msra.mxu0 0.0
        %1358 = vmatprep.subr.mxu0 0.0
        %1359 = vmatpush1.msra.mxu0 0.0
        %1360 = vmatprep.subr.mxu0 0.0
        %1361 = vmatpush1.msra.mxu0 0.0
        %1362 = vmatprep.subr.mxu0 0.0
        %1363 = vmatpush1.msra.mxu0 0.0
        %1364 = vmatprep.subr.mxu0 0.0
        %1365 = vmatpush1.msra.mxu0 0.0
        %1366 = vmatprep.subr.mxu0 0.0
        %1367 = vmatpush1.msra.mxu0 0.0
        %1368 = vmatprep.subr.mxu0 0.0
        %1369 = vmatpush1.msra.mxu0 %v1333
        %1370 = vmatprep.subr.mxu0 0.0
        %1371 = vmatpush2.msra.mxu0 0.0
        %1372 = vmatprep.subr.mxu0 0.0
        %1373 = vmatpush2.msra.mxu0 0.0
        %1374 = vmatprep.subr.mxu0 0.0
        %1375 = vmatpush2.msra.mxu0 0.0
        %1376 = vmatprep.subr.mxu0 0.0
        %1377 = vmatpush2.msra.mxu0 0.0
        %1378 = vmatprep.subr.mxu0 0.0
        %1379 = vmatpush2.msra.mxu0 0.0
        %1380 = vmatprep.subr.mxu0 0.0
        %1381 = vmatpush2.msra.mxu0 0.0
        %1382 = vmatprep.subr.mxu0 0.0
        %1383 = vmatpush2.msra.mxu0 0.0
        %1384 = vmatprep.subr.mxu0 0.0
        %1385 = vmatpush2.msra.mxu0 0.0
        %1386 = vmatprep.subr.mxu0 0.0
        %1387 = vmatpush2.msra.mxu0 0.0
        %1388 = vmatprep.subr.mxu0 0.0
        %1389 = vmatpush2.msra.mxu0 0.0
        %1390 = vmatprep.subr.mxu0 0.0
        %1391 = vmatpush2.msra.mxu0 0.0
        %1392 = vmatprep.subr.mxu0 0.0
        %1393 = vmatpush2.msra.mxu0 0.0
        %1394 = vmatprep.subr.mxu0 0.0
        %1395 = vmatpush2.msra.mxu0 0.0
        %1396 = vmatprep.subr.mxu0 0.0
        %1397 = vmatpush2.msra.mxu0 0.0
        %1398 = vmatprep.subr.mxu0 0.0
        %1399 = vmatpush2.msra.mxu0 0.0
        %1400 = vmatprep.subr.mxu0 0.0
        %1401 = vmatpush2.msra.mxu0 0.0
        %1402 = vmatprep.mubr.f32.mxu0 0.0
        %1403 = vmatmul.mubr.f32.gmra.mxu0 %v1336
        %v1404 = vpop.f32.mrf.mxu0
        %v1405 = vadd.f32 %v1255, %v1404
        %v1406 = vpop.f32.mrf.mxu0
        %1407 = vdwg.mxu0
        %1408 = vrot.lane.b32.xlu0 %v1044, 120
        %v1409 = vpop.permute.xlu0 %1408
        %1410 = vrot.lane.b32.xlu0 %v1038, 88
        %v1411 = vpop.permute.xlu0 %1410
        %v1412 = vsel %vm1050, %v1409, 0
        %v1414 = vsel %vm1050, %v1411, 0
        %1416 = vmatprep.subr.mxu0 0.0
        %1417 = vmatpush1.xpose.msra.mxu0 0.0
        %1418 = vmatprep.subr.mxu0 0.0
        %1419 = vmatpush1.xpose.msra.mxu0 0.0
        %1420 = vmatprep.subr.mxu0 0.0
        %1421 = vmatpush1.xpose.msra.mxu0 0.0
        %1422 = vmatprep.subr.mxu0 0.0
        %1423 = vmatpush1.xpose.msra.mxu0 0.0
        %1424 = vmatprep.subr.mxu0 0.0
        %1425 = vmatpush1.xpose.msra.mxu0 0.0
        %1426 = vmatprep.subr.mxu0 0.0
        %1427 = vmatpush1.xpose.msra.mxu0 0.0
        %1428 = vmatprep.subr.mxu0 0.0
        %1429 = vmatpush1.xpose.msra.mxu0 0.0
        %1430 = vmatprep.subr.mxu0 0.0
        %1431 = vmatpush1.xpose.msra.mxu0 0.0
        %1432 = vmatprep.subr.mxu0 0.0
        %1433 = vmatpush1.xpose.msra.mxu0 0.0
        %1434 = vmatprep.subr.mxu0 0.0
        %1435 = vmatpush1.xpose.msra.mxu0 0.0
        %1436 = vmatprep.subr.mxu0 0.0
        %1437 = vmatpush1.xpose.msra.mxu0 0.0
        %1438 = vmatprep.subr.mxu0 0.0
        %1439 = vmatpush1.xpose.msra.mxu0 0.0
        %1440 = vmatprep.subr.mxu0 0.0
        %1441 = vmatpush1.xpose.msra.mxu0 0.0
        %1442 = vmatprep.subr.mxu0 0.0
        %1443 = vmatpush1.xpose.msra.mxu0 0.0
        %1444 = vmatprep.subr.mxu0 0.0
        %1445 = vmatpush1.xpose.msra.mxu0 0.0
        %1446 = vmatprep.subr.mxu0 0.0
        %1447 = vmatpush1.xpose.msra.mxu0 %v1414
        %1448 = vmatprep.subr.mxu0 0.0
        %1449 = vmatpush2.xpose.msra.mxu0 0.0
        %1450 = vmatprep.subr.mxu0 0.0
        %1451 = vmatpush2.xpose.msra.mxu0 0.0
        %1452 = vmatprep.subr.mxu0 0.0
        %1453 = vmatpush2.xpose.msra.mxu0 0.0
        %1454 = vmatprep.subr.mxu0 0.0
        %1455 = vmatpush2.xpose.msra.mxu0 0.0
        %1456 = vmatprep.subr.mxu0 0.0
        %1457 = vmatpush2.xpose.msra.mxu0 0.0
        %1458 = vmatprep.subr.mxu0 0.0
        %1459 = vmatpush2.xpose.msra.mxu0 0.0
        %1460 = vmatprep.subr.mxu0 0.0
        %1461 = vmatpush2.xpose.msra.mxu0 0.0
        %1462 = vmatprep.subr.mxu0 0.0
        %1463 = vmatpush2.xpose.msra.mxu0 0.0
        %1464 = vmatprep.subr.mxu0 0.0
        %1465 = vmatpush2.xpose.msra.mxu0 0.0
        %1466 = vmatprep.subr.mxu0 0.0
        %1467 = vmatpush2.xpose.msra.mxu0 0.0
        %1468 = vmatprep.subr.mxu0 0.0
        %1469 = vmatpush2.xpose.msra.mxu0 0.0
        %1470 = vmatprep.subr.mxu0 0.0
        %1471 = vmatpush2.xpose.msra.mxu0 0.0
        %1472 = vmatprep.subr.mxu0 0.0
        %1473 = vmatpush2.xpose.msra.mxu0 0.0
        %1474 = vmatprep.subr.mxu0 0.0
        %1475 = vmatpush2.xpose.msra.mxu0 0.0
        %1476 = vmatprep.subr.mxu0 0.0
        %1477 = vmatpush2.xpose.msra.mxu0 0.0
        %1478 = vmatprep.subr.mxu0 0.0
        %1479 = vmatpush2.xpose.msra.mxu0 0.0
        %1480 = vmatprep.mubr.f32.mxu0 0.0
        %1481 = vmatmul.mubr.f32.gmra.mxu0 %v1412
        %v1482 = vpop.f32.mrf.mxu0
        %v1483 = vadd.f32 0.0, %v1482
        %v1484 = vpop.f32.mrf.mxu0
        %1485 = vdwg.mxu0
        %1486 = vrot.lane.b32.xlu0 %v1045, 120
        %v1487 = vpop.permute.xlu0 %1486
        %1488 = vrot.lane.b32.xlu0 %v1041, 88
        %v1489 = vpop.permute.xlu0 %1488
        %v1490 = vsel %vm1050, %v1487, 0
        %v1492 = vsel %vm1050, %v1489, 0
        %1494 = vmatprep.subr.mxu0 0.0
        %1495 = vmatpush1.xpose.msra.mxu0 0.0
        %1496 = vmatprep.subr.mxu0 0.0
        %1497 = vmatpush1.xpose.msra.mxu0 0.0
        %1498 = vmatprep.subr.mxu0 0.0
        %1499 = vmatpush1.xpose.msra.mxu0 0.0
        %1500 = vmatprep.subr.mxu0 0.0
        %1501 = vmatpush1.xpose.msra.mxu0 0.0
        %1502 = vmatprep.subr.mxu0 0.0
        %1503 = vmatpush1.xpose.msra.mxu0 0.0
        %1504 = vmatprep.subr.mxu0 0.0
        %1505 = vmatpush1.xpose.msra.mxu0 0.0
        %1506 = vmatprep.subr.mxu0 0.0
        %1507 = vmatpush1.xpose.msra.mxu0 0.0
        %1508 = vmatprep.subr.mxu0 0.0
        %1509 = vmatpush1.xpose.msra.mxu0 0.0
        %1510 = vmatprep.subr.mxu0 0.0
        %1511 = vmatpush1.xpose.msra.mxu0 0.0
        %1512 = vmatprep.subr.mxu0 0.0
        %1513 = vmatpush1.xpose.msra.mxu0 0.0
        %1514 = vmatprep.subr.mxu0 0.0
        %1515 = vmatpush1.xpose.msra.mxu0 0.0
        %1516 = vmatprep.subr.mxu0 0.0
        %1517 = vmatpush1.xpose.msra.mxu0 0.0
        %1518 = vmatprep.subr.mxu0 0.0
        %1519 = vmatpush1.xpose.msra.mxu0 0.0
        %1520 = vmatprep.subr.mxu0 0.0
        %1521 = vmatpush1.xpose.msra.mxu0 0.0
        %1522 = vmatprep.subr.mxu0 0.0
        %1523 = vmatpush1.xpose.msra.mxu0 0.0
        %1524 = vmatprep.subr.mxu0 0.0
        %1525 = vmatpush1.xpose.msra.mxu0 %v1492
        %1526 = vmatprep.subr.mxu0 0.0
        %1527 = vmatpush2.xpose.msra.mxu0 0.0
        %1528 = vmatprep.subr.mxu0 0.0
        %1529 = vmatpush2.xpose.msra.mxu0 0.0
        %1530 = vmatprep.subr.mxu0 0.0
        %1531 = vmatpush2.xpose.msra.mxu0 0.0
        %1532 = vmatprep.subr.mxu0 0.0
        %1533 = vmatpush2.xpose.msra.mxu0 0.0
        %1534 = vmatprep.subr.mxu0 0.0
        %1535 = vmatpush2.xpose.msra.mxu0 0.0
        %1536 = vmatprep.subr.mxu0 0.0
        %1537 = vmatpush2.xpose.msra.mxu0 0.0
        %1538 = vmatprep.subr.mxu0 0.0
        %1539 = vmatpush2.xpose.msra.mxu0 0.0
        %1540 = vmatprep.subr.mxu0 0.0
        %1541 = vmatpush2.xpose.msra.mxu0 0.0
        %1542 = vmatprep.subr.mxu0 0.0
        %1543 = vmatpush2.xpose.msra.mxu0 0.0
        %1544 = vmatprep.subr.mxu0 0.0
        %1545 = vmatpush2.xpose.msra.mxu0 0.0
        %1546 = vmatprep.subr.mxu0 0.0
        %1547 = vmatpush2.xpose.msra.mxu0 0.0
        %1548 = vmatprep.subr.mxu0 0.0
        %1549 = vmatpush2.xpose.msra.mxu0 0.0
        %1550 = vmatprep.subr.mxu0 0.0
        %1551 = vmatpush2.xpose.msra.mxu0 0.0
        %1552 = vmatprep.subr.mxu0 0.0
        %1553 = vmatpush2.xpose.msra.mxu0 0.0
        %1554 = vmatprep.subr.mxu0 0.0
        %1555 = vmatpush2.xpose.msra.mxu0 0.0
        %1556 = vmatprep.subr.mxu0 0.0
        %1557 = vmatpush2.xpose.msra.mxu0 0.0
        %1558 = vmatprep.mubr.f32.mxu0 0.0
        %1559 = vmatmul.mubr.f32.gmra.mxu0 %v1490
        %v1560 = vpop.f32.mrf.mxu0
        %v1561 = vadd.f32 0.0, %v1560
        %v1562 = vpop.f32.mrf.mxu0
        %1563 = vdwg.mxu0
        %1566 = vrot.lane.b32.xlu0 %v1208, 120
        %v1567 = vpop.permute.xlu0 %1566
        %1568 = vrot.lane.b32.xlu0 %v1209, 120
        %v1569 = vpop.permute.xlu0 %1568
        %v1572 = vsel %vm1050, %v1567, 0.0
        %1573 = vadd.xlane.f32.xlu0 %v1572
        %v1574 = vpop.xlane.xlu0 %1573
        %v1575 = vsel %vm1050, %v1569, 0.0
        %1576 = vadd.xlane.f32.xlu0 %v1575
        %v1577 = vpop.xlane.xlu0 %1576
        %v1578 = vsel %vm1050, %v1483, -inf
        %1579 = vmax.xlane.f32.xlu0 %v1578
        %v1580 = vpop.xlane.xlu0 %1579
        %v1581 = vsel %vm1050, %v1561, -inf
        %1582 = vmax.xlane.f32.xlu0 %v1581
        %v1583 = vpop.xlane.xlu0 %1582
        %v1584 = vmax.f32 %v1580, %v1574
        %v1585 = vmax.f32 %v1583, %v1577
        %v1586 = vsub.f32 %v1483, %v1584
        %v1587 = vsub.f32 %v1561, %v1585
        %v1588 = vmul.f32 %v1586, 1.442695
        %v1589 = vpow.pop %v1588
        %v1590 = vmul.f32 %v1587, 1.442695
        %v1591 = vpow.pop %v1590
        %v1592 = vsub.f32 %v1574, %v1584
        %v1593 = vsub.f32 %v1577, %v1585
        %v1594 = vmul.f32 %v1592, 1.442695
        %v1595 = vpow.pop %v1594
        %v1596 = vmul.f32 %v1593, 1.442695
        %v1597 = vpow.pop %v1596
        %v1598 = vsel %vm1050, %v1589, 0.0
        %1599 = vadd.xlane.f32.xlu0 %v1598
        %v1600 = vpop.xlane.xlu0 %1599
        %v1601 = vsel %vm1050, %v1591, 0.0
        %1602 = vadd.xlane.f32.xlu0 %v1601
        %v1603 = vpop.xlane.xlu0 %1602
        %v1604 = vadd.f32 %v1600, %v1595
        %v1605 = vadd.f32 %v1603, %v1597
        %v1606 = vrcp.pop %v1604
        %v1607 = vrcp.pop %v1605
        %v1608 = vmul.f32 %v1589, %v1606
        %v1609 = vmul.f32 %v1591, %v1607
        %v1610 = vmul.f32 %v1595, %v1606
        %v1611 = vmul.f32 %v1597, %v1607
        %v1612 = vmul.f32 %v1610, %v1253
        %v1613 = vmul.f32 %v1611, %v1253
        %1614 = vrot.lane.b32.xlu0 %v1038, 56
        %v1615 = vpop.permute.xlu0 %1614
        %1618 = vrot.lane.b32.xlu0 %v1612, 120
        %v1619 = vpop.permute.xlu0 %1618
        %v1622 = vsel %vm1050, %v1608, 0
        %1624 = vmatprep.subr.mxu0 0.0
        %1625 = vmatpush1.msra.mxu0 0.0
        %1626 = vmatprep.subr.mxu0 0.0
        %1627 = vmatpush1.msra.mxu0 0.0
        %1628 = vmatprep.subr.mxu0 0.0
        %1629 = vmatpush1.msra.mxu0 0.0
        %1630 = vmatprep.subr.mxu0 0.0
        %1631 = vmatpush1.msra.mxu0 0.0
        %1632 = vmatprep.subr.mxu0 0.0
        %1633 = vmatpush1.msra.mxu0 0.0
        %1634 = vmatprep.subr.mxu0 0.0
        %1635 = vmatpush1.msra.mxu0 0.0
        %1636 = vmatprep.subr.mxu0 0.0
        %1637 = vmatpush1.msra.mxu0 0.0
        %1638 = vmatprep.subr.mxu0 0.0
        %1639 = vmatpush1.msra.mxu0 0.0
        %1640 = vmatprep.subr.mxu0 0.0
        %1641 = vmatpush1.msra.mxu0 0.0
        %1642 = vmatprep.subr.mxu0 0.0
        %1643 = vmatpush1.msra.mxu0 0.0
        %1644 = vmatprep.subr.mxu0 0.0
        %1645 = vmatpush1.msra.mxu0 0.0
        %1646 = vmatprep.subr.mxu0 0.0
        %1647 = vmatpush1.msra.mxu0 0.0
        %1648 = vmatprep.subr.mxu0 0.0
        %1649 = vmatpush1.msra.mxu0 0.0
        %1650 = vmatprep.subr.mxu0 0.0
        %1651 = vmatpush1.msra.mxu0 0.0
        %1652 = vmatprep.subr.mxu0 0.0
        %1653 = vmatpush1.msra.mxu0 0.0
        %1654 = vmatprep.subr.mxu0 0.0
        %1655 = vmatpush1.msra.mxu0 %v1615
        %1656 = vmatprep.subr.mxu0 0.0
        %1657 = vmatpush2.msra.mxu0 0.0
        %1658 = vmatprep.subr.mxu0 0.0
        %1659 = vmatpush2.msra.mxu0 0.0
        %1660 = vmatprep.subr.mxu0 0.0
        %1661 = vmatpush2.msra.mxu0 0.0
        %1662 = vmatprep.subr.mxu0 0.0
        %1663 = vmatpush2.msra.mxu0 0.0
        %1664 = vmatprep.subr.mxu0 0.0
        %1665 = vmatpush2.msra.mxu0 0.0
        %1666 = vmatprep.subr.mxu0 0.0
        %1667 = vmatpush2.msra.mxu0 0.0
        %1668 = vmatprep.subr.mxu0 0.0
        %1669 = vmatpush2.msra.mxu0 0.0
        %1670 = vmatprep.subr.mxu0 0.0
        %1671 = vmatpush2.msra.mxu0 0.0
        %1672 = vmatprep.subr.mxu0 0.0
        %1673 = vmatpush2.msra.mxu0 0.0
        %1674 = vmatprep.subr.mxu0 0.0
        %1675 = vmatpush2.msra.mxu0 0.0
        %1676 = vmatprep.subr.mxu0 0.0
        %1677 = vmatpush2.msra.mxu0 0.0
        %1678 = vmatprep.subr.mxu0 0.0
        %1679 = vmatpush2.msra.mxu0 0.0
        %1680 = vmatprep.subr.mxu0 0.0
        %1681 = vmatpush2.msra.mxu0 0.0
        %1682 = vmatprep.subr.mxu0 0.0
        %1683 = vmatpush2.msra.mxu0 0.0
        %1684 = vmatprep.subr.mxu0 0.0
        %1685 = vmatpush2.msra.mxu0 0.0
        %1686 = vmatprep.subr.mxu0 0.0
        %1687 = vmatpush2.msra.mxu0 0.0
        %1688 = vmatprep.mubr.f32.mxu0 0.0
        %1689 = vmatmul.mubr.f32.gmra.mxu0 %v1622
        %v1690 = vpop.f32.mrf.mxu0
        %v1691 = vadd.f32 %v1619, %v1690
        %v1692 = vpop.f32.mrf.mxu0
        %1693 = vdwg.mxu0
        %1694 = vrot.lane.b32.xlu0 %v1041, 56
        %v1695 = vpop.permute.xlu0 %1694
        %1698 = vrot.lane.b32.xlu0 %v1613, 120
        %v1699 = vpop.permute.xlu0 %1698
        %v1702 = vsel %vm1050, %v1609, 0
        %1704 = vmatprep.subr.mxu0 0.0
        %1705 = vmatpush1.msra.mxu0 0.0
        %1706 = vmatprep.subr.mxu0 0.0
        %1707 = vmatpush1.msra.mxu0 0.0
        %1708 = vmatprep.subr.mxu0 0.0
        %1709 = vmatpush1.msra.mxu0 0.0
        %1710 = vmatprep.subr.mxu0 0.0
        %1711 = vmatpush1.msra.mxu0 0.0
        %1712 = vmatprep.subr.mxu0 0.0
        %1713 = vmatpush1.msra.mxu0 0.0
        %1714 = vmatprep.subr.mxu0 0.0
        %1715 = vmatpush1.msra.mxu0 0.0
        %1716 = vmatprep.subr.mxu0 0.0
        %1717 = vmatpush1.msra.mxu0 0.0
        %1718 = vmatprep.subr.mxu0 0.0
        %1719 = vmatpush1.msra.mxu0 0.0
        %1720 = vmatprep.subr.mxu0 0.0
        %1721 = vmatpush1.msra.mxu0 0.0
        %1722 = vmatprep.subr.mxu0 0.0
        %1723 = vmatpush1.msra.mxu0 0.0
        %1724 = vmatprep.subr.mxu0 0.0
        %1725 = vmatpush1.msra.mxu0 0.0
        %1726 = vmatprep.subr.mxu0 0.0
        %1727 = vmatpush1.msra.mxu0 0.0
        %1728 = vmatprep.subr.mxu0 0.0
        %1729 = vmatpush1.msra.mxu0 0.0
        %1730 = vmatprep.subr.mxu0 0.0
        %1731 = vmatpush1.msra.mxu0 0.0
        %1732 = vmatprep.subr.mxu0 0.0
        %1733 = vmatpush1.msra.mxu0 0.0
        %1734 = vmatprep.subr.mxu0 0.0
        %1735 = vmatpush1.msra.mxu0 %v1695
        %1736 = vmatprep.subr.mxu0 0.0
        %1737 = vmatpush2.msra.mxu0 0.0
        %1738 = vmatprep.subr.mxu0 0.0
        %1739 = vmatpush2.msra.mxu0 0.0
        %1740 = vmatprep.subr.mxu0 0.0
        %1741 = vmatpush2.msra.mxu0 0.0
        %1742 = vmatprep.subr.mxu0 0.0
        %1743 = vmatpush2.msra.mxu0 0.0
        %1744 = vmatprep.subr.mxu0 0.0
        %1745 = vmatpush2.msra.mxu0 0.0
        %1746 = vmatprep.subr.mxu0 0.0
        %1747 = vmatpush2.msra.mxu0 0.0
        %1748 = vmatprep.subr.mxu0 0.0
        %1749 = vmatpush2.msra.mxu0 0.0
        %1750 = vmatprep.subr.mxu0 0.0
        %1751 = vmatpush2.msra.mxu0 0.0
        %1752 = vmatprep.subr.mxu0 0.0
        %1753 = vmatpush2.msra.mxu0 0.0
        %1754 = vmatprep.subr.mxu0 0.0
        %1755 = vmatpush2.msra.mxu0 0.0
        %1756 = vmatprep.subr.mxu0 0.0
        %1757 = vmatpush2.msra.mxu0 0.0
        %1758 = vmatprep.subr.mxu0 0.0
        %1759 = vmatpush2.msra.mxu0 0.0
        %1760 = vmatprep.subr.mxu0 0.0
        %1761 = vmatpush2.msra.mxu0 0.0
        %1762 = vmatprep.subr.mxu0 0.0
        %1763 = vmatpush2.msra.mxu0 0.0
        %1764 = vmatprep.subr.mxu0 0.0
        %1765 = vmatpush2.msra.mxu0 0.0
        %1766 = vmatprep.subr.mxu0 0.0
        %1767 = vmatpush2.msra.mxu0 0.0
        %1768 = vmatprep.mubr.f32.mxu0 0.0
        %1769 = vmatmul.mubr.f32.gmra.mxu0 %v1702
        %v1770 = vpop.f32.mrf.mxu0
        %v1771 = vadd.f32 %v1699, %v1770
        %v1772 = vpop.f32.mrf.mxu0
        %1773 = vdwg.mxu0
        %1774 = vrot.lane.b32.xlu0 %v1044, 112
        %v1775 = vpop.permute.xlu0 %1774
        %1776 = vrot.lane.b32.xlu0 %v1038, 80
        %v1777 = vpop.permute.xlu0 %1776
        %v1778 = vsel %vm1050, %v1775, 0
        %v1780 = vsel %vm1050, %v1777, 0
        %1782 = vmatprep.subr.mxu0 0.0
        %1783 = vmatpush1.xpose.msra.mxu0 0.0
        %1784 = vmatprep.subr.mxu0 0.0
        %1785 = vmatpush1.xpose.msra.mxu0 0.0
        %1786 = vmatprep.subr.mxu0 0.0
        %1787 = vmatpush1.xpose.msra.mxu0 0.0
        %1788 = vmatprep.subr.mxu0 0.0
        %1789 = vmatpush1.xpose.msra.mxu0 0.0
        %1790 = vmatprep.subr.mxu0 0.0
        %1791 = vmatpush1.xpose.msra.mxu0 0.0
        %1792 = vmatprep.subr.mxu0 0.0
        %1793 = vmatpush1.xpose.msra.mxu0 0.0
        %1794 = vmatprep.subr.mxu0 0.0
        %1795 = vmatpush1.xpose.msra.mxu0 0.0
        %1796 = vmatprep.subr.mxu0 0.0
        %1797 = vmatpush1.xpose.msra.mxu0 0.0
        %1798 = vmatprep.subr.mxu0 0.0
        %1799 = vmatpush1.xpose.msra.mxu0 0.0
        %1800 = vmatprep.subr.mxu0 0.0
        %1801 = vmatpush1.xpose.msra.mxu0 0.0
        %1802 = vmatprep.subr.mxu0 0.0
        %1803 = vmatpush1.xpose.msra.mxu0 0.0
        %1804 = vmatprep.subr.mxu0 0.0
        %1805 = vmatpush1.xpose.msra.mxu0 0.0
        %1806 = vmatprep.subr.mxu0 0.0
        %1807 = vmatpush1.xpose.msra.mxu0 0.0
        %1808 = vmatprep.subr.mxu0 0.0
        %1809 = vmatpush1.xpose.msra.mxu0 0.0
        %1810 = vmatprep.subr.mxu0 0.0
        %1811 = vmatpush1.xpose.msra.mxu0 0.0
        %1812 = vmatprep.subr.mxu0 0.0
        %1813 = vmatpush1.xpose.msra.mxu0 %v1780
        %1814 = vmatprep.subr.mxu0 0.0
        %1815 = vmatpush2.xpose.msra.mxu0 0.0
        %1816 = vmatprep.subr.mxu0 0.0
        %1817 = vmatpush2.xpose.msra.mxu0 0.0
        %1818 = vmatprep.subr.mxu0 0.0
        %1819 = vmatpush2.xpose.msra.mxu0 0.0
        %1820 = vmatprep.subr.mxu0 0.0
        %1821 = vmatpush2.xpose.msra.mxu0 0.0
        %1822 = vmatprep.subr.mxu0 0.0
        %1823 = vmatpush2.xpose.msra.mxu0 0.0
        %1824 = vmatprep.subr.mxu0 0.0
        %1825 = vmatpush2.xpose.msra.mxu0 0.0
        %1826 = vmatprep.subr.mxu0 0.0
        %1827 = vmatpush2.xpose.msra.mxu0 0.0
        %1828 = vmatprep.subr.mxu0 0.0
        %1829 = vmatpush2.xpose.msra.mxu0 0.0
        %1830 = vmatprep.subr.mxu0 0.0
        %1831 = vmatpush2.xpose.msra.mxu0 0.0
        %1832 = vmatprep.subr.mxu0 0.0
        %1833 = vmatpush2.xpose.msra.mxu0 0.0
        %1834 = vmatprep.subr.mxu0 0.0
        %1835 = vmatpush2.xpose.msra.mxu0 0.0
        %1836 = vmatprep.subr.mxu0 0.0
        %1837 = vmatpush2.xpose.msra.mxu0 0.0
        %1838 = vmatprep.subr.mxu0 0.0
        %1839 = vmatpush2.xpose.msra.mxu0 0.0
        %1840 = vmatprep.subr.mxu0 0.0
        %1841 = vmatpush2.xpose.msra.mxu0 0.0
        %1842 = vmatprep.subr.mxu0 0.0
        %1843 = vmatpush2.xpose.msra.mxu0 0.0
        %1844 = vmatprep.subr.mxu0 0.0
        %1845 = vmatpush2.xpose.msra.mxu0 0.0
        %1846 = vmatprep.mubr.f32.mxu0 0.0
        %1847 = vmatmul.mubr.f32.gmra.mxu0 %v1778
        %v1848 = vpop.f32.mrf.mxu0
        %v1849 = vadd.f32 0.0, %v1848
        %v1850 = vpop.f32.mrf.mxu0
        %1851 = vdwg.mxu0
        %1852 = vrot.lane.b32.xlu0 %v1045, 112
        %v1853 = vpop.permute.xlu0 %1852
        %1854 = vrot.lane.b32.xlu0 %v1041, 80
        %v1855 = vpop.permute.xlu0 %1854
        %v1856 = vsel %vm1050, %v1853, 0
        %v1858 = vsel %vm1050, %v1855, 0
        %1860 = vmatprep.subr.mxu0 0.0
        %1861 = vmatpush1.xpose.msra.mxu0 0.0
        %1862 = vmatprep.subr.mxu0 0.0
        %1863 = vmatpush1.xpose.msra.mxu0 0.0
        %1864 = vmatprep.subr.mxu0 0.0
        %1865 = vmatpush1.xpose.msra.mxu0 0.0
        %1866 = vmatprep.subr.mxu0 0.0
        %1867 = vmatpush1.xpose.msra.mxu0 0.0
        %1868 = vmatprep.subr.mxu0 0.0
        %1869 = vmatpush1.xpose.msra.mxu0 0.0
        %1870 = vmatprep.subr.mxu0 0.0
        %1871 = vmatpush1.xpose.msra.mxu0 0.0
        %1872 = vmatprep.subr.mxu0 0.0
        %1873 = vmatpush1.xpose.msra.mxu0 0.0
        %1874 = vmatprep.subr.mxu0 0.0
        %1875 = vmatpush1.xpose.msra.mxu0 0.0
        %1876 = vmatprep.subr.mxu0 0.0
        %1877 = vmatpush1.xpose.msra.mxu0 0.0
        %1878 = vmatprep.subr.mxu0 0.0
        %1879 = vmatpush1.xpose.msra.mxu0 0.0
        %1880 = vmatprep.subr.mxu0 0.0
        %1881 = vmatpush1.xpose.msra.mxu0 0.0
        %1882 = vmatprep.subr.mxu0 0.0
        %1883 = vmatpush1.xpose.msra.mxu0 0.0
        %1884 = vmatprep.subr.mxu0 0.0
        %1885 = vmatpush1.xpose.msra.mxu0 0.0
        %1886 = vmatprep.subr.mxu0 0.0
        %1887 = vmatpush1.xpose.msra.mxu0 0.0
        %1888 = vmatprep.subr.mxu0 0.0
        %1889 = vmatpush1.xpose.msra.mxu0 0.0
        %1890 = vmatprep.subr.mxu0 0.0
        %1891 = vmatpush1.xpose.msra.mxu0 %v1858
        %1892 = vmatprep.subr.mxu0 0.0
        %1893 = vmatpush2.xpose.msra.mxu0 0.0
        %1894 = vmatprep.subr.mxu0 0.0
        %1895 = vmatpush2.xpose.msra.mxu0 0.0
        %1896 = vmatprep.subr.mxu0 0.0
        %1897 = vmatpush2.xpose.msra.mxu0 0.0
        %1898 = vmatprep.subr.mxu0 0.0
        %1899 = vmatpush2.xpose.msra.mxu0 0.0
        %1900 = vmatprep.subr.mxu0 0.0
        %1901 = vmatpush2.xpose.msra.mxu0 0.0
        %1902 = vmatprep.subr.mxu0 0.0
        %1903 = vmatpush2.xpose.msra.mxu0 0.0
        %1904 = vmatprep.subr.mxu0 0.0
        %1905 = vmatpush2.xpose.msra.mxu0 0.0
        %1906 = vmatprep.subr.mxu0 0.0
        %1907 = vmatpush2.xpose.msra.mxu0 0.0
        %1908 = vmatprep.subr.mxu0 0.0
        %1909 = vmatpush2.xpose.msra.mxu0 0.0
        %1910 = vmatprep.subr.mxu0 0.0
        %1911 = vmatpush2.xpose.msra.mxu0 0.0
        %1912 = vmatprep.subr.mxu0 0.0
        %1913 = vmatpush2.xpose.msra.mxu0 0.0
        %1914 = vmatprep.subr.mxu0 0.0
        %1915 = vmatpush2.xpose.msra.mxu0 0.0
        %1916 = vmatprep.subr.mxu0 0.0
        %1917 = vmatpush2.xpose.msra.mxu0 0.0
        %1918 = vmatprep.subr.mxu0 0.0
        %1919 = vmatpush2.xpose.msra.mxu0 0.0
        %1920 = vmatprep.subr.mxu0 0.0
        %1921 = vmatpush2.xpose.msra.mxu0 0.0
        %1922 = vmatprep.subr.mxu0 0.0
        %1923 = vmatpush2.xpose.msra.mxu0 0.0
        %1924 = vmatprep.mubr.f32.mxu0 0.0
        %1925 = vmatmul.mubr.f32.gmra.mxu0 %v1856
        %v1926 = vpop.f32.mrf.mxu0
        %v1927 = vadd.f32 0.0, %v1926
        %v1928 = vpop.f32.mrf.mxu0
        %1929 = vdwg.mxu0
        %1930 = vrot.lane.b32.xlu0 %v1208, 112
        %v1931 = vpop.permute.xlu0 %1930
        %1932 = vrot.lane.b32.xlu0 %v1209, 112
        %v1933 = vpop.permute.xlu0 %1932
        %v1936 = vsel %vm1050, %v1931, 0.0
        %1937 = vadd.xlane.f32.xlu0 %v1936
        %v1938 = vpop.xlane.xlu0 %1937
        %v1939 = vsel %vm1050, %v1933, 0.0
        %1940 = vadd.xlane.f32.xlu0 %v1939
        %v1941 = vpop.xlane.xlu0 %1940
        %v1942 = vsel %vm1050, %v1849, -inf
        %1943 = vmax.xlane.f32.xlu0 %v1942
        %v1944 = vpop.xlane.xlu0 %1943
        %v1945 = vsel %vm1050, %v1927, -inf
        %1946 = vmax.xlane.f32.xlu0 %v1945
        %v1947 = vpop.xlane.xlu0 %1946
        %v1948 = vmax.f32 %v1944, %v1938
        %v1949 = vmax.f32 %v1947, %v1941
        %v1950 = vsub.f32 %v1849, %v1948
        %v1951 = vsub.f32 %v1927, %v1949
        %v1952 = vmul.f32 %v1950, 1.442695
        %v1953 = vpow.pop %v1952
        %v1954 = vmul.f32 %v1951, 1.442695
        %v1955 = vpow.pop %v1954
        %v1956 = vsub.f32 %v1938, %v1948
        %v1957 = vsub.f32 %v1941, %v1949
        %v1958 = vmul.f32 %v1956, 1.442695
        %v1959 = vpow.pop %v1958
        %v1960 = vmul.f32 %v1957, 1.442695
        %v1961 = vpow.pop %v1960
        %v1962 = vsel %vm1050, %v1953, 0.0
        %1963 = vadd.xlane.f32.xlu0 %v1962
        %v1964 = vpop.xlane.xlu0 %1963
        %v1965 = vsel %vm1050, %v1955, 0.0
        %1966 = vadd.xlane.f32.xlu0 %v1965
        %v1967 = vpop.xlane.xlu0 %1966
        %v1968 = vadd.f32 %v1964, %v1959
        %v1969 = vadd.f32 %v1967, %v1961
        %v1970 = vrcp.pop %v1968
        %v1971 = vrcp.pop %v1969
        %v1972 = vmul.f32 %v1953, %v1970
        %v1973 = vmul.f32 %v1955, %v1971
        %v1974 = vmul.f32 %v1959, %v1970
        %v1975 = vmul.f32 %v1961, %v1971
        %v1976 = vmul.f32 %v1974, %v1253
        %v1977 = vmul.f32 %v1975, %v1253
        %1978 = vrot.lane.b32.xlu0 %v1038, 48
        %v1979 = vpop.permute.xlu0 %1978
        %1982 = vrot.lane.b32.xlu0 %v1976, 112
        %v1983 = vpop.permute.xlu0 %1982
        %v1986 = vsel %vm1050, %v1972, 0
        %1988 = vmatprep.subr.mxu0 0.0
        %1989 = vmatpush1.msra.mxu0 0.0
        %1990 = vmatprep.subr.mxu0 0.0
        %1991 = vmatpush1.msra.mxu0 0.0
        %1992 = vmatprep.subr.mxu0 0.0
        %1993 = vmatpush1.msra.mxu0 0.0
        %1994 = vmatprep.subr.mxu0 0.0
        %1995 = vmatpush1.msra.mxu0 0.0
        %1996 = vmatprep.subr.mxu0 0.0
        %1997 = vmatpush1.msra.mxu0 0.0
        %1998 = vmatprep.subr.mxu0 0.0
        %1999 = vmatpush1.msra.mxu0 0.0
        %2000 = vmatprep.subr.mxu0 0.0
        %2001 = vmatpush1.msra.mxu0 0.0
        %2002 = vmatprep.subr.mxu0 0.0
        %2003 = vmatpush1.msra.mxu0 0.0
        %2004 = vmatprep.subr.mxu0 0.0
        %2005 = vmatpush1.msra.mxu0 0.0
        %2006 = vmatprep.subr.mxu0 0.0
        %2007 = vmatpush1.msra.mxu0 0.0
        %2008 = vmatprep.subr.mxu0 0.0
        %2009 = vmatpush1.msra.mxu0 0.0
        %2010 = vmatprep.subr.mxu0 0.0
        %2011 = vmatpush1.msra.mxu0 0.0
        %2012 = vmatprep.subr.mxu0 0.0
        %2013 = vmatpush1.msra.mxu0 0.0
        %2014 = vmatprep.subr.mxu0 0.0
        %2015 = vmatpush1.msra.mxu0 0.0
        %2016 = vmatprep.subr.mxu0 0.0
        %2017 = vmatpush1.msra.mxu0 0.0
        %2018 = vmatprep.subr.mxu0 0.0
        %2019 = vmatpush1.msra.mxu0 %v1979
        %2020 = vmatprep.subr.mxu0 0.0
        %2021 = vmatpush2.msra.mxu0 0.0
        %2022 = vmatprep.subr.mxu0 0.0
        %2023 = vmatpush2.msra.mxu0 0.0
        %2024 = vmatprep.subr.mxu0 0.0
        %2025 = vmatpush2.msra.mxu0 0.0
        %2026 = vmatprep.subr.mxu0 0.0
        %2027 = vmatpush2.msra.mxu0 0.0
        %2028 = vmatprep.subr.mxu0 0.0
        %2029 = vmatpush2.msra.mxu0 0.0
        %2030 = vmatprep.subr.mxu0 0.0
        %2031 = vmatpush2.msra.mxu0 0.0
        %2032 = vmatprep.subr.mxu0 0.0
        %2033 = vmatpush2.msra.mxu0 0.0
        %2034 = vmatprep.subr.mxu0 0.0
        %2035 = vmatpush2.msra.mxu0 0.0
        %2036 = vmatprep.subr.mxu0 0.0
        %2037 = vmatpush2.msra.mxu0 0.0
        %2038 = vmatprep.subr.mxu0 0.0
        %2039 = vmatpush2.msra.mxu0 0.0
        %2040 = vmatprep.subr.mxu0 0.0
        %2041 = vmatpush2.msra.mxu0 0.0
        %2042 = vmatprep.subr.mxu0 0.0
        %2043 = vmatpush2.msra.mxu0 0.0
        %2044 = vmatprep.subr.mxu0 0.0
        %2045 = vmatpush2.msra.mxu0 0.0
        %2046 = vmatprep.subr.mxu0 0.0
        %2047 = vmatpush2.msra.mxu0 0.0
        %2048 = vmatprep.subr.mxu0 0.0
        %2049 = vmatpush2.msra.mxu0 0.0
        %2050 = vmatprep.subr.mxu0 0.0
        %2051 = vmatpush2.msra.mxu0 0.0
        %2052 = vmatprep.mubr.f32.mxu0 0.0
        %2053 = vmatmul.mubr.f32.gmra.mxu0 %v1986
        %v2054 = vpop.f32.mrf.mxu0
        %v2055 = vadd.f32 %v1983, %v2054
        %v2056 = vpop.f32.mrf.mxu0
        %2057 = vdwg.mxu0
        %2058 = vrot.lane.b32.xlu0 %v1041, 48
        %v2059 = vpop.permute.xlu0 %2058
        %2062 = vrot.lane.b32.xlu0 %v1977, 112
        %v2063 = vpop.permute.xlu0 %2062
        %v2066 = vsel %vm1050, %v1973, 0
        %2068 = vmatprep.subr.mxu0 0.0
        %2069 = vmatpush1.msra.mxu0 0.0
        %2070 = vmatprep.subr.mxu0 0.0
        %2071 = vmatpush1.msra.mxu0 0.0
        %2072 = vmatprep.subr.mxu0 0.0
        %2073 = vmatpush1.msra.mxu0 0.0
        %2074 = vmatprep.subr.mxu0 0.0
        %2075 = vmatpush1.msra.mxu0 0.0
        %2076 = vmatprep.subr.mxu0 0.0
        %2077 = vmatpush1.msra.mxu0 0.0
        %2078 = vmatprep.subr.mxu0 0.0
        %2079 = vmatpush1.msra.mxu0 0.0
        %2080 = vmatprep.subr.mxu0 0.0
        %2081 = vmatpush1.msra.mxu0 0.0
        %2082 = vmatprep.subr.mxu0 0.0
        %2083 = vmatpush1.msra.mxu0 0.0
        %2084 = vmatprep.subr.mxu0 0.0
        %2085 = vmatpush1.msra.mxu0 0.0
        %2086 = vmatprep.subr.mxu0 0.0
        %2087 = vmatpush1.msra.mxu0 0.0
        %2088 = vmatprep.subr.mxu0 0.0
        %2089 = vmatpush1.msra.mxu0 0.0
        %2090 = vmatprep.subr.mxu0 0.0
        %2091 = vmatpush1.msra.mxu0 0.0
        %2092 = vmatprep.subr.mxu0 0.0
        %2093 = vmatpush1.msra.mxu0 0.0
        %2094 = vmatprep.subr.mxu0 0.0
        %2095 = vmatpush1.msra.mxu0 0.0
        %2096 = vmatprep.subr.mxu0 0.0
        %2097 = vmatpush1.msra.mxu0 0.0
        %2098 = vmatprep.subr.mxu0 0.0
        %2099 = vmatpush1.msra.mxu0 %v2059
        %2100 = vmatprep.subr.mxu0 0.0
        %2101 = vmatpush2.msra.mxu0 0.0
        %2102 = vmatprep.subr.mxu0 0.0
        %2103 = vmatpush2.msra.mxu0 0.0
        %2104 = vmatprep.subr.mxu0 0.0
        %2105 = vmatpush2.msra.mxu0 0.0
        %2106 = vmatprep.subr.mxu0 0.0
        %2107 = vmatpush2.msra.mxu0 0.0
        %2108 = vmatprep.subr.mxu0 0.0
        %2109 = vmatpush2.msra.mxu0 0.0
        %2110 = vmatprep.subr.mxu0 0.0
        %2111 = vmatpush2.msra.mxu0 0.0
        %2112 = vmatprep.subr.mxu0 0.0
        %2113 = vmatpush2.msra.mxu0 0.0
        %2114 = vmatprep.subr.mxu0 0.0
        %2115 = vmatpush2.msra.mxu0 0.0
        %2116 = vmatprep.subr.mxu0 0.0
        %2117 = vmatpush2.msra.mxu0 0.0
        %2118 = vmatprep.subr.mxu0 0.0
        %2119 = vmatpush2.msra.mxu0 0.0
        %2120 = vmatprep.subr.mxu0 0.0
        %2121 = vmatpush2.msra.mxu0 0.0
        %2122 = vmatprep.subr.mxu0 0.0
        %2123 = vmatpush2.msra.mxu0 0.0
        %2124 = vmatprep.subr.mxu0 0.0
        %2125 = vmatpush2.msra.mxu0 0.0
        %2126 = vmatprep.subr.mxu0 0.0
        %2127 = vmatpush2.msra.mxu0 0.0
        %2128 = vmatprep.subr.mxu0 0.0
        %2129 = vmatpush2.msra.mxu0 0.0
        %2130 = vmatprep.subr.mxu0 0.0
        %2131 = vmatpush2.msra.mxu0 0.0
        %2132 = vmatprep.mubr.f32.mxu0 0.0
        %2133 = vmatmul.mubr.f32.gmra.mxu0 %v2066
        %v2134 = vpop.f32.mrf.mxu0
        %v2135 = vadd.f32 %v2063, %v2134
        %v2136 = vpop.f32.mrf.mxu0
        %2137 = vdwg.mxu0
        %2138 = vrot.lane.b32.xlu0 %v1044, 104
        %v2139 = vpop.permute.xlu0 %2138
        %2140 = vrot.lane.b32.xlu0 %v1038, 72
        %v2141 = vpop.permute.xlu0 %2140
        %v2142 = vsel %vm1050, %v2139, 0
        %v2144 = vsel %vm1050, %v2141, 0
        %2146 = vmatprep.subr.mxu0 0.0
        %2147 = vmatpush1.xpose.msra.mxu0 0.0
        %2148 = vmatprep.subr.mxu0 0.0
        %2149 = vmatpush1.xpose.msra.mxu0 0.0
        %2150 = vmatprep.subr.mxu0 0.0
        %2151 = vmatpush1.xpose.msra.mxu0 0.0
        %2152 = vmatprep.subr.mxu0 0.0
        %2153 = vmatpush1.xpose.msra.mxu0 0.0
        %2154 = vmatprep.subr.mxu0 0.0
        %2155 = vmatpush1.xpose.msra.mxu0 0.0
        %2156 = vmatprep.subr.mxu0 0.0
        %2157 = vmatpush1.xpose.msra.mxu0 0.0
        %2158 = vmatprep.subr.mxu0 0.0
        %2159 = vmatpush1.xpose.msra.mxu0 0.0
        %2160 = vmatprep.subr.mxu0 0.0
        %2161 = vmatpush1.xpose.msra.mxu0 0.0
        %2162 = vmatprep.subr.mxu0 0.0
        %2163 = vmatpush1.xpose.msra.mxu0 0.0
        %2164 = vmatprep.subr.mxu0 0.0
        %2165 = vmatpush1.xpose.msra.mxu0 0.0
        %2166 = vmatprep.subr.mxu0 0.0
        %2167 = vmatpush1.xpose.msra.mxu0 0.0
        %2168 = vmatprep.subr.mxu0 0.0
        %2169 = vmatpush1.xpose.msra.mxu0 0.0
        %2170 = vmatprep.subr.mxu0 0.0
        %2171 = vmatpush1.xpose.msra.mxu0 0.0
        %2172 = vmatprep.subr.mxu0 0.0
        %2173 = vmatpush1.xpose.msra.mxu0 0.0
        %2174 = vmatprep.subr.mxu0 0.0
        %2175 = vmatpush1.xpose.msra.mxu0 0.0
        %2176 = vmatprep.subr.mxu0 0.0
        %2177 = vmatpush1.xpose.msra.mxu0 %v2144
        %2178 = vmatprep.subr.mxu0 0.0
        %2179 = vmatpush2.xpose.msra.mxu0 0.0
        %2180 = vmatprep.subr.mxu0 0.0
        %2181 = vmatpush2.xpose.msra.mxu0 0.0
        %2182 = vmatprep.subr.mxu0 0.0
        %2183 = vmatpush2.xpose.msra.mxu0 0.0
        %2184 = vmatprep.subr.mxu0 0.0
        %2185 = vmatpush2.xpose.msra.mxu0 0.0
        %2186 = vmatprep.subr.mxu0 0.0
        %2187 = vmatpush2.xpose.msra.mxu0 0.0
        %2188 = vmatprep.subr.mxu0 0.0
        %2189 = vmatpush2.xpose.msra.mxu0 0.0
        %2190 = vmatprep.subr.mxu0 0.0
        %2191 = vmatpush2.xpose.msra.mxu0 0.0
        %2192 = vmatprep.subr.mxu0 0.0
        %2193 = vmatpush2.xpose.msra.mxu0 0.0
        %2194 = vmatprep.subr.mxu0 0.0
        %2195 = vmatpush2.xpose.msra.mxu0 0.0
        %2196 = vmatprep.subr.mxu0 0.0
        %2197 = vmatpush2.xpose.msra.mxu0 0.0
        %2198 = vmatprep.subr.mxu0 0.0
        %2199 = vmatpush2.xpose.msra.mxu0 0.0
        %2200 = vmatprep.subr.mxu0 0.0
        %2201 = vmatpush2.xpose.msra.mxu0 0.0
        %2202 = vmatprep.subr.mxu0 0.0
        %2203 = vmatpush2.xpose.msra.mxu0 0.0
        %2204 = vmatprep.subr.mxu0 0.0
        %2205 = vmatpush2.xpose.msra.mxu0 0.0
        %2206 = vmatprep.subr.mxu0 0.0
        %2207 = vmatpush2.xpose.msra.mxu0 0.0
        %2208 = vmatprep.subr.mxu0 0.0
        %2209 = vmatpush2.xpose.msra.mxu0 0.0
        %2210 = vmatprep.mubr.f32.mxu0 0.0
        %2211 = vmatmul.mubr.f32.gmra.mxu0 %v2142
        %v2212 = vpop.f32.mrf.mxu0
        %v2213 = vadd.f32 0.0, %v2212
        %v2214 = vpop.f32.mrf.mxu0
        %2215 = vdwg.mxu0
        %2216 = vrot.lane.b32.xlu0 %v1045, 104
        %v2217 = vpop.permute.xlu0 %2216
        %2218 = vrot.lane.b32.xlu0 %v1041, 72
        %v2219 = vpop.permute.xlu0 %2218
        %v2220 = vsel %vm1050, %v2217, 0
        %v2222 = vsel %vm1050, %v2219, 0
        %2224 = vmatprep.subr.mxu0 0.0
        %2225 = vmatpush1.xpose.msra.mxu0 0.0
        %2226 = vmatprep.subr.mxu0 0.0
        %2227 = vmatpush1.xpose.msra.mxu0 0.0
        %2228 = vmatprep.subr.mxu0 0.0
        %2229 = vmatpush1.xpose.msra.mxu0 0.0
        %2230 = vmatprep.subr.mxu0 0.0
        %2231 = vmatpush1.xpose.msra.mxu0 0.0
        %2232 = vmatprep.subr.mxu0 0.0
        %2233 = vmatpush1.xpose.msra.mxu0 0.0
        %2234 = vmatprep.subr.mxu0 0.0
        %2235 = vmatpush1.xpose.msra.mxu0 0.0
        %2236 = vmatprep.subr.mxu0 0.0
        %2237 = vmatpush1.xpose.msra.mxu0 0.0
        %2238 = vmatprep.subr.mxu0 0.0
        %2239 = vmatpush1.xpose.msra.mxu0 0.0
        %2240 = vmatprep.subr.mxu0 0.0
        %2241 = vmatpush1.xpose.msra.mxu0 0.0
        %2242 = vmatprep.subr.mxu0 0.0
        %2243 = vmatpush1.xpose.msra.mxu0 0.0
        %2244 = vmatprep.subr.mxu0 0.0
        %2245 = vmatpush1.xpose.msra.mxu0 0.0
        %2246 = vmatprep.subr.mxu0 0.0
        %2247 = vmatpush1.xpose.msra.mxu0 0.0
        %2248 = vmatprep.subr.mxu0 0.0
        %2249 = vmatpush1.xpose.msra.mxu0 0.0
        %2250 = vmatprep.subr.mxu0 0.0
        %2251 = vmatpush1.xpose.msra.mxu0 0.0
        %2252 = vmatprep.subr.mxu0 0.0
        %2253 = vmatpush1.xpose.msra.mxu0 0.0
        %2254 = vmatprep.subr.mxu0 0.0
        %2255 = vmatpush1.xpose.msra.mxu0 %v2222
        %2256 = vmatprep.subr.mxu0 0.0
        %2257 = vmatpush2.xpose.msra.mxu0 0.0
        %2258 = vmatprep.subr.mxu0 0.0
        %2259 = vmatpush2.xpose.msra.mxu0 0.0
        %2260 = vmatprep.subr.mxu0 0.0
        %2261 = vmatpush2.xpose.msra.mxu0 0.0
        %2262 = vmatprep.subr.mxu0 0.0
        %2263 = vmatpush2.xpose.msra.mxu0 0.0
        %2264 = vmatprep.subr.mxu0 0.0
        %2265 = vmatpush2.xpose.msra.mxu0 0.0
        %2266 = vmatprep.subr.mxu0 0.0
        %2267 = vmatpush2.xpose.msra.mxu0 0.0
        %2268 = vmatprep.subr.mxu0 0.0
        %2269 = vmatpush2.xpose.msra.mxu0 0.0
        %2270 = vmatprep.subr.mxu0 0.0
        %2271 = vmatpush2.xpose.msra.mxu0 0.0
        %2272 = vmatprep.subr.mxu0 0.0
        %2273 = vmatpush2.xpose.msra.mxu0 0.0
        %2274 = vmatprep.subr.mxu0 0.0
        %2275 = vmatpush2.xpose.msra.mxu0 0.0
        %2276 = vmatprep.subr.mxu0 0.0
        %2277 = vmatpush2.xpose.msra.mxu0 0.0
        %2278 = vmatprep.subr.mxu0 0.0
        %2279 = vmatpush2.xpose.msra.mxu0 0.0
        %2280 = vmatprep.subr.mxu0 0.0
        %2281 = vmatpush2.xpose.msra.mxu0 0.0
        %2282 = vmatprep.subr.mxu0 0.0
        %2283 = vmatpush2.xpose.msra.mxu0 0.0
        %2284 = vmatprep.subr.mxu0 0.0
        %2285 = vmatpush2.xpose.msra.mxu0 0.0
        %2286 = vmatprep.subr.mxu0 0.0
        %2287 = vmatpush2.xpose.msra.mxu0 0.0
        %2288 = vmatprep.mubr.f32.mxu0 0.0
        %2289 = vmatmul.mubr.f32.gmra.mxu0 %v2220
        %v2290 = vpop.f32.mrf.mxu0
        %v2291 = vadd.f32 0.0, %v2290
        %v2292 = vpop.f32.mrf.mxu0
        %2293 = vdwg.mxu0
        %2294 = vrot.lane.b32.xlu0 %v1208, 104
        %v2295 = vpop.permute.xlu0 %2294
        %2296 = vrot.lane.b32.xlu0 %v1209, 104
        %v2297 = vpop.permute.xlu0 %2296
        %v2300 = vsel %vm1050, %v2295, 0.0
        %2301 = vadd.xlane.f32.xlu0 %v2300
        %v2302 = vpop.xlane.xlu0 %2301
        %v2303 = vsel %vm1050, %v2297, 0.0
        %2304 = vadd.xlane.f32.xlu0 %v2303
        %v2305 = vpop.xlane.xlu0 %2304
        %v2306 = vsel %vm1050, %v2213, -inf
        %2307 = vmax.xlane.f32.xlu0 %v2306
        %v2308 = vpop.xlane.xlu0 %2307
        %v2309 = vsel %vm1050, %v2291, -inf
        %2310 = vmax.xlane.f32.xlu0 %v2309
        %v2311 = vpop.xlane.xlu0 %2310
        %v2312 = vmax.f32 %v2308, %v2302
        %v2313 = vmax.f32 %v2311, %v2305
        %v2314 = vsub.f32 %v2213, %v2312
        %v2315 = vsub.f32 %v2291, %v2313
        %v2316 = vmul.f32 %v2314, 1.442695
        %v2317 = vpow.pop %v2316
        %v2318 = vmul.f32 %v2315, 1.442695
        %v2319 = vpow.pop %v2318
        %v2320 = vsub.f32 %v2302, %v2312
        %v2321 = vsub.f32 %v2305, %v2313
        %v2322 = vmul.f32 %v2320, 1.442695
        %v2323 = vpow.pop %v2322
        %v2324 = vmul.f32 %v2321, 1.442695
        %v2325 = vpow.pop %v2324
        %v2326 = vsel %vm1050, %v2317, 0.0
        %2327 = vadd.xlane.f32.xlu0 %v2326
        %v2328 = vpop.xlane.xlu0 %2327
        %v2329 = vsel %vm1050, %v2319, 0.0
        %2330 = vadd.xlane.f32.xlu0 %v2329
        %v2331 = vpop.xlane.xlu0 %2330
        %v2332 = vadd.f32 %v2328, %v2323
        %v2333 = vadd.f32 %v2331, %v2325
        %v2334 = vrcp.pop %v2332
        %v2335 = vrcp.pop %v2333
        %v2336 = vmul.f32 %v2317, %v2334
        %v2337 = vmul.f32 %v2319, %v2335
        %v2338 = vmul.f32 %v2323, %v2334
        %v2339 = vmul.f32 %v2325, %v2335
        %v2340 = vmul.f32 %v2338, %v1253
        %v2341 = vmul.f32 %v2339, %v1253
        %2342 = vrot.lane.b32.xlu0 %v1038, 40
        %v2343 = vpop.permute.xlu0 %2342
        %2346 = vrot.lane.b32.xlu0 %v2340, 104
        %v2347 = vpop.permute.xlu0 %2346
        %v2350 = vsel %vm1050, %v2336, 0
        %2352 = vmatprep.subr.mxu0 0.0
        %2353 = vmatpush1.msra.mxu0 0.0
        %2354 = vmatprep.subr.mxu0 0.0
        %2355 = vmatpush1.msra.mxu0 0.0
        %2356 = vmatprep.subr.mxu0 0.0
        %2357 = vmatpush1.msra.mxu0 0.0
        %2358 = vmatprep.subr.mxu0 0.0
        %2359 = vmatpush1.msra.mxu0 0.0
        %2360 = vmatprep.subr.mxu0 0.0
        %2361 = vmatpush1.msra.mxu0 0.0
        %2362 = vmatprep.subr.mxu0 0.0
        %2363 = vmatpush1.msra.mxu0 0.0
        %2364 = vmatprep.subr.mxu0 0.0
        %2365 = vmatpush1.msra.mxu0 0.0
        %2366 = vmatprep.subr.mxu0 0.0
        %2367 = vmatpush1.msra.mxu0 0.0
        %2368 = vmatprep.subr.mxu0 0.0
        %2369 = vmatpush1.msra.mxu0 0.0
        %2370 = vmatprep.subr.mxu0 0.0
        %2371 = vmatpush1.msra.mxu0 0.0
        %2372 = vmatprep.subr.mxu0 0.0
        %2373 = vmatpush1.msra.mxu0 0.0
        %2374 = vmatprep.subr.mxu0 0.0
        %2375 = vmatpush1.msra.mxu0 0.0
        %2376 = vmatprep.subr.mxu0 0.0
        %2377 = vmatpush1.msra.mxu0 0.0
        %2378 = vmatprep.subr.mxu0 0.0
        %2379 = vmatpush1.msra.mxu0 0.0
        %2380 = vmatprep.subr.mxu0 0.0
        %2381 = vmatpush1.msra.mxu0 0.0
        %2382 = vmatprep.subr.mxu0 0.0
        %2383 = vmatpush1.msra.mxu0 %v2343
        %2384 = vmatprep.subr.mxu0 0.0
        %2385 = vmatpush2.msra.mxu0 0.0
        %2386 = vmatprep.subr.mxu0 0.0
        %2387 = vmatpush2.msra.mxu0 0.0
        %2388 = vmatprep.subr.mxu0 0.0
        %2389 = vmatpush2.msra.mxu0 0.0
        %2390 = vmatprep.subr.mxu0 0.0
        %2391 = vmatpush2.msra.mxu0 0.0
        %2392 = vmatprep.subr.mxu0 0.0
        %2393 = vmatpush2.msra.mxu0 0.0
        %2394 = vmatprep.subr.mxu0 0.0
        %2395 = vmatpush2.msra.mxu0 0.0
        %2396 = vmatprep.subr.mxu0 0.0
        %2397 = vmatpush2.msra.mxu0 0.0
        %2398 = vmatprep.subr.mxu0 0.0
        %2399 = vmatpush2.msra.mxu0 0.0
        %2400 = vmatprep.subr.mxu0 0.0
        %2401 = vmatpush2.msra.mxu0 0.0
        %2402 = vmatprep.subr.mxu0 0.0
        %2403 = vmatpush2.msra.mxu0 0.0
        %2404 = vmatprep.subr.mxu0 0.0
        %2405 = vmatpush2.msra.mxu0 0.0
        %2406 = vmatprep.subr.mxu0 0.0
        %2407 = vmatpush2.msra.mxu0 0.0
        %2408 = vmatprep.subr.mxu0 0.0
        %2409 = vmatpush2.msra.mxu0 0.0
        %2410 = vmatprep.subr.mxu0 0.0
        %2411 = vmatpush2.msra.mxu0 0.0
        %2412 = vmatprep.subr.mxu0 0.0
        %2413 = vmatpush2.msra.mxu0 0.0
        %2414 = vmatprep.subr.mxu0 0.0
        %2415 = vmatpush2.msra.mxu0 0.0
        %2416 = vmatprep.mubr.f32.mxu0 0.0
        %2417 = vmatmul.mubr.f32.gmra.mxu0 %v2350
        %v2418 = vpop.f32.mrf.mxu0
        %v2419 = vadd.f32 %v2347, %v2418
        %v2420 = vpop.f32.mrf.mxu0
        %2421 = vdwg.mxu0
        %2422 = vrot.lane.b32.xlu0 %v1041, 40
        %v2423 = vpop.permute.xlu0 %2422
        %2426 = vrot.lane.b32.xlu0 %v2341, 104
        %v2427 = vpop.permute.xlu0 %2426
        %v2430 = vsel %vm1050, %v2337, 0
        %2432 = vmatprep.subr.mxu0 0.0
        %2433 = vmatpush1.msra.mxu0 0.0
        %2434 = vmatprep.subr.mxu0 0.0
        %2435 = vmatpush1.msra.mxu0 0.0
        %2436 = vmatprep.subr.mxu0 0.0
        %2437 = vmatpush1.msra.mxu0 0.0
        %2438 = vmatprep.subr.mxu0 0.0
        %2439 = vmatpush1.msra.mxu0 0.0
        %2440 = vmatprep.subr.mxu0 0.0
        %2441 = vmatpush1.msra.mxu0 0.0
        %2442 = vmatprep.subr.mxu0 0.0
        %2443 = vmatpush1.msra.mxu0 0.0
        %2444 = vmatprep.subr.mxu0 0.0
        %2445 = vmatpush1.msra.mxu0 0.0
        %2446 = vmatprep.subr.mxu0 0.0
        %2447 = vmatpush1.msra.mxu0 0.0
        %2448 = vmatprep.subr.mxu0 0.0
        %2449 = vmatpush1.msra.mxu0 0.0
        %2450 = vmatprep.subr.mxu0 0.0
        %2451 = vmatpush1.msra.mxu0 0.0
        %2452 = vmatprep.subr.mxu0 0.0
        %2453 = vmatpush1.msra.mxu0 0.0
        %2454 = vmatprep.subr.mxu0 0.0
        %2455 = vmatpush1.msra.mxu0 0.0
        %2456 = vmatprep.subr.mxu0 0.0
        %2457 = vmatpush1.msra.mxu0 0.0
        %2458 = vmatprep.subr.mxu0 0.0
        %2459 = vmatpush1.msra.mxu0 0.0
        %2460 = vmatprep.subr.mxu0 0.0
        %2461 = vmatpush1.msra.mxu0 0.0
        %2462 = vmatprep.subr.mxu0 0.0
        %2463 = vmatpush1.msra.mxu0 %v2423
        %2464 = vmatprep.subr.mxu0 0.0
        %2465 = vmatpush2.msra.mxu0 0.0
        %2466 = vmatprep.subr.mxu0 0.0
        %2467 = vmatpush2.msra.mxu0 0.0
        %2468 = vmatprep.subr.mxu0 0.0
        %2469 = vmatpush2.msra.mxu0 0.0
        %2470 = vmatprep.subr.mxu0 0.0
        %2471 = vmatpush2.msra.mxu0 0.0
        %2472 = vmatprep.subr.mxu0 0.0
        %2473 = vmatpush2.msra.mxu0 0.0
        %2474 = vmatprep.subr.mxu0 0.0
        %2475 = vmatpush2.msra.mxu0 0.0
        %2476 = vmatprep.subr.mxu0 0.0
        %2477 = vmatpush2.msra.mxu0 0.0
        %2478 = vmatprep.subr.mxu0 0.0
        %2479 = vmatpush2.msra.mxu0 0.0
        %2480 = vmatprep.subr.mxu0 0.0
        %2481 = vmatpush2.msra.mxu0 0.0
        %2482 = vmatprep.subr.mxu0 0.0
        %2483 = vmatpush2.msra.mxu0 0.0
        %2484 = vmatprep.subr.mxu0 0.0
        %2485 = vmatpush2.msra.mxu0 0.0
        %2486 = vmatprep.subr.mxu0 0.0
        %2487 = vmatpush2.msra.mxu0 0.0
        %2488 = vmatprep.subr.mxu0 0.0
        %2489 = vmatpush2.msra.mxu0 0.0
        %2490 = vmatprep.subr.mxu0 0.0
        %2491 = vmatpush2.msra.mxu0 0.0
        %2492 = vmatprep.subr.mxu0 0.0
        %2493 = vmatpush2.msra.mxu0 0.0
        %2494 = vmatprep.subr.mxu0 0.0
        %2495 = vmatpush2.msra.mxu0 0.0
        %2496 = vmatprep.mubr.f32.mxu0 0.0
        %2497 = vmatmul.mubr.f32.gmra.mxu0 %v2430
        %v2498 = vpop.f32.mrf.mxu0
        %v2499 = vadd.f32 %v2427, %v2498
        %v2500 = vpop.f32.mrf.mxu0
        %2501 = vdwg.mxu0
        %2504 = vrot.lane.b32.xlu0 %v1691, 8
        %v2505 = vpop.permute.xlu0 %2504
        %2506 = vrot.lane.b32.xlu0 %v1771, 8
        %v2507 = vpop.permute.xlu0 %2506
        %2512 = vrot.lane.b32.xlu0 %v2055, 16
        %v2513 = vpop.permute.xlu0 %2512
        %2514 = vrot.lane.b32.xlu0 %v2135, 16
        %v2515 = vpop.permute.xlu0 %2514
        %2520 = vrot.lane.b32.xlu0 %v2419, 24
        %v2521 = vpop.permute.xlu0 %2520
        %2522 = vrot.lane.b32.xlu0 %v2499, 24
        %v2523 = vpop.permute.xlu0 %2522
        %v2526 = vsel %vm1050, %v1329, %v2505
        %v2527 = vsel %vm1050, %v1405, %v2507
        %vm2528 = vcmask 130048
        %v2529 = vsel %vm2528, %v2526, %v2513
        %v2530 = vsel %vm2528, %v2527, %v2515
        %vm2531 = vcmask 195584
        %v2532 = vsel %vm2531, %v2529, %v2521
        %v2533 = vsel %vm2531, %v2530, %v2523
        %v2534 = vpack.c.bf16 %v2533, %v2532
        %v2535 = vld [vmem:[%s8] sm:$0xf]
        %v2536 = vld [vmem:[%s8 + $0x4] sm:$0xf]
        %v2537 = vld [vmem:[%s8 + $0x8] sm:$0xf]
        %v2538 = vld [vmem:[%s8 + $0xc] sm:$0xf]
        %v2539 = vld [vmem:[%s9] sm:$0x1]
        %v2541 = vlaneseq
        %v2542 = vshrl.u32 %v2541, 7
        %v2543 = vsub.s32 0, %v2542
        %v2544 = vrot.slane %v2539, %v2543
        %v2550 = vunpack.c.l.b16 %v2535
        %v2551 = vunpack.c.l.b16 %v2536
        %v2552 = vunpack.c.l.b16 %v2537
        %v2553 = vunpack.c.l.b16 %v2538
        %v2554 = vpack.c.b16 %v2551, %v2550
        %v2555 = vpack.c.b16 %v2553, %v2552
        %v2559 = vsel %vm712, %v2534, 0
        %2561 = vmatprep.subr.bf16.mxu0 0
        %2562 = vmatpush1.bf16.msra.mxu0 0
        %2563 = vmatprep.subr.bf16.mxu0 0
        %2564 = vmatpush1.bf16.msra.mxu0 0
        %2565 = vmatprep.subr.bf16.mxu0 0
        %2566 = vmatpush1.bf16.msra.mxu0 0
        %2567 = vmatprep.subr.bf16.mxu0 0
        %2568 = vmatpush1.bf16.msra.mxu0 0
        %2569 = vmatprep.subr.bf16.mxu0 0
        %2570 = vmatpush1.bf16.msra.mxu0 0
        %2571 = vmatprep.subr.bf16.mxu0 0
        %2572 = vmatpush1.bf16.msra.mxu0 0
        %2573 = vmatprep.subr.bf16.mxu0 0
        %2574 = vmatpush1.bf16.msra.mxu0 %v2555
        %2575 = vmatprep.subr.bf16.mxu0 0
        %2576 = vmatpush1.bf16.msra.mxu0 %v2554
        %2577 = vmatprep.subr.bf16.mxu0 0
        %2578 = vmatpush2.bf16.msra.mxu0 0
        %2579 = vmatprep.subr.bf16.mxu0 0
        %2580 = vmatpush2.bf16.msra.mxu0 0
        %2581 = vmatprep.subr.bf16.mxu0 0
        %2582 = vmatpush2.bf16.msra.mxu0 0
        %2583 = vmatprep.subr.bf16.mxu0 0
        %2584 = vmatpush2.bf16.msra.mxu0 0
        %2585 = vmatprep.subr.bf16.mxu0 0
        %2586 = vmatpush2.bf16.msra.mxu0 0
        %2587 = vmatprep.subr.bf16.mxu0 0
        %2588 = vmatpush2.bf16.msra.mxu0 0
        %2589 = vmatprep.subr.bf16.mxu0 0
        %2590 = vmatpush2.bf16.msra.mxu0 0
        %2591 = vmatprep.subr.bf16.mxu0 0
        %2592 = vmatpush2.bf16.msra.mxu0 0
        %2593 = vmatprep.mubr.bf16.mxu0 0
        %2594 = vmatmul.mubr.bf16.gmra.mxu0 %v2559
        %v2595 = vpop.f32.mrf.mxu0
        %v2596 = vadd.f32 %v2544, %v2595
        %v2597 = vpop.f32.mrf.mxu0
        %v2598 = vpop.f32.mrf.mxu0
        %v2599 = vadd.f32 %v2544, %v2598
        %v2600 = vpop.f32.mrf.mxu0
        %2601 = vdwg.mxu0
        %v2602 = vld [vmem:[%s14] sm:$0x7]
        %v2603 = vld [vmem:[%s15] sm:$0x7]
        %v2604 = vadd.f32 %v2596, %v974
        %v2605 = vadd.f32 %v2599, %v975
        %v2606 = vsel %vm712, %v2604, 0.0
        %2607 = vadd.xlane.f32.xlu0 %v2606
        %v2608 = vpop.xlane.xlu0 %2607
        %v2609 = vsel %vm712, %v2605, 0.0
        %2610 = vadd.xlane.f32.xlu0 %v2609
        %v2611 = vpop.xlane.xlu0 %2610
        %v2612 = vrcp.pop 32.0
        %v2613 = vmul.f32 %v2608, %v2612
        %v2614 = vmul.f32 %v2611, %v2612
        %v2615 = vsub.f32 %v2604, %v2613
        %v2616 = vsub.f32 %v2605, %v2614
        %v2617 = vmul.f32 %v2615, %v2615
        %v2618 = vmul.f32 %v2616, %v2616
        %v2619 = vsel %vm712, %v2617, 0.0
        %2620 = vadd.xlane.f32.xlu0 %v2619
        %v2621 = vpop.xlane.xlu0 %2620
        %v2622 = vsel %vm712, %v2618, 0.0
        %2623 = vadd.xlane.f32.xlu0 %v2622
        %v2624 = vpop.xlane.xlu0 %2623
        %v2625 = vmul.f32 %v2621, %v2612
        %v2626 = vmul.f32 %v2624, %v2612
        %v2627 = vadd.f32 %v2625, 1e-05
        %v2628 = vadd.f32 %v2626, 1e-05
        %v2629 = vrsqrt.pop %v2627
        %v2630 = vrsqrt.pop %v2628
        %v2631 = vmul.f32 %v2615, %v2629
        %v2632 = vmul.f32 %v2616, %v2630
        %v2633 = vlaneseq
        %v2634 = vshrl.u32 %v2633, 7
        %v2635 = vsub.s32 0, %v2634
        %v2636 = vrot.slane %v2602, %v2635
        %v2637 = vmul.f32 %v2631, %v2636
        %v2638 = vmul.f32 %v2632, %v2636
        %v2639 = vlaneseq
        %v2640 = vshrl.u32 %v2639, 7
        %v2641 = vsub.s32 0, %v2640
        %v2642 = vrot.slane %v2603, %v2641
        %v2643 = vadd.f32 %v2637, %v2642
        %v2644 = vadd.f32 %v2638, %v2642
        %v2645 = vpack.c.bf16 %v2644, %v2643
        %v2646 = vld [vmem:[%s10] sm:$0xf]
        %v2647 = vld [vmem:[%s10 + $0x4] sm:$0xf]
        %v2648 = vld [vmem:[%s10 + $0x8] sm:$0xf]
        %v2649 = vld [vmem:[%s10 + $0xc] sm:$0xf]
        %v2650 = vld [vmem:[%s11] sm:$0x1]
        %v2652 = vlaneseq
        %v2653 = vshrl.u32 %v2652, 7
        %v2654 = vsub.s32 0, %v2653
        %v2655 = vrot.slane %v2650, %v2654
        %v2661 = vunpack.c.l.b16 %v2646
        %v2662 = vunpack.c.l.b16 %v2647
        %v2663 = vunpack.c.l.b16 %v2648
        %v2664 = vunpack.c.l.b16 %v2649
        %v2665 = vpack.c.b16 %v2662, %v2661
        %v2666 = vpack.c.b16 %v2664, %v2663
        %v2670 = vsel %vm712, %v2645, 0
        %2672 = vmatprep.subr.bf16.mxu0 0
        %2673 = vmatpush1.bf16.msra.mxu0 0
        %2674 = vmatprep.subr.bf16.mxu0 0
        %2675 = vmatpush1.bf16.msra.mxu0 0
        %2676 = vmatprep.subr.bf16.mxu0 0
        %2677 = vmatpush1.bf16.msra.mxu0 0
        %2678 = vmatprep.subr.bf16.mxu0 0
        %2679 = vmatpush1.bf16.msra.mxu0 0
        %2680 = vmatprep.subr.bf16.mxu0 0
        %2681 = vmatpush1.bf16.msra.mxu0 0
        %2682 = vmatprep.subr.bf16.mxu0 0
        %2683 = vmatpush1.bf16.msra.mxu0 0
        %2684 = vmatprep.subr.bf16.mxu0 0
        %2685 = vmatpush1.bf16.msra.mxu0 %v2666
        %2686 = vmatprep.subr.bf16.mxu0 0
        %2687 = vmatpush1.bf16.msra.mxu0 %v2665
        %2688 = vmatprep.subr.bf16.mxu0 0
        %2689 = vmatpush2.bf16.msra.mxu0 0
        %2690 = vmatprep.subr.bf16.mxu0 0
        %2691 = vmatpush2.bf16.msra.mxu0 0
        %2692 = vmatprep.subr.bf16.mxu0 0
        %2693 = vmatpush2.bf16.msra.mxu0 0
        %2694 = vmatprep.subr.bf16.mxu0 0
        %2695 = vmatpush2.bf16.msra.mxu0 0
        %2696 = vmatprep.subr.bf16.mxu0 0
        %2697 = vmatpush2.bf16.msra.mxu0 0
        %2698 = vmatprep.subr.bf16.mxu0 0
        %2699 = vmatpush2.bf16.msra.mxu0 0
        %2700 = vmatprep.subr.bf16.mxu0 0
        %2701 = vmatpush2.bf16.msra.mxu0 0
        %2702 = vmatprep.subr.bf16.mxu0 0
        %2703 = vmatpush2.bf16.msra.mxu0 0
        %2704 = vmatprep.mubr.bf16.mxu0 0
        %2705 = vmatmul.mubr.bf16.gmra.mxu0 %v2670
        %v2706 = vpop.f32.mrf.mxu0
        %v2707 = vadd.f32 %v2655, %v2706
        %v2708 = vpop.f32.mrf.mxu0
        %v2709 = vpop.f32.mrf.mxu0
        %v2710 = vadd.f32 %v2655, %v2709
        %v2711 = vpop.f32.mrf.mxu0
        %2712 = vdwg.mxu0
        %v2713 = vmax.f32 %v2707, 0.0
        %v2714 = vmax.f32 %v2710, 0.0
        %v2715 = vpack.c.bf16 %v2714, %v2713
        %v2716 = vld [vmem:[%s12] sm:$0xf]
        %v2717 = vld [vmem:[%s12 + $0x4] sm:$0xf]
        %v2718 = vld [vmem:[%s12 + $0x8] sm:$0xf]
        %v2719 = vld [vmem:[%s12 + $0xc] sm:$0xf]
        %v2720 = vld [vmem:[%s12 + $0x10] sm:$0xf]
        %v2721 = vld [vmem:[%s12 + $0x14] sm:$0xf]
        %v2722 = vld [vmem:[%s12 + $0x18] sm:$0xf]
        %v2723 = vld [vmem:[%s12 + $0x1c] sm:$0xf]
        %v2724 = vld [vmem:[%s12 + $0x20] sm:$0xf]
        %v2725 = vld [vmem:[%s12 + $0x24] sm:$0xf]
        %v2726 = vld [vmem:[%s12 + $0x28] sm:$0xf]
        %v2727 = vld [vmem:[%s12 + $0x2c] sm:$0xf]
        %v2728 = vld [vmem:[%s12 + $0x30] sm:$0xf]
        %v2729 = vld [vmem:[%s12 + $0x34] sm:$0xf]
        %v2730 = vld [vmem:[%s12 + $0x38] sm:$0xf]
        %v2731 = vld [vmem:[%s12 + $0x3c] sm:$0xf]
        %v2732 = vld [vmem:[%s13] sm:$0x1]
        %v2734 = vlaneseq
        %v2735 = vshrl.u32 %v2734, 7
        %v2736 = vsub.s32 0, %v2735
        %v2737 = vrot.slane %v2732, %v2736
        %v2755 = vunpack.c.l.b16 %v2716
        %v2756 = vunpack.c.l.b16 %v2717
        %v2757 = vunpack.c.l.b16 %v2718
        %v2758 = vunpack.c.l.b16 %v2719
        %v2759 = vunpack.c.l.b16 %v2720
        %v2760 = vunpack.c.l.b16 %v2721
        %v2761 = vunpack.c.l.b16 %v2722
        %v2762 = vunpack.c.l.b16 %v2723
        %v2763 = vunpack.c.l.b16 %v2724
        %v2764 = vunpack.c.l.b16 %v2725
        %v2765 = vunpack.c.l.b16 %v2726
        %v2766 = vunpack.c.l.b16 %v2727
        %v2767 = vunpack.c.l.b16 %v2728
        %v2768 = vunpack.c.l.b16 %v2729
        %v2769 = vunpack.c.l.b16 %v2730
        %v2770 = vunpack.c.l.b16 %v2731
        %v2771 = vpack.c.b16 %v2756, %v2755
        %v2772 = vpack.c.b16 %v2758, %v2757
        %v2773 = vpack.c.b16 %v2760, %v2759
        %v2774 = vpack.c.b16 %v2762, %v2761
        %v2775 = vpack.c.b16 %v2764, %v2763
        %v2776 = vpack.c.b16 %v2766, %v2765
        %v2777 = vpack.c.b16 %v2768, %v2767
        %v2778 = vpack.c.b16 %v2770, %v2769
        %2787 = vmatprep.subr.bf16.mxu0 0
        %2788 = vmatpush1.bf16.msra.mxu0 %v2778
        %2789 = vmatprep.subr.bf16.mxu0 0
        %2790 = vmatpush1.bf16.msra.mxu0 %v2777
        %2791 = vmatprep.subr.bf16.mxu0 0
        %2792 = vmatpush1.bf16.msra.mxu0 %v2776
        %2793 = vmatprep.subr.bf16.mxu0 0
        %2794 = vmatpush1.bf16.msra.mxu0 %v2775
        %2795 = vmatprep.subr.bf16.mxu0 0
        %2796 = vmatpush1.bf16.msra.mxu0 %v2774
        %2797 = vmatprep.subr.bf16.mxu0 0
        %2798 = vmatpush1.bf16.msra.mxu0 %v2773
        %2799 = vmatprep.subr.bf16.mxu0 0
        %2800 = vmatpush1.bf16.msra.mxu0 %v2772
        %2801 = vmatprep.subr.bf16.mxu0 0
        %2802 = vmatpush1.bf16.msra.mxu0 %v2771
        %2803 = vmatprep.subr.bf16.mxu0 0
        %2804 = vmatpush2.bf16.msra.mxu0 0
        %2805 = vmatprep.subr.bf16.mxu0 0
        %2806 = vmatpush2.bf16.msra.mxu0 0
        %2807 = vmatprep.subr.bf16.mxu0 0
        %2808 = vmatpush2.bf16.msra.mxu0 0
        %2809 = vmatprep.subr.bf16.mxu0 0
        %2810 = vmatpush2.bf16.msra.mxu0 0
        %2811 = vmatprep.subr.bf16.mxu0 0
        %2812 = vmatpush2.bf16.msra.mxu0 0
        %2813 = vmatprep.subr.bf16.mxu0 0
        %2814 = vmatpush2.bf16.msra.mxu0 0
        %2815 = vmatprep.subr.bf16.mxu0 0
        %2816 = vmatpush2.bf16.msra.mxu0 0
        %2817 = vmatprep.subr.bf16.mxu0 0
        %2818 = vmatpush2.bf16.msra.mxu0 0
        %2819 = vmatprep.mubr.bf16.mxu0 0
        %2820 = vmatmul.mubr.bf16.gmra.mxu0 %v2715
        %v2821 = vpop.f32.mrf.mxu0
        %v2822 = vadd.f32 %v2737, %v2821
        %v2823 = vpop.f32.mrf.mxu0
        %v2824 = vpop.f32.mrf.mxu0
        %v2825 = vadd.f32 %v2737, %v2824
        %v2826 = vpop.f32.mrf.mxu0
        %2827 = vdwg.mxu0
        %v2828 = vadd.f32 %v2643, %v2822
        %v2829 = vadd.f32 %v2644, %v2825
        %v2830 = vsel %vm712, %v2828, 0.0
        %2831 = vadd.xlane.f32.xlu0 %v2830
        %v2832 = vpop.xlane.xlu0 %2831
        %v2833 = vsel %vm712, %v2829, 0.0
        %2834 = vadd.xlane.f32.xlu0 %v2833
        %v2835 = vpop.xlane.xlu0 %2834
        %v2836 = vmul.f32 %v2832, %v2612
        %v2837 = vmul.f32 %v2835, %v2612
        %v2838 = vsub.f32 %v2828, %v2836
        %v2839 = vsub.f32 %v2829, %v2837
        %v2840 = vmul.f32 %v2838, %v2838
        %v2841 = vmul.f32 %v2839, %v2839
        %v2842 = vsel %vm712, %v2840, 0.0
        %2843 = vadd.xlane.f32.xlu0 %v2842
        %v2844 = vpop.xlane.xlu0 %2843
        %v2845 = vsel %vm712, %v2841, 0.0
        %2846 = vadd.xlane.f32.xlu0 %v2845
        %v2847 = vpop.xlane.xlu0 %2846
        %v2848 = vmul.f32 %v2844, %v2612
        %v2849 = vmul.f32 %v2847, %v2612
        %v2850 = vadd.f32 %v2848, 1e-05
        %v2851 = vadd.f32 %v2849, 1e-05
        %v2852 = vrsqrt.pop %v2850
        %v2853 = vrsqrt.pop %v2851
        %v2854 = vmul.f32 %v2838, %v2852
        %v2855 = vmul.f32 %v2839, %v2853
        %v2856 = vlaneseq
        %v2857 = vshrl.u32 %v2856, 7
        %v2858 = vsub.s32 1, %v2857
        %v2859 = vrot.slane %v2602, %v2858
        %v2860 = vmul.f32 %v2854, %v2859
        %v2861 = vmul.f32 %v2855, %v2859
        %v2862 = vlaneseq
        %v2863 = vshrl.u32 %v2862, 7
        %v2864 = vsub.s32 1, %v2863
        %v2865 = vrot.slane %v2603, %v2864
        %v2866 = vadd.f32 %v2860, %v2865
        %v2867 = vadd.f32 %v2861, %v2865
        %v2868 = vadd.f32 %v2643, %v2866
        %v2869 = vadd.f32 %v2644, %v2867
        %v2870 = vsel %vm712, %v2868, 0.0
        %2871 = vadd.xlane.f32.xlu0 %v2870
        %v2872 = vpop.xlane.xlu0 %2871
        %v2873 = vsel %vm712, %v2869, 0.0
        %2874 = vadd.xlane.f32.xlu0 %v2873
        %v2875 = vpop.xlane.xlu0 %2874
        %v2876 = vmul.f32 %v2872, %v2612
        %v2877 = vmul.f32 %v2875, %v2612
        %v2878 = vsub.f32 %v2868, %v2876
        %v2879 = vsub.f32 %v2869, %v2877
        %v2880 = vmul.f32 %v2878, %v2878
        %v2881 = vmul.f32 %v2879, %v2879
        %v2882 = vsel %vm712, %v2880, 0.0
        %2883 = vadd.xlane.f32.xlu0 %v2882
        %v2884 = vpop.xlane.xlu0 %2883
        %v2885 = vsel %vm712, %v2881, 0.0
        %2886 = vadd.xlane.f32.xlu0 %v2885
        %v2887 = vpop.xlane.xlu0 %2886
        %v2888 = vmul.f32 %v2884, %v2612
        %v2889 = vmul.f32 %v2887, %v2612
        %v2890 = vadd.f32 %v2888, 1e-05
        %v2891 = vadd.f32 %v2889, 1e-05
        %v2892 = vrsqrt.pop %v2890
        %v2893 = vrsqrt.pop %v2891
        %v2894 = vmul.f32 %v2878, %v2892
        %v2895 = vmul.f32 %v2879, %v2893
        %v2896 = vlaneseq
        %v2897 = vshrl.u32 %v2896, 7
        %v2898 = vsub.s32 2, %v2897
        %v2899 = vrot.slane %v2602, %v2898
        %v2900 = vmul.f32 %v2894, %v2899
        %v2901 = vmul.f32 %v2895, %v2899
        %v2902 = vlaneseq
        %v2903 = vshrl.u32 %v2902, 7
        %v2904 = vsub.s32 2, %v2903
        %v2905 = vrot.slane %v2603, %v2904
        %v2906 = vadd.f32 %v2900, %v2905
        %v2907 = vadd.f32 %v2901, %v2905
        %v2908 = vpack.c.bf16 %v2907, %v2906
        %s2909 = scalar_lea.vmem %s5, 16
        %v2910 = vld [vmem:[%s2909] sm:$0xf]
        %v2911 = vld [vmem:[%s2909 + $0x4] sm:$0xf]
        %v2912 = vld [vmem:[%s2909 + $0x8] sm:$0xf]
        %v2913 = vld [vmem:[%s2909 + $0xc] sm:$0xf]
        %s2914 = scalar_lea.vmem [#allocation5], 1
        %v2915 = vld [vmem:[%s2914] sm:$0x1]
        %v2917 = vlaneseq
        %v2918 = vshrl.u32 %v2917, 7
        %v2919 = vsub.s32 0, %v2918
        %v2920 = vrot.slane %v2915, %v2919
        %v2926 = vunpack.c.l.b16 %v2910
        %v2927 = vunpack.c.l.b16 %v2911
        %v2928 = vunpack.c.l.b16 %v2912
        %v2929 = vunpack.c.l.b16 %v2913
        %v2930 = vpack.c.b16 %v2927, %v2926
        %v2931 = vpack.c.b16 %v2929, %v2928
        %v2935 = vsel %vm712, %v2908, 0
        %2937 = vmatprep.subr.bf16.mxu0 0
        %2938 = vmatpush1.bf16.msra.mxu0 0
        %2939 = vmatprep.subr.bf16.mxu0 0
        %2940 = vmatpush1.bf16.msra.mxu0 0
        %2941 = vmatprep.subr.bf16.mxu0 0
        %2942 = vmatpush1.bf16.msra.mxu0 0
        %2943 = vmatprep.subr.bf16.mxu0 0
        %2944 = vmatpush1.bf16.msra.mxu0 0
        %2945 = vmatprep.subr.bf16.mxu0 0
        %2946 = vmatpush1.bf16.msra.mxu0 0
        %2947 = vmatprep.subr.bf16.mxu0 0
        %2948 = vmatpush1.bf16.msra.mxu0 0
        %2949 = vmatprep.subr.bf16.mxu0 0
        %2950 = vmatpush1.bf16.msra.mxu0 %v2931
        %2951 = vmatprep.subr.bf16.mxu0 0
        %2952 = vmatpush1.bf16.msra.mxu0 %v2930
        %2953 = vmatprep.subr.bf16.mxu0 0
        %2954 = vmatpush2.bf16.msra.mxu0 0
        %2955 = vmatprep.subr.bf16.mxu0 0
        %2956 = vmatpush2.bf16.msra.mxu0 0
        %2957 = vmatprep.subr.bf16.mxu0 0
        %2958 = vmatpush2.bf16.msra.mxu0 0
        %2959 = vmatprep.subr.bf16.mxu0 0
        %2960 = vmatpush2.bf16.msra.mxu0 0
        %2961 = vmatprep.subr.bf16.mxu0 0
        %2962 = vmatpush2.bf16.msra.mxu0 0
        %2963 = vmatprep.subr.bf16.mxu0 0
        %2964 = vmatpush2.bf16.msra.mxu0 0
        %2965 = vmatprep.subr.bf16.mxu0 0
        %2966 = vmatpush2.bf16.msra.mxu0 0
        %2967 = vmatprep.subr.bf16.mxu0 0
        %2968 = vmatpush2.bf16.msra.mxu0 0
        %2969 = vmatprep.mubr.bf16.mxu0 0
        %2970 = vmatmul.mubr.bf16.gmra.mxu0 %v2935
        %v2971 = vpop.f32.mrf.mxu0
        %v2972 = vadd.f32 %v2920, %v2971
        %v2973 = vpop.f32.mrf.mxu0
        %v2974 = vpop.f32.mrf.mxu0
        %v2975 = vadd.f32 %v2920, %v2974
        %v2976 = vpop.f32.mrf.mxu0
        %2977 = vdwg.mxu0
        %v2978 = vmul.f32 %v2972, 0.35355338
        %v2979 = vmul.f32 %v2975, 0.35355338
        %s2980 = scalar_lea.vmem %s7, 2
        %v2981 = vld [vmem:[%s2980] sm:$0x3]
        %2983 = vrot.lane.b32.xlu0 %v2972, 96
        %v2984 = vpop.permute.xlu0 %2983
        %v2986 = vsel %vm1050, %v2978, 0
        %v2988 = vsel %vm1050, %v2984, 0
        %2990 = vmatprep.subr.mxu0 0.0
        %2991 = vmatpush1.xpose.msra.mxu0 0.0
        %2992 = vmatprep.subr.mxu0 0.0
        %2993 = vmatpush1.xpose.msra.mxu0 0.0
        %2994 = vmatprep.subr.mxu0 0.0
        %2995 = vmatpush1.xpose.msra.mxu0 0.0
        %2996 = vmatprep.subr.mxu0 0.0
        %2997 = vmatpush1.xpose.msra.mxu0 0.0
        %2998 = vmatprep.subr.mxu0 0.0
        %2999 = vmatpush1.xpose.msra.mxu0 0.0
        %3000 = vmatprep.subr.mxu0 0.0
        %3001 = vmatpush1.xpose.msra.mxu0 0.0
        %3002 = vmatprep.subr.mxu0 0.0
        %3003 = vmatpush1.xpose.msra.mxu0 0.0
        %3004 = vmatprep.subr.mxu0 0.0
        %3005 = vmatpush1.xpose.msra.mxu0 0.0
        %3006 = vmatprep.subr.mxu0 0.0
        %3007 = vmatpush1.xpose.msra.mxu0 0.0
        %3008 = vmatprep.subr.mxu0 0.0
        %3009 = vmatpush1.xpose.msra.mxu0 0.0
        %3010 = vmatprep.subr.mxu0 0.0
        %3011 = vmatpush1.xpose.msra.mxu0 0.0
        %3012 = vmatprep.subr.mxu0 0.0
        %3013 = vmatpush1.xpose.msra.mxu0 0.0
        %3014 = vmatprep.subr.mxu0 0.0
        %3015 = vmatpush1.xpose.msra.mxu0 0.0
        %3016 = vmatprep.subr.mxu0 0.0
        %3017 = vmatpush1.xpose.msra.mxu0 0.0
        %3018 = vmatprep.subr.mxu0 0.0
        %3019 = vmatpush1.xpose.msra.mxu0 0.0
        %3020 = vmatprep.subr.mxu0 0.0
        %3021 = vmatpush1.xpose.msra.mxu0 %v2988
        %3022 = vmatprep.subr.mxu0 0.0
        %3023 = vmatpush2.xpose.msra.mxu0 0.0
        %3024 = vmatprep.subr.mxu0 0.0
        %3025 = vmatpush2.xpose.msra.mxu0 0.0
        %3026 = vmatprep.subr.mxu0 0.0
        %3027 = vmatpush2.xpose.msra.mxu0 0.0
        %3028 = vmatprep.subr.mxu0 0.0
        %3029 = vmatpush2.xpose.msra.mxu0 0.0
        %3030 = vmatprep.subr.mxu0 0.0
        %3031 = vmatpush2.xpose.msra.mxu0 0.0
        %3032 = vmatprep.subr.mxu0 0.0
        %3033 = vmatpush2.xpose.msra.mxu0 0.0
        %3034 = vmatprep.subr.mxu0 0.0
        %3035 = vmatpush2.xpose.msra.mxu0 0.0
        %3036 = vmatprep.subr.mxu0 0.0
        %3037 = vmatpush2.xpose.msra.mxu0 0.0
        %3038 = vmatprep.subr.mxu0 0.0
        %3039 = vmatpush2.xpose.msra.mxu0 0.0
        %3040 = vmatprep.subr.mxu0 0.0
        %3041 = vmatpush2.xpose.msra.mxu0 0.0
        %3042 = vmatprep.subr.mxu0 0.0
        %3043 = vmatpush2.xpose.msra.mxu0 0.0
        %3044 = vmatprep.subr.mxu0 0.0
        %3045 = vmatpush2.xpose.msra.mxu0 0.0
        %3046 = vmatprep.subr.mxu0 0.0
        %3047 = vmatpush2.xpose.msra.mxu0 0.0
        %3048 = vmatprep.subr.mxu0 0.0
        %3049 = vmatpush2.xpose.msra.mxu0 0.0
        %3050 = vmatprep.subr.mxu0 0.0
        %3051 = vmatpush2.xpose.msra.mxu0 0.0
        %3052 = vmatprep.subr.mxu0 0.0
        %3053 = vmatpush2.xpose.msra.mxu0 0.0
        %3054 = vmatprep.mubr.f32.mxu0 0.0
        %3055 = vmatmul.mubr.f32.gmra.mxu0 %v2986
        %v3056 = vpop.f32.mrf.mxu0
        %v3057 = vadd.f32 0.0, %v3056
        %v3058 = vpop.f32.mrf.mxu0
        %3059 = vdwg.mxu0
        %3061 = vrot.lane.b32.xlu0 %v2975, 96
        %v3062 = vpop.permute.xlu0 %3061
        %v3064 = vsel %vm1050, %v2979, 0
        %v3066 = vsel %vm1050, %v3062, 0
        %3068 = vmatprep.subr.mxu0 0.0
        %3069 = vmatpush1.xpose.msra.mxu0 0.0
        %3070 = vmatprep.subr.mxu0 0.0
        %3071 = vmatpush1.xpose.msra.mxu0 0.0
        %3072 = vmatprep.subr.mxu0 0.0
        %3073 = vmatpush1.xpose.msra.mxu0 0.0
        %3074 = vmatprep.subr.mxu0 0.0
        %3075 = vmatpush1.xpose.msra.mxu0 0.0
        %3076 = vmatprep.subr.mxu0 0.0
        %3077 = vmatpush1.xpose.msra.mxu0 0.0
        %3078 = vmatprep.subr.mxu0 0.0
        %3079 = vmatpush1.xpose.msra.mxu0 0.0
        %3080 = vmatprep.subr.mxu0 0.0
        %3081 = vmatpush1.xpose.msra.mxu0 0.0
        %3082 = vmatprep.subr.mxu0 0.0
        %3083 = vmatpush1.xpose.msra.mxu0 0.0
        %3084 = vmatprep.subr.mxu0 0.0
        %3085 = vmatpush1.xpose.msra.mxu0 0.0
        %3086 = vmatprep.subr.mxu0 0.0
        %3087 = vmatpush1.xpose.msra.mxu0 0.0
        %3088 = vmatprep.subr.mxu0 0.0
        %3089 = vmatpush1.xpose.msra.mxu0 0.0
        %3090 = vmatprep.subr.mxu0 0.0
        %3091 = vmatpush1.xpose.msra.mxu0 0.0
        %3092 = vmatprep.subr.mxu0 0.0
        %3093 = vmatpush1.xpose.msra.mxu0 0.0
        %3094 = vmatprep.subr.mxu0 0.0
        %3095 = vmatpush1.xpose.msra.mxu0 0.0
        %3096 = vmatprep.subr.mxu0 0.0
        %3097 = vmatpush1.xpose.msra.mxu0 0.0
        %3098 = vmatprep.subr.mxu0 0.0
        %3099 = vmatpush1.xpose.msra.mxu0 %v3066
        %3100 = vmatprep.subr.mxu0 0.0
        %3101 = vmatpush2.xpose.msra.mxu0 0.0
        %3102 = vmatprep.subr.mxu0 0.0
        %3103 = vmatpush2.xpose.msra.mxu0 0.0
        %3104 = vmatprep.subr.mxu0 0.0
        %3105 = vmatpush2.xpose.msra.mxu0 0.0
        %3106 = vmatprep.subr.mxu0 0.0
        %3107 = vmatpush2.xpose.msra.mxu0 0.0
        %3108 = vmatprep.subr.mxu0 0.0
        %3109 = vmatpush2.xpose.msra.mxu0 0.0
        %3110 = vmatprep.subr.mxu0 0.0
        %3111 = vmatpush2.xpose.msra.mxu0 0.0
        %3112 = vmatprep.subr.mxu0 0.0
        %3113 = vmatpush2.xpose.msra.mxu0 0.0
        %3114 = vmatprep.subr.mxu0 0.0
        %3115 = vmatpush2.xpose.msra.mxu0 0.0
        %3116 = vmatprep.subr.mxu0 0.0
        %3117 = vmatpush2.xpose.msra.mxu0 0.0
        %3118 = vmatprep.subr.mxu0 0.0
        %3119 = vmatpush2.xpose.msra.mxu0 0.0
        %3120 = vmatprep.subr.mxu0 0.0
        %3121 = vmatpush2.xpose.msra.mxu0 0.0
        %3122 = vmatprep.subr.mxu0 0.0
        %3123 = vmatpush2.xpose.msra.mxu0 0.0
        %3124 = vmatprep.subr.mxu0 0.0
        %3125 = vmatpush2.xpose.msra.mxu0 0.0
        %3126 = vmatprep.subr.mxu0 0.0
        %3127 = vmatpush2.xpose.msra.mxu0 0.0
        %3128 = vmatprep.subr.mxu0 0.0
        %3129 = vmatpush2.xpose.msra.mxu0 0.0
        %3130 = vmatprep.subr.mxu0 0.0
        %3131 = vmatpush2.xpose.msra.mxu0 0.0
        %3132 = vmatprep.mubr.f32.mxu0 0.0
        %3133 = vmatmul.mubr.f32.gmra.mxu0 %v3064
        %v3134 = vpop.f32.mrf.mxu0
        %v3135 = vadd.f32 0.0, %v3134
        %v3136 = vpop.f32.mrf.mxu0
        %3137 = vdwg.mxu0
        %v3138 = vlaneseq
        %v3139 = vshrl.u32 %v3138, 7
        %v3140 = vsub.s32 0, %v3139
        %v3141 = vrot.slane %v2981, %v3140
        %v3142 = vmul.f32 %v2978, %v3141
        %v3143 = vmul.f32 %v2979, %v3141
        %v3144 = vsel %vm1050, %v3142, 0.0
        %3145 = vadd.xlane.f32.xlu0 %v3144
        %v3146 = vpop.xlane.xlu0 %3145
        %v3147 = vsel %vm1050, %v3143, 0.0
        %3148 = vadd.xlane.f32.xlu0 %v3147
        %v3149 = vpop.xlane.xlu0 %3148
        %v3150 = vsel %vm1050, %v3057, -inf
        %3151 = vmax.xlane.f32.xlu0 %v3150
        %v3152 = vpop.xlane.xlu0 %3151
        %v3153 = vsel %vm1050, %v3135, -inf
        %3154 = vmax.xlane.f32.xlu0 %v3153
        %v3155 = vpop.xlane.xlu0 %3154
        %v3156 = vmax.f32 %v3152, %v3146
        %v3157 = vmax.f32 %v3155, %v3149
        %v3158 = vsub.f32 %v3057, %v3156
        %v3159 = vsub.f32 %v3135, %v3157
        %v3160 = vmul.f32 %v3158, 1.442695
        %v3161 = vpow.pop %v3160
        %v3162 = vmul.f32 %v3159, 1.442695
        %v3163 = vpow.pop %v3162
        %v3164 = vsub.f32 %v3146, %v3156
        %v3165 = vsub.f32 %v3149, %v3157
        %v3166 = vmul.f32 %v3164, 1.442695
        %v3167 = vpow.pop %v3166
        %v3168 = vmul.f32 %v3165, 1.442695
        %v3169 = vpow.pop %v3168
        %v3170 = vsel %vm1050, %v3161, 0.0
        %3171 = vadd.xlane.f32.xlu0 %v3170
        %v3172 = vpop.xlane.xlu0 %3171
        %v3173 = vsel %vm1050, %v3163, 0.0
        %3174 = vadd.xlane.f32.xlu0 %v3173
        %v3175 = vpop.xlane.xlu0 %3174
        %v3176 = vadd.f32 %v3172, %v3167
        %v3177 = vadd.f32 %v3175, %v3169
        %v3178 = vrcp.pop %v3176
        %v3179 = vrcp.pop %v3177
        %v3180 = vmul.f32 %v3161, %v3178
        %v3181 = vmul.f32 %v3163, %v3179
        %v3182 = vmul.f32 %v3167, %v3178
        %v3183 = vmul.f32 %v3169, %v3179
        %v3184 = vlaneseq
        %v3185 = vshrl.u32 %v3184, 7
        %v3186 = vsub.s32 1, %v3185
        %v3187 = vrot.slane %v2981, %v3186
        %v3188 = vmul.f32 %v3182, %v3187
        %v3189 = vmul.f32 %v3183, %v3187
        %3190 = vrot.lane.b32.xlu0 %v2972, 64
        %v3191 = vpop.permute.xlu0 %3190
        %v3194 = vsel %vm1050, %v3180, 0
        %3196 = vmatprep.subr.mxu0 0.0
        %3197 = vmatpush1.msra.mxu0 0.0
        %3198 = vmatprep.subr.mxu0 0.0
        %3199 = vmatpush1.msra.mxu0 0.0
        %3200 = vmatprep.subr.mxu0 0.0
        %3201 = vmatpush1.msra.mxu0 0.0
        %3202 = vmatprep.subr.mxu0 0.0
        %3203 = vmatpush1.msra.mxu0 0.0
        %3204 = vmatprep.subr.mxu0 0.0
        %3205 = vmatpush1.msra.mxu0 0.0
        %3206 = vmatprep.subr.mxu0 0.0
        %3207 = vmatpush1.msra.mxu0 0.0
        %3208 = vmatprep.subr.mxu0 0.0
        %3209 = vmatpush1.msra.mxu0 0.0
        %3210 = vmatprep.subr.mxu0 0.0
        %3211 = vmatpush1.msra.mxu0 0.0
        %3212 = vmatprep.subr.mxu0 0.0
        %3213 = vmatpush1.msra.mxu0 0.0
        %3214 = vmatprep.subr.mxu0 0.0
        %3215 = vmatpush1.msra.mxu0 0.0
        %3216 = vmatprep.subr.mxu0 0.0
        %3217 = vmatpush1.msra.mxu0 0.0
        %3218 = vmatprep.subr.mxu0 0.0
        %3219 = vmatpush1.msra.mxu0 0.0
        %3220 = vmatprep.subr.mxu0 0.0
        %3221 = vmatpush1.msra.mxu0 0.0
        %3222 = vmatprep.subr.mxu0 0.0
        %3223 = vmatpush1.msra.mxu0 0.0
        %3224 = vmatprep.subr.mxu0 0.0
        %3225 = vmatpush1.msra.mxu0 0.0
        %3226 = vmatprep.subr.mxu0 0.0
        %3227 = vmatpush1.msra.mxu0 %v3191
        %3228 = vmatprep.subr.mxu0 0.0
        %3229 = vmatpush2.msra.mxu0 0.0
        %3230 = vmatprep.subr.mxu0 0.0
        %3231 = vmatpush2.msra.mxu0 0.0
        %3232 = vmatprep.subr.mxu0 0.0
        %3233 = vmatpush2.msra.mxu0 0.0
        %3234 = vmatprep.subr.mxu0 0.0
        %3235 = vmatpush2.msra.mxu0 0.0
        %3236 = vmatprep.subr.mxu0 0.0
        %3237 = vmatpush2.msra.mxu0 0.0
        %3238 = vmatprep.subr.mxu0 0.0
        %3239 = vmatpush2.msra.mxu0 0.0
        %3240 = vmatprep.subr.mxu0 0.0
        %3241 = vmatpush2.msra.mxu0 0.0
        %3242 = vmatprep.subr.mxu0 0.0
        %3243 = vmatpush2.msra.mxu0 0.0
        %3244 = vmatprep.subr.mxu0 0.0
        %3245 = vmatpush2.msra.mxu0 0.0
        %3246 = vmatprep.subr.mxu0 0.0
        %3247 = vmatpush2.msra.mxu0 0.0
        %3248 = vmatprep.subr.mxu0 0.0
        %3249 = vmatpush2.msra.mxu0 0.0
        %3250 = vmatprep.subr.mxu0 0.0
        %3251 = vmatpush2.msra.mxu0 0.0
        %3252 = vmatprep.subr.mxu0 0.0
        %3253 = vmatpush2.msra.mxu0 0.0
        %3254 = vmatprep.subr.mxu0 0.0
        %3255 = vmatpush2.msra.mxu0 0.0
        %3256 = vmatprep.subr.mxu0 0.0
        %3257 = vmatpush2.msra.mxu0 0.0
        %3258 = vmatprep.subr.mxu0 0.0
        %3259 = vmatpush2.msra.mxu0 0.0
        %3260 = vmatprep.mubr.f32.mxu0 0.0
        %3261 = vmatmul.mubr.f32.gmra.mxu0 %v3194
        %v3262 = vpop.f32.mrf.mxu0
        %v3263 = vadd.f32 %v3188, %v3262
        %v3264 = vpop.f32.mrf.mxu0
        %3265 = vdwg.mxu0
        %3266 = vrot.lane.b32.xlu0 %v2975, 64
        %v3267 = vpop.permute.xlu0 %3266
        %v3270 = vsel %vm1050, %v3181, 0
        %3272 = vmatprep.subr.mxu0 0.0
        %3273 = vmatpush1.msra.mxu0 0.0
        %3274 = vmatprep.subr.mxu0 0.0
        %3275 = vmatpush1.msra.mxu0 0.0
        %3276 = vmatprep.subr.mxu0 0.0
        %3277 = vmatpush1.msra.mxu0 0.0
        %3278 = vmatprep.subr.mxu0 0.0
        %3279 = vmatpush1.msra.mxu0 0.0
        %3280 = vmatprep.subr.mxu0 0.0
        %3281 = vmatpush1.msra.mxu0 0.0
        %3282 = vmatprep.subr.mxu0 0.0
        %3283 = vmatpush1.msra.mxu0 0.0
        %3284 = vmatprep.subr.mxu0 0.0
        %3285 = vmatpush1.msra.mxu0 0.0
        %3286 = vmatprep.subr.mxu0 0.0
        %3287 = vmatpush1.msra.mxu0 0.0
        %3288 = vmatprep.subr.mxu0 0.0
        %3289 = vmatpush1.msra.mxu0 0.0
        %3290 = vmatprep.subr.mxu0 0.0
        %3291 = vmatpush1.msra.mxu0 0.0
        %3292 = vmatprep.subr.mxu0 0.0
        %3293 = vmatpush1.msra.mxu0 0.0
        %3294 = vmatprep.subr.mxu0 0.0
        %3295 = vmatpush1.msra.mxu0 0.0
        %3296 = vmatprep.subr.mxu0 0.0
        %3297 = vmatpush1.msra.mxu0 0.0
        %3298 = vmatprep.subr.mxu0 0.0
        %3299 = vmatpush1.msra.mxu0 0.0
        %3300 = vmatprep.subr.mxu0 0.0
        %3301 = vmatpush1.msra.mxu0 0.0
        %3302 = vmatprep.subr.mxu0 0.0
        %3303 = vmatpush1.msra.mxu0 %v3267
        %3304 = vmatprep.subr.mxu0 0.0
        %3305 = vmatpush2.msra.mxu0 0.0
        %3306 = vmatprep.subr.mxu0 0.0
        %3307 = vmatpush2.msra.mxu0 0.0
        %3308 = vmatprep.subr.mxu0 0.0
        %3309 = vmatpush2.msra.mxu0 0.0
        %3310 = vmatprep.subr.mxu0 0.0
        %3311 = vmatpush2.msra.mxu0 0.0
        %3312 = vmatprep.subr.mxu0 0.0
        %3313 = vmatpush2.msra.mxu0 0.0
        %3314 = vmatprep.subr.mxu0 0.0
        %3315 = vmatpush2.msra.mxu0 0.0
        %3316 = vmatprep.subr.mxu0 0.0
        %3317 = vmatpush2.msra.mxu0 0.0
        %3318 = vmatprep.subr.mxu0 0.0
        %3319 = vmatpush2.msra.mxu0 0.0
        %3320 = vmatprep.subr.mxu0 0.0
        %3321 = vmatpush2.msra.mxu0 0.0
        %3322 = vmatprep.subr.mxu0 0.0
        %3323 = vmatpush2.msra.mxu0 0.0
        %3324 = vmatprep.subr.mxu0 0.0
        %3325 = vmatpush2.msra.mxu0 0.0
        %3326 = vmatprep.subr.mxu0 0.0
        %3327 = vmatpush2.msra.mxu0 0.0
        %3328 = vmatprep.subr.mxu0 0.0
        %3329 = vmatpush2.msra.mxu0 0.0
        %3330 = vmatprep.subr.mxu0 0.0
        %3331 = vmatpush2.msra.mxu0 0.0
        %3332 = vmatprep.subr.mxu0 0.0
        %3333 = vmatpush2.msra.mxu0 0.0
        %3334 = vmatprep.subr.mxu0 0.0
        %3335 = vmatpush2.msra.mxu0 0.0
        %3336 = vmatprep.mubr.f32.mxu0 0.0
        %3337 = vmatmul.mubr.f32.gmra.mxu0 %v3270
        %v3338 = vpop.f32.mrf.mxu0
        %v3339 = vadd.f32 %v3189, %v3338
        %v3340 = vpop.f32.mrf.mxu0
        %3341 = vdwg.mxu0
        %3342 = vrot.lane.b32.xlu0 %v2978, 120
        %v3343 = vpop.permute.xlu0 %3342
        %3344 = vrot.lane.b32.xlu0 %v2972, 88
        %v3345 = vpop.permute.xlu0 %3344
        %v3346 = vsel %vm1050, %v3343, 0
        %v3348 = vsel %vm1050, %v3345, 0
        %3350 = vmatprep.subr.mxu0 0.0
        %3351 = vmatpush1.xpose.msra.mxu0 0.0
        %3352 = vmatprep.subr.mxu0 0.0
        %3353 = vmatpush1.xpose.msra.mxu0 0.0
        %3354 = vmatprep.subr.mxu0 0.0
        %3355 = vmatpush1.xpose.msra.mxu0 0.0
        %3356 = vmatprep.subr.mxu0 0.0
        %3357 = vmatpush1.xpose.msra.mxu0 0.0
        %3358 = vmatprep.subr.mxu0 0.0
        %3359 = vmatpush1.xpose.msra.mxu0 0.0
        %3360 = vmatprep.subr.mxu0 0.0
        %3361 = vmatpush1.xpose.msra.mxu0 0.0
        %3362 = vmatprep.subr.mxu0 0.0
        %3363 = vmatpush1.xpose.msra.mxu0 0.0
        %3364 = vmatprep.subr.mxu0 0.0
        %3365 = vmatpush1.xpose.msra.mxu0 0.0
        %3366 = vmatprep.subr.mxu0 0.0
        %3367 = vmatpush1.xpose.msra.mxu0 0.0
        %3368 = vmatprep.subr.mxu0 0.0
        %3369 = vmatpush1.xpose.msra.mxu0 0.0
        %3370 = vmatprep.subr.mxu0 0.0
        %3371 = vmatpush1.xpose.msra.mxu0 0.0
        %3372 = vmatprep.subr.mxu0 0.0
        %3373 = vmatpush1.xpose.msra.mxu0 0.0
        %3374 = vmatprep.subr.mxu0 0.0
        %3375 = vmatpush1.xpose.msra.mxu0 0.0
        %3376 = vmatprep.subr.mxu0 0.0
        %3377 = vmatpush1.xpose.msra.mxu0 0.0
        %3378 = vmatprep.subr.mxu0 0.0
        %3379 = vmatpush1.xpose.msra.mxu0 0.0
        %3380 = vmatprep.subr.mxu0 0.0
        %3381 = vmatpush1.xpose.msra.mxu0 %v3348
        %3382 = vmatprep.subr.mxu0 0.0
        %3383 = vmatpush2.xpose.msra.mxu0 0.0
        %3384 = vmatprep.subr.mxu0 0.0
        %3385 = vmatpush2.xpose.msra.mxu0 0.0
        %3386 = vmatprep.subr.mxu0 0.0
        %3387 = vmatpush2.xpose.msra.mxu0 0.0
        %3388 = vmatprep.subr.mxu0 0.0
        %3389 = vmatpush2.xpose.msra.mxu0 0.0
        %3390 = vmatprep.subr.mxu0 0.0
        %3391 = vmatpush2.xpose.msra.mxu0 0.0
        %3392 = vmatprep.subr.mxu0 0.0
        %3393 = vmatpush2.xpose.msra.mxu0 0.0
        %3394 = vmatprep.subr.mxu0 0.0
        %3395 = vmatpush2.xpose.msra.mxu0 0.0
        %3396 = vmatprep.subr.mxu0 0.0
        %3397 = vmatpush2.xpose.msra.mxu0 0.0
        %3398 = vmatprep.subr.mxu0 0.0
        %3399 = vmatpush2.xpose.msra.mxu0 0.0
        %3400 = vmatprep.subr.mxu0 0.0
        %3401 = vmatpush2.xpose.msra.mxu0 0.0
        %3402 = vmatprep.subr.mxu0 0.0
        %3403 = vmatpush2.xpose.msra.mxu0 0.0
        %3404 = vmatprep.subr.mxu0 0.0
        %3405 = vmatpush2.xpose.msra.mxu0 0.0
        %3406 = vmatprep.subr.mxu0 0.0
        %3407 = vmatpush2.xpose.msra.mxu0 0.0
        %3408 = vmatprep.subr.mxu0 0.0
        %3409 = vmatpush2.xpose.msra.mxu0 0.0
        %3410 = vmatprep.subr.mxu0 0.0
        %3411 = vmatpush2.xpose.msra.mxu0 0.0
        %3412 = vmatprep.subr.mxu0 0.0
        %3413 = vmatpush2.xpose.msra.mxu0 0.0
        %3414 = vmatprep.mubr.f32.mxu0 0.0
        %3415 = vmatmul.mubr.f32.gmra.mxu0 %v3346
        %v3416 = vpop.f32.mrf.mxu0
        %v3417 = vadd.f32 0.0, %v3416
        %v3418 = vpop.f32.mrf.mxu0
        %3419 = vdwg.mxu0
        %3420 = vrot.lane.b32.xlu0 %v2979, 120
        %v3421 = vpop.permute.xlu0 %3420
        %3422 = vrot.lane.b32.xlu0 %v2975, 88
        %v3423 = vpop.permute.xlu0 %3422
        %v3424 = vsel %vm1050, %v3421, 0
        %v3426 = vsel %vm1050, %v3423, 0
        %3428 = vmatprep.subr.mxu0 0.0
        %3429 = vmatpush1.xpose.msra.mxu0 0.0
        %3430 = vmatprep.subr.mxu0 0.0
        %3431 = vmatpush1.xpose.msra.mxu0 0.0
        %3432 = vmatprep.subr.mxu0 0.0
        %3433 = vmatpush1.xpose.msra.mxu0 0.0
        %3434 = vmatprep.subr.mxu0 0.0
        %3435 = vmatpush1.xpose.msra.mxu0 0.0
        %3436 = vmatprep.subr.mxu0 0.0
        %3437 = vmatpush1.xpose.msra.mxu0 0.0
        %3438 = vmatprep.subr.mxu0 0.0
        %3439 = vmatpush1.xpose.msra.mxu0 0.0
        %3440 = vmatprep.subr.mxu0 0.0
        %3441 = vmatpush1.xpose.msra.mxu0 0.0
        %3442 = vmatprep.subr.mxu0 0.0
        %3443 = vmatpush1.xpose.msra.mxu0 0.0
        %3444 = vmatprep.subr.mxu0 0.0
        %3445 = vmatpush1.xpose.msra.mxu0 0.0
        %3446 = vmatprep.subr.mxu0 0.0
        %3447 = vmatpush1.xpose.msra.mxu0 0.0
        %3448 = vmatprep.subr.mxu0 0.0
        %3449 = vmatpush1.xpose.msra.mxu0 0.0
        %3450 = vmatprep.subr.mxu0 0.0
        %3451 = vmatpush1.xpose.msra.mxu0 0.0
        %3452 = vmatprep.subr.mxu0 0.0
        %3453 = vmatpush1.xpose.msra.mxu0 0.0
        %3454 = vmatprep.subr.mxu0 0.0
        %3455 = vmatpush1.xpose.msra.mxu0 0.0
        %3456 = vmatprep.subr.mxu0 0.0
        %3457 = vmatpush1.xpose.msra.mxu0 0.0
        %3458 = vmatprep.subr.mxu0 0.0
        %3459 = vmatpush1.xpose.msra.mxu0 %v3426
        %3460 = vmatprep.subr.mxu0 0.0
        %3461 = vmatpush2.xpose.msra.mxu0 0.0
        %3462 = vmatprep.subr.mxu0 0.0
        %3463 = vmatpush2.xpose.msra.mxu0 0.0
        %3464 = vmatprep.subr.mxu0 0.0
        %3465 = vmatpush2.xpose.msra.mxu0 0.0
        %3466 = vmatprep.subr.mxu0 0.0
        %3467 = vmatpush2.xpose.msra.mxu0 0.0
        %3468 = vmatprep.subr.mxu0 0.0
        %3469 = vmatpush2.xpose.msra.mxu0 0.0
        %3470 = vmatprep.subr.mxu0 0.0
        %3471 = vmatpush2.xpose.msra.mxu0 0.0
        %3472 = vmatprep.subr.mxu0 0.0
        %3473 = vmatpush2.xpose.msra.mxu0 0.0
        %3474 = vmatprep.subr.mxu0 0.0
        %3475 = vmatpush2.xpose.msra.mxu0 0.0
        %3476 = vmatprep.subr.mxu0 0.0
        %3477 = vmatpush2.xpose.msra.mxu0 0.0
        %3478 = vmatprep.subr.mxu0 0.0
        %3479 = vmatpush2.xpose.msra.mxu0 0.0
        %3480 = vmatprep.subr.mxu0 0.0
        %3481 = vmatpush2.xpose.msra.mxu0 0.0
        %3482 = vmatprep.subr.mxu0 0.0
        %3483 = vmatpush2.xpose.msra.mxu0 0.0
        %3484 = vmatprep.subr.mxu0 0.0
        %3485 = vmatpush2.xpose.msra.mxu0 0.0
        %3486 = vmatprep.subr.mxu0 0.0
        %3487 = vmatpush2.xpose.msra.mxu0 0.0
        %3488 = vmatprep.subr.mxu0 0.0
        %3489 = vmatpush2.xpose.msra.mxu0 0.0
        %3490 = vmatprep.subr.mxu0 0.0
        %3491 = vmatpush2.xpose.msra.mxu0 0.0
        %3492 = vmatprep.mubr.f32.mxu0 0.0
        %3493 = vmatmul.mubr.f32.gmra.mxu0 %v3424
        %v3494 = vpop.f32.mrf.mxu0
        %v3495 = vadd.f32 0.0, %v3494
        %v3496 = vpop.f32.mrf.mxu0
        %3497 = vdwg.mxu0
        %3500 = vrot.lane.b32.xlu0 %v3142, 120
        %v3501 = vpop.permute.xlu0 %3500
        %3502 = vrot.lane.b32.xlu0 %v3143, 120
        %v3503 = vpop.permute.xlu0 %3502
        %v3506 = vsel %vm1050, %v3501, 0.0
        %3507 = vadd.xlane.f32.xlu0 %v3506
        %v3508 = vpop.xlane.xlu0 %3507
        %v3509 = vsel %vm1050, %v3503, 0.0
        %3510 = vadd.xlane.f32.xlu0 %v3509
        %v3511 = vpop.xlane.xlu0 %3510
        %v3512 = vsel %vm1050, %v3417, -inf
        %3513 = vmax.xlane.f32.xlu0 %v3512
        %v3514 = vpop.xlane.xlu0 %3513
        %v3515 = vsel %vm1050, %v3495, -inf
        %3516 = vmax.xlane.f32.xlu0 %v3515
        %v3517 = vpop.xlane.xlu0 %3516
        %v3518 = vmax.f32 %v3514, %v3508
        %v3519 = vmax.f32 %v3517, %v3511
        %v3520 = vsub.f32 %v3417, %v3518
        %v3521 = vsub.f32 %v3495, %v3519
        %v3522 = vmul.f32 %v3520, 1.442695
        %v3523 = vpow.pop %v3522
        %v3524 = vmul.f32 %v3521, 1.442695
        %v3525 = vpow.pop %v3524
        %v3526 = vsub.f32 %v3508, %v3518
        %v3527 = vsub.f32 %v3511, %v3519
        %v3528 = vmul.f32 %v3526, 1.442695
        %v3529 = vpow.pop %v3528
        %v3530 = vmul.f32 %v3527, 1.442695
        %v3531 = vpow.pop %v3530
        %v3532 = vsel %vm1050, %v3523, 0.0
        %3533 = vadd.xlane.f32.xlu0 %v3532
        %v3534 = vpop.xlane.xlu0 %3533
        %v3535 = vsel %vm1050, %v3525, 0.0
        %3536 = vadd.xlane.f32.xlu0 %v3535
        %v3537 = vpop.xlane.xlu0 %3536
        %v3538 = vadd.f32 %v3534, %v3529
        %v3539 = vadd.f32 %v3537, %v3531
        %v3540 = vrcp.pop %v3538
        %v3541 = vrcp.pop %v3539
        %v3542 = vmul.f32 %v3523, %v3540
        %v3543 = vmul.f32 %v3525, %v3541
        %v3544 = vmul.f32 %v3529, %v3540
        %v3545 = vmul.f32 %v3531, %v3541
        %v3546 = vmul.f32 %v3544, %v3187
        %v3547 = vmul.f32 %v3545, %v3187
        %3548 = vrot.lane.b32.xlu0 %v2972, 56
        %v3549 = vpop.permute.xlu0 %3548
        %3552 = vrot.lane.b32.xlu0 %v3546, 120
        %v3553 = vpop.permute.xlu0 %3552
        %v3556 = vsel %vm1050, %v3542, 0
        %3558 = vmatprep.subr.mxu0 0.0
        %3559 = vmatpush1.msra.mxu0 0.0
        %3560 = vmatprep.subr.mxu0 0.0
        %3561 = vmatpush1.msra.mxu0 0.0
        %3562 = vmatprep.subr.mxu0 0.0
        %3563 = vmatpush1.msra.mxu0 0.0
        %3564 = vmatprep.subr.mxu0 0.0
        %3565 = vmatpush1.msra.mxu0 0.0
        %3566 = vmatprep.subr.mxu0 0.0
        %3567 = vmatpush1.msra.mxu0 0.0
        %3568 = vmatprep.subr.mxu0 0.0
        %3569 = vmatpush1.msra.mxu0 0.0
        %3570 = vmatprep.subr.mxu0 0.0
        %3571 = vmatpush1.msra.mxu0 0.0
        %3572 = vmatprep.subr.mxu0 0.0
        %3573 = vmatpush1.msra.mxu0 0.0
        %3574 = vmatprep.subr.mxu0 0.0
        %3575 = vmatpush1.msra.mxu0 0.0
        %3576 = vmatprep.subr.mxu0 0.0
        %3577 = vmatpush1.msra.mxu0 0.0
        %3578 = vmatprep.subr.mxu0 0.0
        %3579 = vmatpush1.msra.mxu0 0.0
        %3580 = vmatprep.subr.mxu0 0.0
        %3581 = vmatpush1.msra.mxu0 0.0
        %3582 = vmatprep.subr.mxu0 0.0
        %3583 = vmatpush1.msra.mxu0 0.0
        %3584 = vmatprep.subr.mxu0 0.0
        %3585 = vmatpush1.msra.mxu0 0.0
        %3586 = vmatprep.subr.mxu0 0.0
        %3587 = vmatpush1.msra.mxu0 0.0
        %3588 = vmatprep.subr.mxu0 0.0
        %3589 = vmatpush1.msra.mxu0 %v3549
        %3590 = vmatprep.subr.mxu0 0.0
        %3591 = vmatpush2.msra.mxu0 0.0
        %3592 = vmatprep.subr.mxu0 0.0
        %3593 = vmatpush2.msra.mxu0 0.0
        %3594 = vmatprep.subr.mxu0 0.0
        %3595 = vmatpush2.msra.mxu0 0.0
        %3596 = vmatprep.subr.mxu0 0.0
        %3597 = vmatpush2.msra.mxu0 0.0
        %3598 = vmatprep.subr.mxu0 0.0
        %3599 = vmatpush2.msra.mxu0 0.0
        %3600 = vmatprep.subr.mxu0 0.0
        %3601 = vmatpush2.msra.mxu0 0.0
        %3602 = vmatprep.subr.mxu0 0.0
        %3603 = vmatpush2.msra.mxu0 0.0
        %3604 = vmatprep.subr.mxu0 0.0
        %3605 = vmatpush2.msra.mxu0 0.0
        %3606 = vmatprep.subr.mxu0 0.0
        %3607 = vmatpush2.msra.mxu0 0.0
        %3608 = vmatprep.subr.mxu0 0.0
        %3609 = vmatpush2.msra.mxu0 0.0
        %3610 = vmatprep.subr.mxu0 0.0
        %3611 = vmatpush2.msra.mxu0 0.0
        %3612 = vmatprep.subr.mxu0 0.0
        %3613 = vmatpush2.msra.mxu0 0.0
        %3614 = vmatprep.subr.mxu0 0.0
        %3615 = vmatpush2.msra.mxu0 0.0
        %3616 = vmatprep.subr.mxu0 0.0
        %3617 = vmatpush2.msra.mxu0 0.0
        %3618 = vmatprep.subr.mxu0 0.0
        %3619 = vmatpush2.msra.mxu0 0.0
        %3620 = vmatprep.subr.mxu0 0.0
        %3621 = vmatpush2.msra.mxu0 0.0
        %3622 = vmatprep.mubr.f32.mxu0 0.0
        %3623 = vmatmul.mubr.f32.gmra.mxu0 %v3556
        %v3624 = vpop.f32.mrf.mxu0
        %v3625 = vadd.f32 %v3553, %v3624
        %v3626 = vpop.f32.mrf.mxu0
        %3627 = vdwg.mxu0
        %3628 = vrot.lane.b32.xlu0 %v2975, 56
        %v3629 = vpop.permute.xlu0 %3628
        %3632 = vrot.lane.b32.xlu0 %v3547, 120
        %v3633 = vpop.permute.xlu0 %3632
        %v3636 = vsel %vm1050, %v3543, 0
        %3638 = vmatprep.subr.mxu0 0.0
        %3639 = vmatpush1.msra.mxu0 0.0
        %3640 = vmatprep.subr.mxu0 0.0
        %3641 = vmatpush1.msra.mxu0 0.0
        %3642 = vmatprep.subr.mxu0 0.0
        %3643 = vmatpush1.msra.mxu0 0.0
        %3644 = vmatprep.subr.mxu0 0.0
        %3645 = vmatpush1.msra.mxu0 0.0
        %3646 = vmatprep.subr.mxu0 0.0
        %3647 = vmatpush1.msra.mxu0 0.0
        %3648 = vmatprep.subr.mxu0 0.0
        %3649 = vmatpush1.msra.mxu0 0.0
        %3650 = vmatprep.subr.mxu0 0.0
        %3651 = vmatpush1.msra.mxu0 0.0
        %3652 = vmatprep.subr.mxu0 0.0
        %3653 = vmatpush1.msra.mxu0 0.0
        %3654 = vmatprep.subr.mxu0 0.0
        %3655 = vmatpush1.msra.mxu0 0.0
        %3656 = vmatprep.subr.mxu0 0.0
        %3657 = vmatpush1.msra.mxu0 0.0
        %3658 = vmatprep.subr.mxu0 0.0
        %3659 = vmatpush1.msra.mxu0 0.0
        %3660 = vmatprep.subr.mxu0 0.0
        %3661 = vmatpush1.msra.mxu0 0.0
        %3662 = vmatprep.subr.mxu0 0.0
        %3663 = vmatpush1.msra.mxu0 0.0
        %3664 = vmatprep.subr.mxu0 0.0
        %3665 = vmatpush1.msra.mxu0 0.0
        %3666 = vmatprep.subr.mxu0 0.0
        %3667 = vmatpush1.msra.mxu0 0.0
        %3668 = vmatprep.subr.mxu0 0.0
        %3669 = vmatpush1.msra.mxu0 %v3629
        %3670 = vmatprep.subr.mxu0 0.0
        %3671 = vmatpush2.msra.mxu0 0.0
        %3672 = vmatprep.subr.mxu0 0.0
        %3673 = vmatpush2.msra.mxu0 0.0
        %3674 = vmatprep.subr.mxu0 0.0
        %3675 = vmatpush2.msra.mxu0 0.0
        %3676 = vmatprep.subr.mxu0 0.0
        %3677 = vmatpush2.msra.mxu0 0.0
        %3678 = vmatprep.subr.mxu0 0.0
        %3679 = vmatpush2.msra.mxu0 0.0
        %3680 = vmatprep.subr.mxu0 0.0
        %3681 = vmatpush2.msra.mxu0 0.0
        %3682 = vmatprep.subr.mxu0 0.0
        %3683 = vmatpush2.msra.mxu0 0.0
        %3684 = vmatprep.subr.mxu0 0.0
        %3685 = vmatpush2.msra.mxu0 0.0
        %3686 = vmatprep.subr.mxu0 0.0
        %3687 = vmatpush2.msra.mxu0 0.0
        %3688 = vmatprep.subr.mxu0 0.0
        %3689 = vmatpush2.msra.mxu0 0.0
        %3690 = vmatprep.subr.mxu0 0.0
        %3691 = vmatpush2.msra.mxu0 0.0
        %3692 = vmatprep.subr.mxu0 0.0
        %3693 = vmatpush2.msra.mxu0 0.0
        %3694 = vmatprep.subr.mxu0 0.0
        %3695 = vmatpush2.msra.mxu0 0.0
        %3696 = vmatprep.subr.mxu0 0.0
        %3697 = vmatpush2.msra.mxu0 0.0
        %3698 = vmatprep.subr.mxu0 0.0
        %3699 = vmatpush2.msra.mxu0 0.0
        %3700 = vmatprep.subr.mxu0 0.0
        %3701 = vmatpush2.msra.mxu0 0.0
        %3702 = vmatprep.mubr.f32.mxu0 0.0
        %3703 = vmatmul.mubr.f32.gmra.mxu0 %v3636
        %v3704 = vpop.f32.mrf.mxu0
        %v3705 = vadd.f32 %v3633, %v3704
        %v3706 = vpop.f32.mrf.mxu0
        %3707 = vdwg.mxu0
        %3708 = vrot.lane.b32.xlu0 %v2978, 112
        %v3709 = vpop.permute.xlu0 %3708
        %3710 = vrot.lane.b32.xlu0 %v2972, 80
        %v3711 = vpop.permute.xlu0 %3710
        %v3712 = vsel %vm1050, %v3709, 0
        %v3714 = vsel %vm1050, %v3711, 0
        %3716 = vmatprep.subr.mxu0 0.0
        %3717 = vmatpush1.xpose.msra.mxu0 0.0
        %3718 = vmatprep.subr.mxu0 0.0
        %3719 = vmatpush1.xpose.msra.mxu0 0.0
        %3720 = vmatprep.subr.mxu0 0.0
        %3721 = vmatpush1.xpose.msra.mxu0 0.0
        %3722 = vmatprep.subr.mxu0 0.0
        %3723 = vmatpush1.xpose.msra.mxu0 0.0
        %3724 = vmatprep.subr.mxu0 0.0
        %3725 = vmatpush1.xpose.msra.mxu0 0.0
        %3726 = vmatprep.subr.mxu0 0.0
        %3727 = vmatpush1.xpose.msra.mxu0 0.0
        %3728 = vmatprep.subr.mxu0 0.0
        %3729 = vmatpush1.xpose.msra.mxu0 0.0
        %3730 = vmatprep.subr.mxu0 0.0
        %3731 = vmatpush1.xpose.msra.mxu0 0.0
        %3732 = vmatprep.subr.mxu0 0.0
        %3733 = vmatpush1.xpose.msra.mxu0 0.0
        %3734 = vmatprep.subr.mxu0 0.0
        %3735 = vmatpush1.xpose.msra.mxu0 0.0
        %3736 = vmatprep.subr.mxu0 0.0
        %3737 = vmatpush1.xpose.msra.mxu0 0.0
        %3738 = vmatprep.subr.mxu0 0.0
        %3739 = vmatpush1.xpose.msra.mxu0 0.0
        %3740 = vmatprep.subr.mxu0 0.0
        %3741 = vmatpush1.xpose.msra.mxu0 0.0
        %3742 = vmatprep.subr.mxu0 0.0
        %3743 = vmatpush1.xpose.msra.mxu0 0.0
        %3744 = vmatprep.subr.mxu0 0.0
        %3745 = vmatpush1.xpose.msra.mxu0 0.0
        %3746 = vmatprep.subr.mxu0 0.0
        %3747 = vmatpush1.xpose.msra.mxu0 %v3714
        %3748 = vmatprep.subr.mxu0 0.0
        %3749 = vmatpush2.xpose.msra.mxu0 0.0
        %3750 = vmatprep.subr.mxu0 0.0
        %3751 = vmatpush2.xpose.msra.mxu0 0.0
        %3752 = vmatprep.subr.mxu0 0.0
        %3753 = vmatpush2.xpose.msra.mxu0 0.0
        %3754 = vmatprep.subr.mxu0 0.0
        %3755 = vmatpush2.xpose.msra.mxu0 0.0
        %3756 = vmatprep.subr.mxu0 0.0
        %3757 = vmatpush2.xpose.msra.mxu0 0.0
        %3758 = vmatprep.subr.mxu0 0.0
        %3759 = vmatpush2.xpose.msra.mxu0 0.0
        %3760 = vmatprep.subr.mxu0 0.0
        %3761 = vmatpush2.xpose.msra.mxu0 0.0
        %3762 = vmatprep.subr.mxu0 0.0
        %3763 = vmatpush2.xpose.msra.mxu0 0.0
        %3764 = vmatprep.subr.mxu0 0.0
        %3765 = vmatpush2.xpose.msra.mxu0 0.0
        %3766 = vmatprep.subr.mxu0 0.0
        %3767 = vmatpush2.xpose.msra.mxu0 0.0
        %3768 = vmatprep.subr.mxu0 0.0
        %3769 = vmatpush2.xpose.msra.mxu0 0.0
        %3770 = vmatprep.subr.mxu0 0.0
        %3771 = vmatpush2.xpose.msra.mxu0 0.0
        %3772 = vmatprep.subr.mxu0 0.0
        %3773 = vmatpush2.xpose.msra.mxu0 0.0
        %3774 = vmatprep.subr.mxu0 0.0
        %3775 = vmatpush2.xpose.msra.mxu0 0.0
        %3776 = vmatprep.subr.mxu0 0.0
        %3777 = vmatpush2.xpose.msra.mxu0 0.0
        %3778 = vmatprep.subr.mxu0 0.0
        %3779 = vmatpush2.xpose.msra.mxu0 0.0
        %3780 = vmatprep.mubr.f32.mxu0 0.0
        %3781 = vmatmul.mubr.f32.gmra.mxu0 %v3712
        %v3782 = vpop.f32.mrf.mxu0
        %v3783 = vadd.f32 0.0, %v3782
        %v3784 = vpop.f32.mrf.mxu0
        %3785 = vdwg.mxu0
        %3786 = vrot.lane.b32.xlu0 %v2979, 112
        %v3787 = vpop.permute.xlu0 %3786
        %3788 = vrot.lane.b32.xlu0 %v2975, 80
        %v3789 = vpop.permute.xlu0 %3788
        %v3790 = vsel %vm1050, %v3787, 0
        %v3792 = vsel %vm1050, %v3789, 0
        %3794 = vmatprep.subr.mxu0 0.0
        %3795 = vmatpush1.xpose.msra.mxu0 0.0
        %3796 = vmatprep.subr.mxu0 0.0
        %3797 = vmatpush1.xpose.msra.mxu0 0.0
        %3798 = vmatprep.subr.mxu0 0.0
        %3799 = vmatpush1.xpose.msra.mxu0 0.0
        %3800 = vmatprep.subr.mxu0 0.0
        %3801 = vmatpush1.xpose.msra.mxu0 0.0
        %3802 = vmatprep.subr.mxu0 0.0
        %3803 = vmatpush1.xpose.msra.mxu0 0.0
        %3804 = vmatprep.subr.mxu0 0.0
        %3805 = vmatpush1.xpose.msra.mxu0 0.0
        %3806 = vmatprep.subr.mxu0 0.0
        %3807 = vmatpush1.xpose.msra.mxu0 0.0
        %3808 = vmatprep.subr.mxu0 0.0
        %3809 = vmatpush1.xpose.msra.mxu0 0.0
        %3810 = vmatprep.subr.mxu0 0.0
        %3811 = vmatpush1.xpose.msra.mxu0 0.0
        %3812 = vmatprep.subr.mxu0 0.0
        %3813 = vmatpush1.xpose.msra.mxu0 0.0
        %3814 = vmatprep.subr.mxu0 0.0
        %3815 = vmatpush1.xpose.msra.mxu0 0.0
        %3816 = vmatprep.subr.mxu0 0.0
        %3817 = vmatpush1.xpose.msra.mxu0 0.0
        %3818 = vmatprep.subr.mxu0 0.0
        %3819 = vmatpush1.xpose.msra.mxu0 0.0
        %3820 = vmatprep.subr.mxu0 0.0
        %3821 = vmatpush1.xpose.msra.mxu0 0.0
        %3822 = vmatprep.subr.mxu0 0.0
        %3823 = vmatpush1.xpose.msra.mxu0 0.0
        %3824 = vmatprep.subr.mxu0 0.0
        %3825 = vmatpush1.xpose.msra.mxu0 %v3792
        %3826 = vmatprep.subr.mxu0 0.0
        %3827 = vmatpush2.xpose.msra.mxu0 0.0
        %3828 = vmatprep.subr.mxu0 0.0
        %3829 = vmatpush2.xpose.msra.mxu0 0.0
        %3830 = vmatprep.subr.mxu0 0.0
        %3831 = vmatpush2.xpose.msra.mxu0 0.0
        %3832 = vmatprep.subr.mxu0 0.0
        %3833 = vmatpush2.xpose.msra.mxu0 0.0
        %3834 = vmatprep.subr.mxu0 0.0
        %3835 = vmatpush2.xpose.msra.mxu0 0.0
        %3836 = vmatprep.subr.mxu0 0.0
        %3837 = vmatpush2.xpose.msra.mxu0 0.0
        %3838 = vmatprep.subr.mxu0 0.0
        %3839 = vmatpush2.xpose.msra.mxu0 0.0
        %3840 = vmatprep.subr.mxu0 0.0
        %3841 = vmatpush2.xpose.msra.mxu0 0.0
        %3842 = vmatprep.subr.mxu0 0.0
        %3843 = vmatpush2.xpose.msra.mxu0 0.0
        %3844 = vmatprep.subr.mxu0 0.0
        %3845 = vmatpush2.xpose.msra.mxu0 0.0
        %3846 = vmatprep.subr.mxu0 0.0
        %3847 = vmatpush2.xpose.msra.mxu0 0.0
        %3848 = vmatprep.subr.mxu0 0.0
        %3849 = vmatpush2.xpose.msra.mxu0 0.0
        %3850 = vmatprep.subr.mxu0 0.0
        %3851 = vmatpush2.xpose.msra.mxu0 0.0
        %3852 = vmatprep.subr.mxu0 0.0
        %3853 = vmatpush2.xpose.msra.mxu0 0.0
        %3854 = vmatprep.subr.mxu0 0.0
        %3855 = vmatpush2.xpose.msra.mxu0 0.0
        %3856 = vmatprep.subr.mxu0 0.0
        %3857 = vmatpush2.xpose.msra.mxu0 0.0
        %3858 = vmatprep.mubr.f32.mxu0 0.0
        %3859 = vmatmul.mubr.f32.gmra.mxu0 %v3790
        %v3860 = vpop.f32.mrf.mxu0
        %v3861 = vadd.f32 0.0, %v3860
        %v3862 = vpop.f32.mrf.mxu0
        %3863 = vdwg.mxu0
        %3864 = vrot.lane.b32.xlu0 %v3142, 112
        %v3865 = vpop.permute.xlu0 %3864
        %3866 = vrot.lane.b32.xlu0 %v3143, 112
        %v3867 = vpop.permute.xlu0 %3866
        %v3870 = vsel %vm1050, %v3865, 0.0
        %3871 = vadd.xlane.f32.xlu0 %v3870
        %v3872 = vpop.xlane.xlu0 %3871
        %v3873 = vsel %vm1050, %v3867, 0.0
        %3874 = vadd.xlane.f32.xlu0 %v3873
        %v3875 = vpop.xlane.xlu0 %3874
        %v3876 = vsel %vm1050, %v3783, -inf
        %3877 = vmax.xlane.f32.xlu0 %v3876
        %v3878 = vpop.xlane.xlu0 %3877
        %v3879 = vsel %vm1050, %v3861, -inf
        %3880 = vmax.xlane.f32.xlu0 %v3879
        %v3881 = vpop.xlane.xlu0 %3880
        %v3882 = vmax.f32 %v3878, %v3872
        %v3883 = vmax.f32 %v3881, %v3875
        %v3884 = vsub.f32 %v3783, %v3882
        %v3885 = vsub.f32 %v3861, %v3883
        %v3886 = vmul.f32 %v3884, 1.442695
        %v3887 = vpow.pop %v3886
        %v3888 = vmul.f32 %v3885, 1.442695
        %v3889 = vpow.pop %v3888
        %v3890 = vsub.f32 %v3872, %v3882
        %v3891 = vsub.f32 %v3875, %v3883
        %v3892 = vmul.f32 %v3890, 1.442695
        %v3893 = vpow.pop %v3892
        %v3894 = vmul.f32 %v3891, 1.442695
        %v3895 = vpow.pop %v3894
        %v3896 = vsel %vm1050, %v3887, 0.0
        %3897 = vadd.xlane.f32.xlu0 %v3896
        %v3898 = vpop.xlane.xlu0 %3897
        %v3899 = vsel %vm1050, %v3889, 0.0
        %3900 = vadd.xlane.f32.xlu0 %v3899
        %v3901 = vpop.xlane.xlu0 %3900
        %v3902 = vadd.f32 %v3898, %v3893
        %v3903 = vadd.f32 %v3901, %v3895
        %v3904 = vrcp.pop %v3902
        %v3905 = vrcp.pop %v3903
        %v3906 = vmul.f32 %v3887, %v3904
        %v3907 = vmul.f32 %v3889, %v3905
        %v3908 = vmul.f32 %v3893, %v3904
        %v3909 = vmul.f32 %v3895, %v3905
        %v3910 = vmul.f32 %v3908, %v3187
        %v3911 = vmul.f32 %v3909, %v3187
        %3912 = vrot.lane.b32.xlu0 %v2972, 48
        %v3913 = vpop.permute.xlu0 %3912
        %3916 = vrot.lane.b32.xlu0 %v3910, 112
        %v3917 = vpop.permute.xlu0 %3916
        %v3920 = vsel %vm1050, %v3906, 0
        %3922 = vmatprep.subr.mxu0 0.0
        %3923 = vmatpush1.msra.mxu0 0.0
        %3924 = vmatprep.subr.mxu0 0.0
        %3925 = vmatpush1.msra.mxu0 0.0
        %3926 = vmatprep.subr.mxu0 0.0
        %3927 = vmatpush1.msra.mxu0 0.0
        %3928 = vmatprep.subr.mxu0 0.0
        %3929 = vmatpush1.msra.mxu0 0.0
        %3930 = vmatprep.subr.mxu0 0.0
        %3931 = vmatpush1.msra.mxu0 0.0
        %3932 = vmatprep.subr.mxu0 0.0
        %3933 = vmatpush1.msra.mxu0 0.0
        %3934 = vmatprep.subr.mxu0 0.0
        %3935 = vmatpush1.msra.mxu0 0.0
        %3936 = vmatprep.subr.mxu0 0.0
        %3937 = vmatpush1.msra.mxu0 0.0
        %3938 = vmatprep.subr.mxu0 0.0
        %3939 = vmatpush1.msra.mxu0 0.0
        %3940 = vmatprep.subr.mxu0 0.0
        %3941 = vmatpush1.msra.mxu0 0.0
        %3942 = vmatprep.subr.mxu0 0.0
        %3943 = vmatpush1.msra.mxu0 0.0
        %3944 = vmatprep.subr.mxu0 0.0
        %3945 = vmatpush1.msra.mxu0 0.0
        %3946 = vmatprep.subr.mxu0 0.0
        %3947 = vmatpush1.msra.mxu0 0.0
        %3948 = vmatprep.subr.mxu0 0.0
        %3949 = vmatpush1.msra.mxu0 0.0
        %3950 = vmatprep.subr.mxu0 0.0
        %3951 = vmatpush1.msra.mxu0 0.0
        %3952 = vmatprep.subr.mxu0 0.0
        %3953 = vmatpush1.msra.mxu0 %v3913
        %3954 = vmatprep.subr.mxu0 0.0
        %3955 = vmatpush2.msra.mxu0 0.0
        %3956 = vmatprep.subr.mxu0 0.0
        %3957 = vmatpush2.msra.mxu0 0.0
        %3958 = vmatprep.subr.mxu0 0.0
        %3959 = vmatpush2.msra.mxu0 0.0
        %3960 = vmatprep.subr.mxu0 0.0
        %3961 = vmatpush2.msra.mxu0 0.0
        %3962 = vmatprep.subr.mxu0 0.0
        %3963 = vmatpush2.msra.mxu0 0.0
        %3964 = vmatprep.subr.mxu0 0.0
        %3965 = vmatpush2.msra.mxu0 0.0
        %3966 = vmatprep.subr.mxu0 0.0
        %3967 = vmatpush2.msra.mxu0 0.0
        %3968 = vmatprep.subr.mxu0 0.0
        %3969 = vmatpush2.msra.mxu0 0.0
        %3970 = vmatprep.subr.mxu0 0.0
        %3971 = vmatpush2.msra.mxu0 0.0
        %3972 = vmatprep.subr.mxu0 0.0
        %3973 = vmatpush2.msra.mxu0 0.0
        %3974 = vmatprep.subr.mxu0 0.0
        %3975 = vmatpush2.msra.mxu0 0.0
        %3976 = vmatprep.subr.mxu0 0.0
        %3977 = vmatpush2.msra.mxu0 0.0
        %3978 = vmatprep.subr.mxu0 0.0
        %3979 = vmatpush2.msra.mxu0 0.0
        %3980 = vmatprep.subr.mxu0 0.0
        %3981 = vmatpush2.msra.mxu0 0.0
        %3982 = vmatprep.subr.mxu0 0.0
        %3983 = vmatpush2.msra.mxu0 0.0
        %3984 = vmatprep.subr.mxu0 0.0
        %3985 = vmatpush2.msra.mxu0 0.0
        %3986 = vmatprep.mubr.f32.mxu0 0.0
        %3987 = vmatmul.mubr.f32.gmra.mxu0 %v3920
        %v3988 = vpop.f32.mrf.mxu0
        %v3989 = vadd.f32 %v3917, %v3988
        %v3990 = vpop.f32.mrf.mxu0
        %3991 = vdwg.mxu0
        %3992 = vrot.lane.b32.xlu0 %v2975, 48
        %v3993 = vpop.permute.xlu0 %3992
        %3996 = vrot.lane.b32.xlu0 %v3911, 112
        %v3997 = vpop.permute.xlu0 %3996
        %v4000 = vsel %vm1050, %v3907, 0
        %4002 = vmatprep.subr.mxu0 0.0
        %4003 = vmatpush1.msra.mxu0 0.0
        %4004 = vmatprep.subr.mxu0 0.0
        %4005 = vmatpush1.msra.mxu0 0.0
        %4006 = vmatprep.subr.mxu0 0.0
        %4007 = vmatpush1.msra.mxu0 0.0
        %4008 = vmatprep.subr.mxu0 0.0
        %4009 = vmatpush1.msra.mxu0 0.0
        %4010 = vmatprep.subr.mxu0 0.0
        %4011 = vmatpush1.msra.mxu0 0.0
        %4012 = vmatprep.subr.mxu0 0.0
        %4013 = vmatpush1.msra.mxu0 0.0
        %4014 = vmatprep.subr.mxu0 0.0
        %4015 = vmatpush1.msra.mxu0 0.0
        %4016 = vmatprep.subr.mxu0 0.0
        %4017 = vmatpush1.msra.mxu0 0.0
        %4018 = vmatprep.subr.mxu0 0.0
        %4019 = vmatpush1.msra.mxu0 0.0
        %4020 = vmatprep.subr.mxu0 0.0
        %4021 = vmatpush1.msra.mxu0 0.0
        %4022 = vmatprep.subr.mxu0 0.0
        %4023 = vmatpush1.msra.mxu0 0.0
        %4024 = vmatprep.subr.mxu0 0.0
        %4025 = vmatpush1.msra.mxu0 0.0
        %4026 = vmatprep.subr.mxu0 0.0
        %4027 = vmatpush1.msra.mxu0 0.0
        %4028 = vmatprep.subr.mxu0 0.0
        %4029 = vmatpush1.msra.mxu0 0.0
        %4030 = vmatprep.subr.mxu0 0.0
        %4031 = vmatpush1.msra.mxu0 0.0
        %4032 = vmatprep.subr.mxu0 0.0
        %4033 = vmatpush1.msra.mxu0 %v3993
        %4034 = vmatprep.subr.mxu0 0.0
        %4035 = vmatpush2.msra.mxu0 0.0
        %4036 = vmatprep.subr.mxu0 0.0
        %4037 = vmatpush2.msra.mxu0 0.0
        %4038 = vmatprep.subr.mxu0 0.0
        %4039 = vmatpush2.msra.mxu0 0.0
        %4040 = vmatprep.subr.mxu0 0.0
        %4041 = vmatpush2.msra.mxu0 0.0
        %4042 = vmatprep.subr.mxu0 0.0
        %4043 = vmatpush2.msra.mxu0 0.0
        %4044 = vmatprep.subr.mxu0 0.0
        %4045 = vmatpush2.msra.mxu0 0.0
        %4046 = vmatprep.subr.mxu0 0.0
        %4047 = vmatpush2.msra.mxu0 0.0
        %4048 = vmatprep.subr.mxu0 0.0
        %4049 = vmatpush2.msra.mxu0 0.0
        %4050 = vmatprep.subr.mxu0 0.0
        %4051 = vmatpush2.msra.mxu0 0.0
        %4052 = vmatprep.subr.mxu0 0.0
        %4053 = vmatpush2.msra.mxu0 0.0
        %4054 = vmatprep.subr.mxu0 0.0
        %4055 = vmatpush2.msra.mxu0 0.0
        %4056 = vmatprep.subr.mxu0 0.0
        %4057 = vmatpush2.msra.mxu0 0.0
        %4058 = vmatprep.subr.mxu0 0.0
        %4059 = vmatpush2.msra.mxu0 0.0
        %4060 = vmatprep.subr.mxu0 0.0
        %4061 = vmatpush2.msra.mxu0 0.0
        %4062 = vmatprep.subr.mxu0 0.0
        %4063 = vmatpush2.msra.mxu0 0.0
        %4064 = vmatprep.subr.mxu0 0.0
        %4065 = vmatpush2.msra.mxu0 0.0
        %4066 = vmatprep.mubr.f32.mxu0 0.0
        %4067 = vmatmul.mubr.f32.gmra.mxu0 %v4000
        %v4068 = vpop.f32.mrf.mxu0
        %v4069 = vadd.f32 %v3997, %v4068
        %v4070 = vpop.f32.mrf.mxu0
        %4071 = vdwg.mxu0
        %4072 = vrot.lane.b32.xlu0 %v2978, 104
        %v4073 = vpop.permute.xlu0 %4072
        %4074 = vrot.lane.b32.xlu0 %v2972, 72
        %v4075 = vpop.permute.xlu0 %4074
        %v4076 = vsel %vm1050, %v4073, 0
        %v4078 = vsel %vm1050, %v4075, 0
        %4080 = vmatprep.subr.mxu0 0.0
        %4081 = vmatpush1.xpose.msra.mxu0 0.0
        %4082 = vmatprep.subr.mxu0 0.0
        %4083 = vmatpush1.xpose.msra.mxu0 0.0
        %4084 = vmatprep.subr.mxu0 0.0
        %4085 = vmatpush1.xpose.msra.mxu0 0.0
        %4086 = vmatprep.subr.mxu0 0.0
        %4087 = vmatpush1.xpose.msra.mxu0 0.0
        %4088 = vmatprep.subr.mxu0 0.0
        %4089 = vmatpush1.xpose.msra.mxu0 0.0
        %4090 = vmatprep.subr.mxu0 0.0
        %4091 = vmatpush1.xpose.msra.mxu0 0.0
        %4092 = vmatprep.subr.mxu0 0.0
        %4093 = vmatpush1.xpose.msra.mxu0 0.0
        %4094 = vmatprep.subr.mxu0 0.0
        %4095 = vmatpush1.xpose.msra.mxu0 0.0
        %4096 = vmatprep.subr.mxu0 0.0
        %4097 = vmatpush1.xpose.msra.mxu0 0.0
        %4098 = vmatprep.subr.mxu0 0.0
        %4099 = vmatpush1.xpose.msra.mxu0 0.0
        %4100 = vmatprep.subr.mxu0 0.0
        %4101 = vmatpush1.xpose.msra.mxu0 0.0
        %4102 = vmatprep.subr.mxu0 0.0
        %4103 = vmatpush1.xpose.msra.mxu0 0.0
        %4104 = vmatprep.subr.mxu0 0.0
        %4105 = vmatpush1.xpose.msra.mxu0 0.0
        %4106 = vmatprep.subr.mxu0 0.0
        %4107 = vmatpush1.xpose.msra.mxu0 0.0
        %4108 = vmatprep.subr.mxu0 0.0
        %4109 = vmatpush1.xpose.msra.mxu0 0.0
        %4110 = vmatprep.subr.mxu0 0.0
        %4111 = vmatpush1.xpose.msra.mxu0 %v4078
        %4112 = vmatprep.subr.mxu0 0.0
        %4113 = vmatpush2.xpose.msra.mxu0 0.0
        %4114 = vmatprep.subr.mxu0 0.0
        %4115 = vmatpush2.xpose.msra.mxu0 0.0
        %4116 = vmatprep.subr.mxu0 0.0
        %4117 = vmatpush2.xpose.msra.mxu0 0.0
        %4118 = vmatprep.subr.mxu0 0.0
        %4119 = vmatpush2.xpose.msra.mxu0 0.0
        %4120 = vmatprep.subr.mxu0 0.0
        %4121 = vmatpush2.xpose.msra.mxu0 0.0
        %4122 = vmatprep.subr.mxu0 0.0
        %4123 = vmatpush2.xpose.msra.mxu0 0.0
        %4124 = vmatprep.subr.mxu0 0.0
        %4125 = vmatpush2.xpose.msra.mxu0 0.0
        %4126 = vmatprep.subr.mxu0 0.0
        %4127 = vmatpush2.xpose.msra.mxu0 0.0
        %4128 = vmatprep.subr.mxu0 0.0
        %4129 = vmatpush2.xpose.msra.mxu0 0.0
        %4130 = vmatprep.subr.mxu0 0.0
        %4131 = vmatpush2.xpose.msra.mxu0 0.0
        %4132 = vmatprep.subr.mxu0 0.0
        %4133 = vmatpush2.xpose.msra.mxu0 0.0
        %4134 = vmatprep.subr.mxu0 0.0
        %4135 = vmatpush2.xpose.msra.mxu0 0.0
        %4136 = vmatprep.subr.mxu0 0.0
        %4137 = vmatpush2.xpose.msra.mxu0 0.0
        %4138 = vmatprep.subr.mxu0 0.0
        %4139 = vmatpush2.xpose.msra.mxu0 0.0
        %4140 = vmatprep.subr.mxu0 0.0
        %4141 = vmatpush2.xpose.msra.mxu0 0.0
        %4142 = vmatprep.subr.mxu0 0.0
        %4143 = vmatpush2.xpose.msra.mxu0 0.0
        %4144 = vmatprep.mubr.f32.mxu0 0.0
        %4145 = vmatmul.mubr.f32.gmra.mxu0 %v4076
        %v4146 = vpop.f32.mrf.mxu0
        %v4147 = vadd.f32 0.0, %v4146
        %v4148 = vpop.f32.mrf.mxu0
        %4149 = vdwg.mxu0
        %4150 = vrot.lane.b32.xlu0 %v2979, 104
        %v4151 = vpop.permute.xlu0 %4150
        %4152 = vrot.lane.b32.xlu0 %v2975, 72
        %v4153 = vpop.permute.xlu0 %4152
        %v4154 = vsel %vm1050, %v4151, 0
        %v4156 = vsel %vm1050, %v4153, 0
        %4158 = vmatprep.subr.mxu0 0.0
        %4159 = vmatpush1.xpose.msra.mxu0 0.0
        %4160 = vmatprep.subr.mxu0 0.0
        %4161 = vmatpush1.xpose.msra.mxu0 0.0
        %4162 = vmatprep.subr.mxu0 0.0
        %4163 = vmatpush1.xpose.msra.mxu0 0.0
        %4164 = vmatprep.subr.mxu0 0.0
        %4165 = vmatpush1.xpose.msra.mxu0 0.0
        %4166 = vmatprep.subr.mxu0 0.0
        %4167 = vmatpush1.xpose.msra.mxu0 0.0
        %4168 = vmatprep.subr.mxu0 0.0
        %4169 = vmatpush1.xpose.msra.mxu0 0.0
        %4170 = vmatprep.subr.mxu0 0.0
        %4171 = vmatpush1.xpose.msra.mxu0 0.0
        %4172 = vmatprep.subr.mxu0 0.0
        %4173 = vmatpush1.xpose.msra.mxu0 0.0
        %4174 = vmatprep.subr.mxu0 0.0
        %4175 = vmatpush1.xpose.msra.mxu0 0.0
        %4176 = vmatprep.subr.mxu0 0.0
        %4177 = vmatpush1.xpose.msra.mxu0 0.0
        %4178 = vmatprep.subr.mxu0 0.0
        %4179 = vmatpush1.xpose.msra.mxu0 0.0
        %4180 = vmatprep.subr.mxu0 0.0
        %4181 = vmatpush1.xpose.msra.mxu0 0.0
        %4182 = vmatprep.subr.mxu0 0.0
        %4183 = vmatpush1.xpose.msra.mxu0 0.0
        %4184 = vmatprep.subr.mxu0 0.0
        %4185 = vmatpush1.xpose.msra.mxu0 0.0
        %4186 = vmatprep.subr.mxu0 0.0
        %4187 = vmatpush1.xpose.msra.mxu0 0.0
        %4188 = vmatprep.subr.mxu0 0.0
        %4189 = vmatpush1.xpose.msra.mxu0 %v4156
        %4190 = vmatprep.subr.mxu0 0.0
        %4191 = vmatpush2.xpose.msra.mxu0 0.0
        %4192 = vmatprep.subr.mxu0 0.0
        %4193 = vmatpush2.xpose.msra.mxu0 0.0
        %4194 = vmatprep.subr.mxu0 0.0
        %4195 = vmatpush2.xpose.msra.mxu0 0.0
        %4196 = vmatprep.subr.mxu0 0.0
        %4197 = vmatpush2.xpose.msra.mxu0 0.0
        %4198 = vmatprep.subr.mxu0 0.0
        %4199 = vmatpush2.xpose.msra.mxu0 0.0
        %4200 = vmatprep.subr.mxu0 0.0
        %4201 = vmatpush2.xpose.msra.mxu0 0.0
        %4202 = vmatprep.subr.mxu0 0.0
        %4203 = vmatpush2.xpose.msra.mxu0 0.0
        %4204 = vmatprep.subr.mxu0 0.0
        %4205 = vmatpush2.xpose.msra.mxu0 0.0
        %4206 = vmatprep.subr.mxu0 0.0
        %4207 = vmatpush2.xpose.msra.mxu0 0.0
        %4208 = vmatprep.subr.mxu0 0.0
        %4209 = vmatpush2.xpose.msra.mxu0 0.0
        %4210 = vmatprep.subr.mxu0 0.0
        %4211 = vmatpush2.xpose.msra.mxu0 0.0
        %4212 = vmatprep.subr.mxu0 0.0
        %4213 = vmatpush2.xpose.msra.mxu0 0.0
        %4214 = vmatprep.subr.mxu0 0.0
        %4215 = vmatpush2.xpose.msra.mxu0 0.0
        %4216 = vmatprep.subr.mxu0 0.0
        %4217 = vmatpush2.xpose.msra.mxu0 0.0
        %4218 = vmatprep.subr.mxu0 0.0
        %4219 = vmatpush2.xpose.msra.mxu0 0.0
        %4220 = vmatprep.subr.mxu0 0.0
        %4221 = vmatpush2.xpose.msra.mxu0 0.0
        %4222 = vmatprep.mubr.f32.mxu0 0.0
        %4223 = vmatmul.mubr.f32.gmra.mxu0 %v4154
        %v4224 = vpop.f32.mrf.mxu0
        %v4225 = vadd.f32 0.0, %v4224
        %v4226 = vpop.f32.mrf.mxu0
        %4227 = vdwg.mxu0
        %4228 = vrot.lane.b32.xlu0 %v3142, 104
        %v4229 = vpop.permute.xlu0 %4228
        %4230 = vrot.lane.b32.xlu0 %v3143, 104
        %v4231 = vpop.permute.xlu0 %4230
        %v4234 = vsel %vm1050, %v4229, 0.0
        %4235 = vadd.xlane.f32.xlu0 %v4234
        %v4236 = vpop.xlane.xlu0 %4235
        %v4237 = vsel %vm1050, %v4231, 0.0
        %4238 = vadd.xlane.f32.xlu0 %v4237
        %v4239 = vpop.xlane.xlu0 %4238
        %v4240 = vsel %vm1050, %v4147, -inf
        %4241 = vmax.xlane.f32.xlu0 %v4240
        %v4242 = vpop.xlane.xlu0 %4241
        %v4243 = vsel %vm1050, %v4225, -inf
        %4244 = vmax.xlane.f32.xlu0 %v4243
        %v4245 = vpop.xlane.xlu0 %4244
        %v4246 = vmax.f32 %v4242, %v4236
        %v4247 = vmax.f32 %v4245, %v4239
        %v4248 = vsub.f32 %v4147, %v4246
        %v4249 = vsub.f32 %v4225, %v4247
        %v4250 = vmul.f32 %v4248, 1.442695
        %v4251 = vpow.pop %v4250
        %v4252 = vmul.f32 %v4249, 1.442695
        %v4253 = vpow.pop %v4252
        %v4254 = vsub.f32 %v4236, %v4246
        %v4255 = vsub.f32 %v4239, %v4247
        %v4256 = vmul.f32 %v4254, 1.442695
        %v4257 = vpow.pop %v4256
        %v4258 = vmul.f32 %v4255, 1.442695
        %v4259 = vpow.pop %v4258
        %v4260 = vsel %vm1050, %v4251, 0.0
        %4261 = vadd.xlane.f32.xlu0 %v4260
        %v4262 = vpop.xlane.xlu0 %4261
        %v4263 = vsel %vm1050, %v4253, 0.0
        %4264 = vadd.xlane.f32.xlu0 %v4263
        %v4265 = vpop.xlane.xlu0 %4264
        %v4266 = vadd.f32 %v4262, %v4257
        %v4267 = vadd.f32 %v4265, %v4259
        %v4268 = vrcp.pop %v4266
        %v4269 = vrcp.pop %v4267
        %v4270 = vmul.f32 %v4251, %v4268
        %v4271 = vmul.f32 %v4253, %v4269
        %v4272 = vmul.f32 %v4257, %v4268
        %v4273 = vmul.f32 %v4259, %v4269
        %v4274 = vmul.f32 %v4272, %v3187
        %v4275 = vmul.f32 %v4273, %v3187
        %4276 = vrot.lane.b32.xlu0 %v2972, 40
        %v4277 = vpop.permute.xlu0 %4276
        %4280 = vrot.lane.b32.xlu0 %v4274, 104
        %v4281 = vpop.permute.xlu0 %4280
        %v4284 = vsel %vm1050, %v4270, 0
        %4286 = vmatprep.subr.mxu0 0.0
        %4287 = vmatpush1.msra.mxu0 0.0
        %4288 = vmatprep.subr.mxu0 0.0
        %4289 = vmatpush1.msra.mxu0 0.0
        %4290 = vmatprep.subr.mxu0 0.0
        %4291 = vmatpush1.msra.mxu0 0.0
        %4292 = vmatprep.subr.mxu0 0.0
        %4293 = vmatpush1.msra.mxu0 0.0
        %4294 = vmatprep.subr.mxu0 0.0
        %4295 = vmatpush1.msra.mxu0 0.0
        %4296 = vmatprep.subr.mxu0 0.0
        %4297 = vmatpush1.msra.mxu0 0.0
        %4298 = vmatprep.subr.mxu0 0.0
        %4299 = vmatpush1.msra.mxu0 0.0
        %4300 = vmatprep.subr.mxu0 0.0
        %4301 = vmatpush1.msra.mxu0 0.0
        %4302 = vmatprep.subr.mxu0 0.0
        %4303 = vmatpush1.msra.mxu0 0.0
        %4304 = vmatprep.subr.mxu0 0.0
        %4305 = vmatpush1.msra.mxu0 0.0
        %4306 = vmatprep.subr.mxu0 0.0
        %4307 = vmatpush1.msra.mxu0 0.0
        %4308 = vmatprep.subr.mxu0 0.0
        %4309 = vmatpush1.msra.mxu0 0.0
        %4310 = vmatprep.subr.mxu0 0.0
        %4311 = vmatpush1.msra.mxu0 0.0
        %4312 = vmatprep.subr.mxu0 0.0
        %4313 = vmatpush1.msra.mxu0 0.0
        %4314 = vmatprep.subr.mxu0 0.0
        %4315 = vmatpush1.msra.mxu0 0.0
        %4316 = vmatprep.subr.mxu0 0.0
        %4317 = vmatpush1.msra.mxu0 %v4277
        %4318 = vmatprep.subr.mxu0 0.0
        %4319 = vmatpush2.msra.mxu0 0.0
        %4320 = vmatprep.subr.mxu0 0.0
        %4321 = vmatpush2.msra.mxu0 0.0
        %4322 = vmatprep.subr.mxu0 0.0
        %4323 = vmatpush2.msra.mxu0 0.0
        %4324 = vmatprep.subr.mxu0 0.0
        %4325 = vmatpush2.msra.mxu0 0.0
        %4326 = vmatprep.subr.mxu0 0.0
        %4327 = vmatpush2.msra.mxu0 0.0
        %4328 = vmatprep.subr.mxu0 0.0
        %4329 = vmatpush2.msra.mxu0 0.0
        %4330 = vmatprep.subr.mxu0 0.0
        %4331 = vmatpush2.msra.mxu0 0.0
        %4332 = vmatprep.subr.mxu0 0.0
        %4333 = vmatpush2.msra.mxu0 0.0
        %4334 = vmatprep.subr.mxu0 0.0
        %4335 = vmatpush2.msra.mxu0 0.0
        %4336 = vmatprep.subr.mxu0 0.0
        %4337 = vmatpush2.msra.mxu0 0.0
        %4338 = vmatprep.subr.mxu0 0.0
        %4339 = vmatpush2.msra.mxu0 0.0
        %4340 = vmatprep.subr.mxu0 0.0
        %4341 = vmatpush2.msra.mxu0 0.0
        %4342 = vmatprep.subr.mxu0 0.0
        %4343 = vmatpush2.msra.mxu0 0.0
        %4344 = vmatprep.subr.mxu0 0.0
        %4345 = vmatpush2.msra.mxu0 0.0
        %4346 = vmatprep.subr.mxu0 0.0
        %4347 = vmatpush2.msra.mxu0 0.0
        %4348 = vmatprep.subr.mxu0 0.0
        %4349 = vmatpush2.msra.mxu0 0.0
        %4350 = vmatprep.mubr.f32.mxu0 0.0
        %4351 = vmatmul.mubr.f32.gmra.mxu0 %v4284
        %v4352 = vpop.f32.mrf.mxu0
        %v4353 = vadd.f32 %v4281, %v4352
        %v4354 = vpop.f32.mrf.mxu0
        %4355 = vdwg.mxu0
        %4356 = vrot.lane.b32.xlu0 %v2975, 40
        %v4357 = vpop.permute.xlu0 %4356
        %4360 = vrot.lane.b32.xlu0 %v4275, 104
        %v4361 = vpop.permute.xlu0 %4360
        %v4364 = vsel %vm1050, %v4271, 0
        %4366 = vmatprep.subr.mxu0 0.0
        %4367 = vmatpush1.msra.mxu0 0.0
        %4368 = vmatprep.subr.mxu0 0.0
        %4369 = vmatpush1.msra.mxu0 0.0
        %4370 = vmatprep.subr.mxu0 0.0
        %4371 = vmatpush1.msra.mxu0 0.0
        %4372 = vmatprep.subr.mxu0 0.0
        %4373 = vmatpush1.msra.mxu0 0.0
        %4374 = vmatprep.subr.mxu0 0.0
        %4375 = vmatpush1.msra.mxu0 0.0
        %4376 = vmatprep.subr.mxu0 0.0
        %4377 = vmatpush1.msra.mxu0 0.0
        %4378 = vmatprep.subr.mxu0 0.0
        %4379 = vmatpush1.msra.mxu0 0.0
        %4380 = vmatprep.subr.mxu0 0.0
        %4381 = vmatpush1.msra.mxu0 0.0
        %4382 = vmatprep.subr.mxu0 0.0
        %4383 = vmatpush1.msra.mxu0 0.0
        %4384 = vmatprep.subr.mxu0 0.0
        %4385 = vmatpush1.msra.mxu0 0.0
        %4386 = vmatprep.subr.mxu0 0.0
        %4387 = vmatpush1.msra.mxu0 0.0
        %4388 = vmatprep.subr.mxu0 0.0
        %4389 = vmatpush1.msra.mxu0 0.0
        %4390 = vmatprep.subr.mxu0 0.0
        %4391 = vmatpush1.msra.mxu0 0.0
        %4392 = vmatprep.subr.mxu0 0.0
        %4393 = vmatpush1.msra.mxu0 0.0
        %4394 = vmatprep.subr.mxu0 0.0
        %4395 = vmatpush1.msra.mxu0 0.0
        %4396 = vmatprep.subr.mxu0 0.0
        %4397 = vmatpush1.msra.mxu0 %v4357
        %4398 = vmatprep.subr.mxu0 0.0
        %4399 = vmatpush2.msra.mxu0 0.0
        %4400 = vmatprep.subr.mxu0 0.0
        %4401 = vmatpush2.msra.mxu0 0.0
        %4402 = vmatprep.subr.mxu0 0.0
        %4403 = vmatpush2.msra.mxu0 0.0
        %4404 = vmatprep.subr.mxu0 0.0
        %4405 = vmatpush2.msra.mxu0 0.0
        %4406 = vmatprep.subr.mxu0 0.0
        %4407 = vmatpush2.msra.mxu0 0.0
        %4408 = vmatprep.subr.mxu0 0.0
        %4409 = vmatpush2.msra.mxu0 0.0
        %4410 = vmatprep.subr.mxu0 0.0
        %4411 = vmatpush2.msra.mxu0 0.0
        %4412 = vmatprep.subr.mxu0 0.0
        %4413 = vmatpush2.msra.mxu0 0.0
        %4414 = vmatprep.subr.mxu0 0.0
        %4415 = vmatpush2.msra.mxu0 0.0
        %4416 = vmatprep.subr.mxu0 0.0
        %4417 = vmatpush2.msra.mxu0 0.0
        %4418 = vmatprep.subr.mxu0 0.0
        %4419 = vmatpush2.msra.mxu0 0.0
        %4420 = vmatprep.subr.mxu0 0.0
        %4421 = vmatpush2.msra.mxu0 0.0
        %4422 = vmatprep.subr.mxu0 0.0
        %4423 = vmatpush2.msra.mxu0 0.0
        %4424 = vmatprep.subr.mxu0 0.0
        %4425 = vmatpush2.msra.mxu0 0.0
        %4426 = vmatprep.subr.mxu0 0.0
        %4427 = vmatpush2.msra.mxu0 0.0
        %4428 = vmatprep.subr.mxu0 0.0
        %4429 = vmatpush2.msra.mxu0 0.0
        %4430 = vmatprep.mubr.f32.mxu0 0.0
        %4431 = vmatmul.mubr.f32.gmra.mxu0 %v4364
        %v4432 = vpop.f32.mrf.mxu0
        %v4433 = vadd.f32 %v4361, %v4432
        %v4434 = vpop.f32.mrf.mxu0
        %4435 = vdwg.mxu0
        %4438 = vrot.lane.b32.xlu0 %v3625, 8
        %v4439 = vpop.permute.xlu0 %4438
        %4440 = vrot.lane.b32.xlu0 %v3705, 8
        %v4441 = vpop.permute.xlu0 %4440
        %4446 = vrot.lane.b32.xlu0 %v3989, 16
        %v4447 = vpop.permute.xlu0 %4446
        %4448 = vrot.lane.b32.xlu0 %v4069, 16
        %v4449 = vpop.permute.xlu0 %4448
        %4454 = vrot.lane.b32.xlu0 %v4353, 24
        %v4455 = vpop.permute.xlu0 %4454
        %4456 = vrot.lane.b32.xlu0 %v4433, 24
        %v4457 = vpop.permute.xlu0 %4456
        %v4460 = vsel %vm1050, %v3263, %v4439
        %v4461 = vsel %vm1050, %v3339, %v4441
        %v4462 = vsel %vm2528, %v4460, %v4447
        %v4463 = vsel %vm2528, %v4461, %v4449
        %v4464 = vsel %vm2531, %v4462, %v4455
        %v4465 = vsel %vm2531, %v4463, %v4457
        %v4466 = vpack.c.bf16 %v4465, %v4464
        %s4467 = scalar_lea.vmem %s8, 16
        %v4468 = vld [vmem:[%s4467] sm:$0xf]
        %v4469 = vld [vmem:[%s4467 + $0x4] sm:$0xf]
        %v4470 = vld [vmem:[%s4467 + $0x8] sm:$0xf]
        %v4471 = vld [vmem:[%s4467 + $0xc] sm:$0xf]
        %s4472 = scalar_lea.vmem %s9, 1
        %v4473 = vld [vmem:[%s4472] sm:$0x1]
        %v4475 = vlaneseq
        %v4476 = vshrl.u32 %v4475, 7
        %v4477 = vsub.s32 0, %v4476
        %v4478 = vrot.slane %v4473, %v4477
        %v4484 = vunpack.c.l.b16 %v4468
        %v4485 = vunpack.c.l.b16 %v4469
        %v4486 = vunpack.c.l.b16 %v4470
        %v4487 = vunpack.c.l.b16 %v4471
        %v4488 = vpack.c.b16 %v4485, %v4484
        %v4489 = vpack.c.b16 %v4487, %v4486
        %v4493 = vsel %vm712, %v4466, 0
        %4495 = vmatprep.subr.bf16.mxu0 0
        %4496 = vmatpush1.bf16.msra.mxu0 0
        %4497 = vmatprep.subr.bf16.mxu0 0
        %4498 = vmatpush1.bf16.msra.mxu0 0
        %4499 = vmatprep.subr.bf16.mxu0 0
        %4500 = vmatpush1.bf16.msra.mxu0 0
        %4501 = vmatprep.subr.bf16.mxu0 0
        %4502 = vmatpush1.bf16.msra.mxu0 0
        %4503 = vmatprep.subr.bf16.mxu0 0
        %4504 = vmatpush1.bf16.msra.mxu0 0
        %4505 = vmatprep.subr.bf16.mxu0 0
        %4506 = vmatpush1.bf16.msra.mxu0 0
        %4507 = vmatprep.subr.bf16.mxu0 0
        %4508 = vmatpush1.bf16.msra.mxu0 %v4489
        %4509 = vmatprep.subr.bf16.mxu0 0
        %4510 = vmatpush1.bf16.msra.mxu0 %v4488
        %4511 = vmatprep.subr.bf16.mxu0 0
        %4512 = vmatpush2.bf16.msra.mxu0 0
        %4513 = vmatprep.subr.bf16.mxu0 0
        %4514 = vmatpush2.bf16.msra.mxu0 0
        %4515 = vmatprep.subr.bf16.mxu0 0
        %4516 = vmatpush2.bf16.msra.mxu0 0
        %4517 = vmatprep.subr.bf16.mxu0 0
        %4518 = vmatpush2.bf16.msra.mxu0 0
        %4519 = vmatprep.subr.bf16.mxu0 0
        %4520 = vmatpush2.bf16.msra.mxu0 0
        %4521 = vmatprep.subr.bf16.mxu0 0
        %4522 = vmatpush2.bf16.msra.mxu0 0
        %4523 = vmatprep.subr.bf16.mxu0 0
        %4524 = vmatpush2.bf16.msra.mxu0 0
        %4525 = vmatprep.subr.bf16.mxu0 0
        %4526 = vmatpush2.bf16.msra.mxu0 0
        %4527 = vmatprep.mubr.bf16.mxu0 0
        %4528 = vmatmul.mubr.bf16.gmra.mxu0 %v4493
        %v4529 = vpop.f32.mrf.mxu0
        %v4530 = vadd.f32 %v4478, %v4529
        %v4531 = vpop.f32.mrf.mxu0
        %v4532 = vpop.f32.mrf.mxu0
        %v4533 = vadd.f32 %v4478, %v4532
        %v4534 = vpop.f32.mrf.mxu0
        %4535 = vdwg.mxu0
        %s4536 = scalar_lea.vmem %s14, 4
        %v4537 = vld [vmem:[%s4536] sm:$0x7]
        %s4538 = scalar_lea.vmem %s15, 4
        %v4539 = vld [vmem:[%s4538] sm:$0x7]
        %v4540 = vadd.f32 %v4530, %v2906
        %v4541 = vadd.f32 %v4533, %v2907
        %v4542 = vsel %vm712, %v4540, 0.0
        %4543 = vadd.xlane.f32.xlu0 %v4542
        %v4544 = vpop.xlane.xlu0 %4543
        %v4545 = vsel %vm712, %v4541, 0.0
        %4546 = vadd.xlane.f32.xlu0 %v4545
        %v4547 = vpop.xlane.xlu0 %4546
        %v4548 = vmul.f32 %v4544, %v2612
        %v4549 = vmul.f32 %v4547, %v2612
        %v4550 = vsub.f32 %v4540, %v4548
        %v4551 = vsub.f32 %v4541, %v4549
        %v4552 = vmul.f32 %v4550, %v4550
        %v4553 = vmul.f32 %v4551, %v4551
        %v4554 = vsel %vm712, %v4552, 0.0
        %4555 = vadd.xlane.f32.xlu0 %v4554
        %v4556 = vpop.xlane.xlu0 %4555
        %v4557 = vsel %vm712, %v4553, 0.0
        %4558 = vadd.xlane.f32.xlu0 %v4557
        %v4559 = vpop.xlane.xlu0 %4558
        %v4560 = vmul.f32 %v4556, %v2612
        %v4561 = vmul.f32 %v4559, %v2612
        %v4562 = vadd.f32 %v4560, 1e-05
        %v4563 = vadd.f32 %v4561, 1e-05
        %v4564 = vrsqrt.pop %v4562
        %v4565 = vrsqrt.pop %v4563
        %v4566 = vmul.f32 %v4550, %v4564
        %v4567 = vmul.f32 %v4551, %v4565
        %v4568 = vlaneseq
        %v4569 = vshrl.u32 %v4568, 7
        %v4570 = vsub.s32 0, %v4569
        %v4571 = vrot.slane %v4537, %v4570
        %v4572 = vmul.f32 %v4566, %v4571
        %v4573 = vmul.f32 %v4567, %v4571
        %v4574 = vlaneseq
        %v4575 = vshrl.u32 %v4574, 7
        %v4576 = vsub.s32 0, %v4575
        %v4577 = vrot.slane %v4539, %v4576
        %v4578 = vadd.f32 %v4572, %v4577
        %v4579 = vadd.f32 %v4573, %v4577
        %v4580 = vpack.c.bf16 %v4579, %v4578
        %s4581 = scalar_lea.vmem %s10, 16
        %v4582 = vld [vmem:[%s4581] sm:$0xf]
        %v4583 = vld [vmem:[%s4581 + $0x4] sm:$0xf]
        %v4584 = vld [vmem:[%s4581 + $0x8] sm:$0xf]
        %v4585 = vld [vmem:[%s4581 + $0xc] sm:$0xf]
        %s4586 = scalar_lea.vmem %s11, 1
        %v4587 = vld [vmem:[%s4586] sm:$0x1]
        %v4589 = vlaneseq
        %v4590 = vshrl.u32 %v4589, 7
        %v4591 = vsub.s32 0, %v4590
        %v4592 = vrot.slane %v4587, %v4591
        %v4598 = vunpack.c.l.b16 %v4582
        %v4599 = vunpack.c.l.b16 %v4583
        %v4600 = vunpack.c.l.b16 %v4584
        %v4601 = vunpack.c.l.b16 %v4585
        %v4602 = vpack.c.b16 %v4599, %v4598
        %v4603 = vpack.c.b16 %v4601, %v4600
        %v4607 = vsel %vm712, %v4580, 0
        %4609 = vmatprep.subr.bf16.mxu0 0
        %4610 = vmatpush1.bf16.msra.mxu0 0
        %4611 = vmatprep.subr.bf16.mxu0 0
        %4612 = vmatpush1.bf16.msra.mxu0 0
        %4613 = vmatprep.subr.bf16.mxu0 0
        %4614 = vmatpush1.bf16.msra.mxu0 0
        %4615 = vmatprep.subr.bf16.mxu0 0
        %4616 = vmatpush1.bf16.msra.mxu0 0
        %4617 = vmatprep.subr.bf16.mxu0 0
        %4618 = vmatpush1.bf16.msra.mxu0 0
        %4619 = vmatprep.subr.bf16.mxu0 0
        %4620 = vmatpush1.bf16.msra.mxu0 0
        %4621 = vmatprep.subr.bf16.mxu0 0
        %4622 = vmatpush1.bf16.msra.mxu0 %v4603
        %4623 = vmatprep.subr.bf16.mxu0 0
        %4624 = vmatpush1.bf16.msra.mxu0 %v4602
        %4625 = vmatprep.subr.bf16.mxu0 0
        %4626 = vmatpush2.bf16.msra.mxu0 0
        %4627 = vmatprep.subr.bf16.mxu0 0
        %4628 = vmatpush2.bf16.msra.mxu0 0
        %4629 = vmatprep.subr.bf16.mxu0 0
        %4630 = vmatpush2.bf16.msra.mxu0 0
        %4631 = vmatprep.subr.bf16.mxu0 0
        %4632 = vmatpush2.bf16.msra.mxu0 0
        %4633 = vmatprep.subr.bf16.mxu0 0
        %4634 = vmatpush2.bf16.msra.mxu0 0
        %4635 = vmatprep.subr.bf16.mxu0 0
        %4636 = vmatpush2.bf16.msra.mxu0 0
        %4637 = vmatprep.subr.bf16.mxu0 0
        %4638 = vmatpush2.bf16.msra.mxu0 0
        %4639 = vmatprep.subr.bf16.mxu0 0
        %4640 = vmatpush2.bf16.msra.mxu0 0
        %4641 = vmatprep.mubr.bf16.mxu0 0
        %4642 = vmatmul.mubr.bf16.gmra.mxu0 %v4607
        %v4643 = vpop.f32.mrf.mxu0
        %v4644 = vadd.f32 %v4592, %v4643
        %v4645 = vpop.f32.mrf.mxu0
        %v4646 = vpop.f32.mrf.mxu0
        %v4647 = vadd.f32 %v4592, %v4646
        %v4648 = vpop.f32.mrf.mxu0
        %4649 = vdwg.mxu0
        %v4650 = vmax.f32 %v4644, 0.0
        %v4651 = vmax.f32 %v4647, 0.0
        %v4652 = vpack.c.bf16 %v4651, %v4650
        %s4653 = scalar_lea.vmem %s12, 64
        %v4654 = vld [vmem:[%s4653] sm:$0xf]
        %v4655 = vld [vmem:[%s4653 + $0x4] sm:$0xf]
        %v4656 = vld [vmem:[%s4653 + $0x8] sm:$0xf]
        %v4657 = vld [vmem:[%s4653 + $0xc] sm:$0xf]
        %v4658 = vld [vmem:[%s4653 + $0x10] sm:$0xf]
        %v4659 = vld [vmem:[%s4653 + $0x14] sm:$0xf]
        %v4660 = vld [vmem:[%s4653 + $0x18] sm:$0xf]
        %v4661 = vld [vmem:[%s4653 + $0x1c] sm:$0xf]
        %v4662 = vld [vmem:[%s4653 + $0x20] sm:$0xf]
        %v4663 = vld [vmem:[%s4653 + $0x24] sm:$0xf]
        %v4664 = vld [vmem:[%s4653 + $0x28] sm:$0xf]
        %v4665 = vld [vmem:[%s4653 + $0x2c] sm:$0xf]
        %v4666 = vld [vmem:[%s4653 + $0x30] sm:$0xf]
        %v4667 = vld [vmem:[%s4653 + $0x34] sm:$0xf]
        %v4668 = vld [vmem:[%s4653 + $0x38] sm:$0xf]
        %v4669 = vld [vmem:[%s4653 + $0x3c] sm:$0xf]
        %s4670 = scalar_lea.vmem %s13, 1
        %v4671 = vld [vmem:[%s4670] sm:$0x1]
        %v4673 = vlaneseq
        %v4674 = vshrl.u32 %v4673, 7
        %v4675 = vsub.s32 0, %v4674
        %v4676 = vrot.slane %v4671, %v4675
        %v4694 = vunpack.c.l.b16 %v4654
        %v4695 = vunpack.c.l.b16 %v4655
        %v4696 = vunpack.c.l.b16 %v4656
        %v4697 = vunpack.c.l.b16 %v4657
        %v4698 = vunpack.c.l.b16 %v4658
        %v4699 = vunpack.c.l.b16 %v4659
        %v4700 = vunpack.c.l.b16 %v4660
        %v4701 = vunpack.c.l.b16 %v4661
        %v4702 = vunpack.c.l.b16 %v4662
        %v4703 = vunpack.c.l.b16 %v4663
        %v4704 = vunpack.c.l.b16 %v4664
        %v4705 = vunpack.c.l.b16 %v4665
        %v4706 = vunpack.c.l.b16 %v4666
        %v4707 = vunpack.c.l.b16 %v4667
        %v4708 = vunpack.c.l.b16 %v4668
        %v4709 = vunpack.c.l.b16 %v4669
        %v4710 = vpack.c.b16 %v4695, %v4694
        %v4711 = vpack.c.b16 %v4697, %v4696
        %v4712 = vpack.c.b16 %v4699, %v4698
        %v4713 = vpack.c.b16 %v4701, %v4700
        %v4714 = vpack.c.b16 %v4703, %v4702
        %v4715 = vpack.c.b16 %v4705, %v4704
        %v4716 = vpack.c.b16 %v4707, %v4706
        %v4717 = vpack.c.b16 %v4709, %v4708
        %4726 = vmatprep.subr.bf16.mxu0 0
        %4727 = vmatpush1.bf16.msra.mxu0 %v4717
        %4728 = vmatprep.subr.bf16.mxu0 0
        %4729 = vmatpush1.bf16.msra.mxu0 %v4716
        %4730 = vmatprep.subr.bf16.mxu0 0
        %4731 = vmatpush1.bf16.msra.mxu0 %v4715
        %4732 = vmatprep.subr.bf16.mxu0 0
        %4733 = vmatpush1.bf16.msra.mxu0 %v4714
        %4734 = vmatprep.subr.bf16.mxu0 0
        %4735 = vmatpush1.bf16.msra.mxu0 %v4713
        %4736 = vmatprep.subr.bf16.mxu0 0
        %4737 = vmatpush1.bf16.msra.mxu0 %v4712
        %4738 = vmatprep.subr.bf16.mxu0 0
        %4739 = vmatpush1.bf16.msra.mxu0 %v4711
        %4740 = vmatprep.subr.bf16.mxu0 0
        %4741 = vmatpush1.bf16.msra.mxu0 %v4710
        %4742 = vmatprep.subr.bf16.mxu0 0
        %4743 = vmatpush2.bf16.msra.mxu0 0
        %4744 = vmatprep.subr.bf16.mxu0 0
        %4745 = vmatpush2.bf16.msra.mxu0 0
        %4746 = vmatprep.subr.bf16.mxu0 0
        %4747 = vmatpush2.bf16.msra.mxu0 0
        %4748 = vmatprep.subr.bf16.mxu0 0
        %4749 = vmatpush2.bf16.msra.mxu0 0
        %4750 = vmatprep.subr.bf16.mxu0 0
        %4751 = vmatpush2.bf16.msra.mxu0 0
        %4752 = vmatprep.subr.bf16.mxu0 0
        %4753 = vmatpush2.bf16.msra.mxu0 0
        %4754 = vmatprep.subr.bf16.mxu0 0
        %4755 = vmatpush2.bf16.msra.mxu0 0
        %4756 = vmatprep.subr.bf16.mxu0 0
        %4757 = vmatpush2.bf16.msra.mxu0 0
        %4758 = vmatprep.mubr.bf16.mxu0 0
        %4759 = vmatmul.mubr.bf16.gmra.mxu0 %v4652
        %v4760 = vpop.f32.mrf.mxu0
        %v4761 = vadd.f32 %v4676, %v4760
        %v4762 = vpop.f32.mrf.mxu0
        %v4763 = vpop.f32.mrf.mxu0
        %v4764 = vadd.f32 %v4676, %v4763
        %v4765 = vpop.f32.mrf.mxu0
        %4766 = vdwg.mxu0
        %v4767 = vadd.f32 %v4578, %v4761
        %v4768 = vadd.f32 %v4579, %v4764
        %v4769 = vsel %vm712, %v4767, 0.0
        %4770 = vadd.xlane.f32.xlu0 %v4769
        %v4771 = vpop.xlane.xlu0 %4770
        %v4772 = vsel %vm712, %v4768, 0.0
        %4773 = vadd.xlane.f32.xlu0 %v4772
        %v4774 = vpop.xlane.xlu0 %4773
        %v4775 = vmul.f32 %v4771, %v2612
        %v4776 = vmul.f32 %v4774, %v2612
        %v4777 = vsub.f32 %v4767, %v4775
        %v4778 = vsub.f32 %v4768, %v4776
        %v4779 = vmul.f32 %v4777, %v4777
        %v4780 = vmul.f32 %v4778, %v4778
        %v4781 = vsel %vm712, %v4779, 0.0
        %4782 = vadd.xlane.f32.xlu0 %v4781
        %v4783 = vpop.xlane.xlu0 %4782
        %v4784 = vsel %vm712, %v4780, 0.0
        %4785 = vadd.xlane.f32.xlu0 %v4784
        %v4786 = vpop.xlane.xlu0 %4785
        %v4787 = vmul.f32 %v4783, %v2612
        %v4788 = vmul.f32 %v4786, %v2612
        %v4789 = vadd.f32 %v4787, 1e-05
        %v4790 = vadd.f32 %v4788, 1e-05
        %v4791 = vrsqrt.pop %v4789
        %v4792 = vrsqrt.pop %v4790
        %v4793 = vmul.f32 %v4777, %v4791
        %v4794 = vmul.f32 %v4778, %v4792
        %v4795 = vlaneseq
        %v4796 = vshrl.u32 %v4795, 7
        %v4797 = vsub.s32 1, %v4796
        %v4798 = vrot.slane %v4537, %v4797
        %v4799 = vmul.f32 %v4793, %v4798
        %v4800 = vmul.f32 %v4794, %v4798
        %v4801 = vlaneseq
        %v4802 = vshrl.u32 %v4801, 7
        %v4803 = vsub.s32 1, %v4802
        %v4804 = vrot.slane %v4539, %v4803
        %v4805 = vadd.f32 %v4799, %v4804
        %v4806 = vadd.f32 %v4800, %v4804
        %v4807 = vadd.f32 %v4578, %v4805
        %v4808 = vadd.f32 %v4579, %v4806
        %v4809 = vsel %vm712, %v4807, 0.0
        %4810 = vadd.xlane.f32.xlu0 %v4809
        %v4811 = vpop.xlane.xlu0 %4810
        %v4812 = vsel %vm712, %v4808, 0.0
        %4813 = vadd.xlane.f32.xlu0 %v4812
        %v4814 = vpop.xlane.xlu0 %4813
        %v4815 = vmul.f32 %v4811, %v2612
        %v4816 = vmul.f32 %v4814, %v2612
        %v4817 = vsub.f32 %v4807, %v4815
        %v4818 = vsub.f32 %v4808, %v4816
        %v4819 = vmul.f32 %v4817, %v4817
        %v4820 = vmul.f32 %v4818, %v4818
        %v4821 = vsel %vm712, %v4819, 0.0
        %4822 = vadd.xlane.f32.xlu0 %v4821
        %v4823 = vpop.xlane.xlu0 %4822
        %v4824 = vsel %vm712, %v4820, 0.0
        %4825 = vadd.xlane.f32.xlu0 %v4824
        %v4826 = vpop.xlane.xlu0 %4825
        %v4827 = vmul.f32 %v4823, %v2612
        %v4828 = vmul.f32 %v4826, %v2612
        %v4829 = vadd.f32 %v4827, 1e-05
        %v4830 = vadd.f32 %v4828, 1e-05
        %v4831 = vrsqrt.pop %v4829
        %v4832 = vrsqrt.pop %v4830
        %v4833 = vmul.f32 %v4817, %v4831
        %v4834 = vmul.f32 %v4818, %v4832
        %v4835 = vlaneseq
        %v4836 = vshrl.u32 %v4835, 7
        %v4837 = vsub.s32 2, %v4836
        %v4838 = vrot.slane %v4537, %v4837
        %v4839 = vmul.f32 %v4833, %v4838
        %v4840 = vmul.f32 %v4834, %v4838
        %v4841 = vlaneseq
        %v4842 = vshrl.u32 %v4841, 7
        %v4843 = vsub.s32 2, %v4842
        %v4844 = vrot.slane %v4539, %v4843
        %v4845 = vadd.f32 %v4839, %v4844
        %v4846 = vadd.f32 %v4840, %v4844
        %4847 = vst.msk [vmem:[%s676] sm:$0xff] %vm712, %v4845
        %4848 = vst.msk [vmem:[%s676 + $0x8] sm:$0xff] %vm712, %v4846
        %v4849 = vpack.c.bf16 %v4846, %v4845
        %v4850 = vld [vmem:[%s16] sm:$0xf]
        %v4851 = vld [vmem:[%s16 + $0x4] sm:$0xf]
        %v4852 = vld [vmem:[%s16 + $0x8] sm:$0xf]
        %v4853 = vld [vmem:[%s16 + $0xc] sm:$0xf]
        %v4854 = vld [vmem:[%s17] sm:$0x1]
        %v4856 = vlaneseq
        %v4857 = vshrl.u32 %v4856, 7
        %v4858 = vsub.s32 0, %v4857
        %v4859 = vrot.slane %v4854, %v4858
        %v4865 = vunpack.c.l.b16 %v4850
        %v4866 = vunpack.c.l.b16 %v4851
        %v4867 = vunpack.c.l.b16 %v4852
        %v4868 = vunpack.c.l.b16 %v4853
        %v4869 = vpack.c.b16 %v4866, %v4865
        %v4870 = vpack.c.b16 %v4868, %v4867
        %v4874 = vsel %vm712, %v4849, 0
        %4876 = vmatprep.subr.bf16.mxu0 0
        %4877 = vmatpush1.bf16.msra.mxu0 0
        %4878 = vmatprep.subr.bf16.mxu0 0
        %4879 = vmatpush1.bf16.msra.mxu0 0
        %4880 = vmatprep.subr.bf16.mxu0 0
        %4881 = vmatpush1.bf16.msra.mxu0 0
        %4882 = vmatprep.subr.bf16.mxu0 0
        %4883 = vmatpush1.bf16.msra.mxu0 0
        %4884 = vmatprep.subr.bf16.mxu0 0
        %4885 = vmatpush1.bf16.msra.mxu0 0
        %4886 = vmatprep.subr.bf16.mxu0 0
        %4887 = vmatpush1.bf16.msra.mxu0 0
        %4888 = vmatprep.subr.bf16.mxu0 0
        %4889 = vmatpush1.bf16.msra.mxu0 %v4870
        %4890 = vmatprep.subr.bf16.mxu0 0
        %4891 = vmatpush1.bf16.msra.mxu0 %v4869
        %4892 = vmatprep.subr.bf16.mxu0 0
        %4893 = vmatpush2.bf16.msra.mxu0 0
        %4894 = vmatprep.subr.bf16.mxu0 0
        %4895 = vmatpush2.bf16.msra.mxu0 0
        %4896 = vmatprep.subr.bf16.mxu0 0
        %4897 = vmatpush2.bf16.msra.mxu0 0
        %4898 = vmatprep.subr.bf16.mxu0 0
        %4899 = vmatpush2.bf16.msra.mxu0 0
        %4900 = vmatprep.subr.bf16.mxu0 0
        %4901 = vmatpush2.bf16.msra.mxu0 0
        %4902 = vmatprep.subr.bf16.mxu0 0
        %4903 = vmatpush2.bf16.msra.mxu0 0
        %4904 = vmatprep.subr.bf16.mxu0 0
        %4905 = vmatpush2.bf16.msra.mxu0 0
        %4906 = vmatprep.subr.bf16.mxu0 0
        %4907 = vmatpush2.bf16.msra.mxu0 0
        %4908 = vmatprep.mubr.bf16.mxu0 0
        %4909 = vmatmul.mubr.bf16.gmra.mxu0 %v4874
        %v4910 = vpop.f32.mrf.mxu0
        %v4911 = vadd.f32 %v4859, %v4910
        %v4912 = vpop.f32.mrf.mxu0
        %v4913 = vpop.f32.mrf.mxu0
        %v4914 = vadd.f32 %v4859, %v4913
        %v4915 = vpop.f32.mrf.mxu0
        %4916 = vdwg.mxu0
        %4917 = vmax.xlane.f32.xlu0 %v4911
        %v4918 = vpop.xlane.xlu0 %4917
        %4919 = vmax.xlane.f32.xlu0 %v4914
        %v4920 = vpop.xlane.xlu0 %4919
        %v4921 = vsub.f32 %v4911, %v4918
        %v4922 = vsub.f32 %v4914, %v4920
        %v4923 = vmul.f32 %v4921, 1.442695
        %v4924 = vpow.pop %v4923
        %v4925 = vmul.f32 %v4922, 1.442695
        %v4926 = vpow.pop %v4925
        %4927 = vadd.xlane.f32.xlu0 %v4924
        %v4928 = vpop.xlane.xlu0 %4927
        %4929 = vadd.xlane.f32.xlu0 %v4926
        %v4930 = vpop.xlane.xlu0 %4929
        %v4931 = vrcp.pop %v4928
        %v4932 = vmul.f32 %v4924, %v4931
        %v4933 = vrcp.pop %v4930
        %v4934 = vmul.f32 %v4926, %v4933
        %4935 = vst [vmem:[%s683] sm:$0xff] %v4932
        %4936 = vst [vmem:[%s683 + $0x8] sm:$0xff] %v4934
        %s4937 = sand.u32 %s436, 1
        %s4938 = scalar_lea.sflag [#allocation4], %s4937
        %s4939 = sand.u32 %s436, 1
        %s4940 = smul.addr %s4939, 16
        %s4941 = scalar_lea.vmem [#allocation7], %s4940
        %s4942 = sand.u32 %s40, 1
        %s4943 = scalar_lea.sflag [#allocation9], %s4942
        %s4944 = sand.u32 %s462, 1
        %s4945 = smul.addr %s4944, 16
        %s4946 = scalar_lea.vmem [#allocation8], %s4945
        %s4947 = sand.u32 %s40, 1
        %s4948 = scalar_lea.sflag [#allocation9], %s4947
        %s4949 = sand.u32 %s488, 1
        %s4950 = smul.addr %s4949, 16
        %s4951 = scalar_lea.vmem [#allocation10], %s4950
        // Predicated region
        $region101: #{tpu_custom_call.1} parent=91 // pred_check
          %p4952 = pneg %p446
        $region102: #{tpu_custom_call.1} parent=91 // pred_check_branch
          %4954 = sbr.rel (%p4952) target = $region104
        $region103: #{tpu_custom_call.1} parent=91 // pred_region
          %s4955 = smul.u32 2, %s40
          %s4957 = ssub.s32 256, 256
          %4958 = vsyncadd %s4938, %s4957
          %s4959 = smul.addr %s4955, 128
          %s4960 = scalar_lea.hbm %s18, %s4959
          %s4961 = sshll.u32 %s4941, 4
          %s4962 = int_to_ptr.vmem [resolvable:$true] %s4961
          %4967 = dma.vmem_to_hbm [thread:$0]  %s4962, 256, %s4960, %s4938, 128, 128, 8
        $region104: #{tpu_custom_call.1} parent=91 // pred_fallthru
          _
        // Predicated region
        $region105: #{tpu_custom_call.1} parent=91 // pred_check
          %p4968 = pneg %p472
        $region106: #{tpu_custom_call.1} parent=91 // pred_check_branch
          %4970 = sbr.rel (%p4968) target = $region108
        $region107: #{tpu_custom_call.1} parent=91 // pred_region
          %s4971 = smul.u32 2, %s40
          %s4973 = ssub.s32 256, 256
          %4974 = vsyncadd %s4943, %s4973
          %s4975 = smul.addr %s4971, 128
          %s4976 = scalar_lea.hbm %s19, %s4975
          %s4977 = sshll.u32 %s4946, 4
          %s4978 = int_to_ptr.vmem [resolvable:$true] %s4977
          %4983 = dma.vmem_to_hbm [thread:$0]  %s4978, 256, %s4976, %s4943, 128, 128, 8
        $region108: #{tpu_custom_call.1} parent=91 // pred_fallthru
          _
        // Predicated region
        $region109: #{tpu_custom_call.1} parent=91 // pred_check
          %p4984 = pneg %p498
        $region110: #{tpu_custom_call.1} parent=91 // pred_check_branch
          %4986 = sbr.rel (%p4984) target = $region112
        $region111: #{tpu_custom_call.1} parent=91 // pred_region
          %s4987 = smul.u32 2, %s40
          %s4989 = ssub.s32 256, 256
          %4990 = vsyncadd %s4948, %s4989
          %s4991 = smul.addr %s4987, 128
          %s4992 = scalar_lea.hbm %s20, %s4991
          %s4993 = sshll.u32 %s4951, 4
          %s4994 = int_to_ptr.vmem [resolvable:$true] %s4993
          %4999 = dma.vmem_to_hbm [thread:$0]  %s4994, 256, %s4992, %s4948, 128, 128, 8
        $region112: #{tpu_custom_call.1} parent=91 // pred_fallthru
          _
      $region92: #{tpu_custom_call.1} parent=5 // pred_fallthru
        _
      %p5000 = scmp.le.s32.totalorder 2, %s35
      // Predicated region
      $region113: #{tpu_custom_call.1} parent=5 // pred_check
        %p5001 = pneg %p5000
      $region114: #{tpu_custom_call.1} parent=5 // pred_check_branch
        %5003 = sbr.rel (%p5001) target = $region116
      $region115: #{tpu_custom_call.1} parent=5 // pred_region
        %s5004 = ssub.s32 %s35, 2
        // Predicated region
        $region117: #{tpu_custom_call.1} parent=115 // pred_check
          %p5005 = pneg %p452
        $region118: #{tpu_custom_call.1} parent=115 // pred_check_branch
          %5007 = sbr.rel (%p5005) target = $region120
        $region119: #{tpu_custom_call.1} parent=115 // pred_region
          %s5008 = sand.u32 %s437, 1
          %s5009 = scalar_lea.sflag [#allocation4], %s5008
          %s5010 = sand.u32 %s437, 1
          %s5011 = smul.addr %s5010, 16
          %s5012 = scalar_lea.vmem [#allocation7], %s5011
          %5013 = dma.done %s5009, 256
        $region120: #{tpu_custom_call.1} parent=115 // pred_fallthru
          _
        // Predicated region
        $region121: #{tpu_custom_call.1} parent=115 // pred_check
          %p5014 = pneg %p478
        $region122: #{tpu_custom_call.1} parent=115 // pred_check_branch
          %5016 = sbr.rel (%p5014) target = $region124
        $region123: #{tpu_custom_call.1} parent=115 // pred_region
          %s5017 = sand.u32 %s41, 1
          %s5018 = scalar_lea.sflag [#allocation9], %s5017
          %s5019 = sand.u32 %s463, 1
          %s5020 = smul.addr %s5019, 16
          %s5021 = scalar_lea.vmem [#allocation8], %s5020
          %5022 = dma.done %s5018, 256
        $region124: #{tpu_custom_call.1} parent=115 // pred_fallthru
          _
        // Predicated region
        $region125: #{tpu_custom_call.1} parent=115 // pred_check
          %p5023 = pneg %p504
        $region126: #{tpu_custom_call.1} parent=115 // pred_check_branch
          %5025 = sbr.rel (%p5023) target = $region128
        $region127: #{tpu_custom_call.1} parent=115 // pred_region
          %s5026 = sand.u32 %s41, 1
          %s5027 = scalar_lea.sflag [#allocation9], %s5026
          %s5028 = sand.u32 %s489, 1
          %s5029 = smul.addr %s5028, 16
          %s5030 = scalar_lea.vmem [#allocation10], %s5029
          %5031 = dma.done %s5027, 256
        $region128: #{tpu_custom_call.1} parent=115 // pred_fallthru
          _
      $region116: #{tpu_custom_call.1} parent=5 // pred_fallthru
        _
    $region6: #{tpu_custom_call.1} parent=1 // loop_footer
      %s39 = sadd.s32 1, %s35
    $region7: #{tpu_custom_call.1} parent=1 // loop_footer_branch
      %34 = sbr.rel target = $region3
    $region8: #{tpu_custom_call.1} parent=1 // loop_exit
      _
    %5032 = vsyncpa [#allocation3], 1
    %s5033 = scalar_lea.sflag [#allocation3], 1
    %5034 = vsyncpa %s5033, 1
    %5035 = vsyncpa [#allocation6], 1
    %5036 = vsyncpa [#allocation4], 1
    %s5037 = scalar_lea.sflag [#allocation4], 1
    %5038 = vsyncpa %s5037, 1
    %5039 = vsyncpa [#allocation9], 1
    %s5040 = scalar_lea.sflag [#allocation9], 1
    %5041 = vsyncpa %s5040, 1

</llo_original>
